<compile_context>
chip_gen: v5e
topology: v5e:2x2
jax: 0.10.0
libtpu: 0.0.40
codegen_flags: <defaults>
</compile_context>

<pallas_src>
import functools

import jax
import jax.numpy as jnp
from jax.experimental import pallas as pl
from jax.experimental.pallas import tpu as pltpu


# ----------------------------------------------------------------------------- kernel
def gcn_block_kernel(x_ref, nbr_ref, predr_ref, succr_ref, predk_ref, succk_ref,
                     w_ref, b_ref, ow_ref, ob_ref, gamma_ref, beta_ref,
                     out_ref, feat_acc, pred2_acc, succ2_acc, *, h):
    i = pl.program_id(0)          # row-tile index
    k = pl.program_id(1)          # K-tile index (contraction over nodes)
    nk = pl.num_programs(1)
    tile_n, tile_k = nbr_ref.shape
    hp = x_ref.shape[1]           # lane-padded hidden size (multiple of 128)

    @pl.when(k == 0)
    def _init():
        feat_acc[...] = jnp.zeros_like(feat_acc)
        pred2_acc[...] = jnp.zeros_like(pred2_acc)
        succ2_acc[...] = jnp.zeros_like(succ2_acc)

    # K-slab of the (VMEM-resident) node features.
    kst = pl.multiple_of(k * tile_k, tile_k)
    x_k = x_ref[pl.ds(kst, tile_k), :]                           # (tile_k, hp) f32

    nbr_b = nbr_ref[...]                                         # (tile_n, tile_k) bf16
    pred_b = predr_ref[...]
    succ_b = succr_ref[...]

    # First-order propagation, accumulated straight into the fused feature slab at
    # 128-aligned lane offsets: [x | nbr@x | pred@x | succ@x | pred2@x | succ2@x].
    feat_acc[:, hp:2 * hp] += jnp.dot(nbr_b.astype(jnp.float32), x_k,
                                      preferred_element_type=jnp.float32)
    feat_acc[:, 2 * hp:3 * hp] += jnp.dot(pred_b.astype(jnp.float32), x_k,
                                          preferred_element_type=jnp.float32)
    feat_acc[:, 3 * hp:4 * hp] += jnp.dot(succ_b.astype(jnp.float32), x_k,
                                          preferred_element_type=jnp.float32)

    # Second-order adjacency: bf16 x bf16 (exact 0/1 inputs) with f32 accumulation.
    pred2_acc[...] += jnp.dot(pred_b, predk_ref[...], preferred_element_type=jnp.float32)
    succ2_acc[...] += jnp.dot(succ_b, succk_ref[...], preferred_element_type=jnp.float32)

    @pl.when(k == nk - 1)
    def _finalize():
        x_all = x_ref[...]                                       # (N, hp)
        rst = pl.multiple_of(i * tile_n, tile_n)
        x_tile = x_ref[pl.ds(rst, tile_n), :]                    # (tile_n, hp)

        pred2 = jnp.minimum(pred2_acc[...], 1.0)                 # clamp entries > 1 to 1
        succ2 = jnp.minimum(succ2_acc[...], 1.0)

        feat_acc[:, 0:hp] = x_tile
        feat_acc[:, 4 * hp:5 * hp] = jnp.dot(pred2, x_all, preferred_element_type=jnp.float32)
        feat_acc[:, 5 * hp:6 * hp] = jnp.dot(succ2, x_all, preferred_element_type=jnp.float32)

        gamma = gamma_ref[...]                                   # (1, hp), zero in padded lanes
        beta = beta_ref[...]
        lane = jax.lax.broadcasted_iota(jnp.int32, (1, hp), 1)
        lmask = (lane < h).astype(jnp.float32)                   # mask padded lanes out of LN stats
        inv_h = 1.0 / h

        def layernorm(v, eps=1e-5):
            # v has exact zeros in padded lanes, so sum over all lanes == sum over real H.
            mu = jnp.sum(v, axis=-1, keepdims=True) * inv_h
            c = (v - mu) * lmask
            var = jnp.sum(c * c, axis=-1, keepdims=True) * inv_h
            return c * jax.lax.rsqrt(var + eps) * gamma + beta

        # Six linears fused into a single (tile_n, 6*hp) x (6*hp, hp) MXU matmul.
        next_feat = jnp.dot(feat_acc[...], w_ref[...],
                            preferred_element_type=jnp.float32) + b_ref[...]
        hid = jnp.maximum(layernorm(next_feat), 0.0)             # act(norm(next_feat))
        out = jnp.dot(hid, ow_ref[...], preferred_element_type=jnp.float32) + ob_ref[...]
        out = jnp.maximum(layernorm(out), 0.0) + x_tile          # act(norm(out)) + lane_feat
        out_ref[...] = jnp.maximum(out, 0.0)                     # act(out)


# ----------------------------------------------------------------------------- wrapper
def _pick_row_tile(n):
    for t in (512, 256, 128, 64, 32, 16):
        if t <= n and n % t == 0:
            return t
    return n


def _pick_k_tile(n):
    # Lane dim of the streamed adjacency row-blocks: multiple of 128 or the full N.
    for t in (512, 384, 256, 128):
        if t <= n and n % t == 0:
            return t
    return n


def _vmem_limit_bytes(default=48 << 20):
    # Per-generation budget (v5e/v6e: 128 MiB, v7x: 64 MiB) with double-buffer headroom.
    try:
        cap = getattr(pltpu.get_tpu_info(), "vmem_capacity_bytes", None)
        if cap is None:
            return default
        return int(min(100 << 20, (cap * 3) // 4))
    except Exception:
        return default


@functools.partial(jax.jit, static_argnames=("tile_n", "tile_k"))
def gcn_block(lane_feat, nbr, pred, succ, mask, params, tile_n=None, tile_k=None):
    del mask  # unused in the reference forward
    n, h = lane_feat.shape
    w_all, b_all, out_w, out_b, gamma, beta = params

    hp = ((h + 127) // 128) * 128          # lane-dense feature width
    ph = hp - h
    if tile_n is None:
        tile_n = _pick_row_tile(n)
    if tile_k is None:
        tile_k = _pick_k_tile(n)
    assert n % tile_n == 0 and n % tile_k == 0, "tiles must divide N"

    # Lane-pad features / parameters with zeros. Padded lanes stay exactly zero
    # through the whole forward pass (weights/bias/gamma/beta are zero-padded and
    # LayerNorm masks them), so results are identical to the unpadded math.
    x_p = jnp.pad(lane_feat.astype(jnp.float32), ((0, 0), (0, ph)))
    w_fused = jnp.pad(w_all, ((0, 0), (0, ph), (0, ph))).reshape(6 * hp, hp)
    b_fused = jnp.pad(jnp.sum(b_all, axis=0), ((0, 0), (0, ph)))   # pre-summed bias
    out_w_p = jnp.pad(out_w, ((0, ph), (0, ph)))
    out_b_p = jnp.pad(out_b, ((0, 0), (0, ph)))
    gamma_p = jnp.pad(gamma, ((0, 0), (0, ph)))
    beta_p = jnp.pad(beta, ((0, 0), (0, ph)))

    # 0/1 adjacency is exactly representable in bf16 -> half the dominant HBM traffic.
    nbr_b = nbr.astype(jnp.bfloat16)
    pred_b = pred.astype(jnp.bfloat16)
    succ_b = succ.astype(jnp.bfloat16)

    grid = (n // tile_n, n // tile_k)

    def resident(shape):
        return pl.BlockSpec(shape, lambda i, k: (0,) * len(shape))

    out_p = pl.pallas_call(
        functools.partial(gcn_block_kernel, h=h),
        out_shape=jax.ShapeDtypeStruct((n, hp), jnp.float32),
        grid=grid,
        in_specs=[
            resident((n, hp)),                                    # lane_feat (VMEM-resident)
            pl.BlockSpec((tile_n, tile_k), lambda i, k: (i, k)),  # nbr  row-block
            pl.BlockSpec((tile_n, tile_k), lambda i, k: (i, k)),  # pred row-block
            pl.BlockSpec((tile_n, tile_k), lambda i, k: (i, k)),  # succ row-block
            pl.BlockSpec((tile_k, n), lambda i, k: (k, 0)),       # pred K-slab
            pl.BlockSpec((tile_k, n), lambda i, k: (k, 0)),       # succ K-slab
            resident((6 * hp, hp)),                               # fused W (6 linears)
            resident((1, hp)),                                    # fused (pre-summed) bias
            resident((hp, hp)),                                   # output W
            resident((1, hp)),                                    # output bias
            resident((1, hp)),                                    # LayerNorm gamma
            resident((1, hp)),                                    # LayerNorm beta
        ],
        out_specs=pl.BlockSpec((tile_n, hp), lambda i, k: (i, 0)),
        scratch_shapes=[
            pltpu.VMEM((tile_n, 6 * hp), jnp.float32),            # fused feature slab
            pltpu.VMEM((tile_n, n), jnp.float32),                 # pred@pred accumulator
            pltpu.VMEM((tile_n, n), jnp.float32),                 # succ@succ accumulator
        ],
        compiler_params=pltpu.CompilerParams(
            dimension_semantics=("parallel", "arbitrary"),
            vmem_limit_bytes=_vmem_limit_bytes(),
        ),
        # NOTE: input_output_aliases={0: 0} (lane_feat -> out) is intentionally not
        # used: lane_feat must stay readable (resident) for every row tile while
        # earlier tiles write their output back to HBM.
    )(x_p, nbr_b, pred_b, succ_b, pred_b, succ_b,
      w_fused, b_fused, out_w_p, out_b_p, gamma_p, beta_p)

    return out_p[:, :h]


# ----------------------------------------------------------------------------- reference
def _layernorm(v, gamma, beta, eps=1e-5):
    # PyTorch LayerNorm: biased variance over the last dim.
    mu = jnp.mean(v, axis=-1, keepdims=True)
    var = jnp.mean((v - mu) ** 2, axis=-1, keepdims=True)
    return (v - mu) * jax.lax.rsqrt(var + eps) * gamma + beta


def gcn_block_ref(lane_feat, nbr, pred, succ, mask, params):
    """Pure-JAX reference mirroring the PyTorch forward."""
    del mask
    w_all, b_all, out_w, out_b, gamma, beta = params
    pred2 = jnp.where(pred @ pred > 1.0, 1.0, pred @ pred)
    succ2 = jnp.where(succ @ succ > 1.0, 1.0, succ @ succ)
    lin = lambda i, v: v @ w_all[i] + b_all[i]
    next_feat = (lin(0, lane_feat) + lin(1, nbr @ lane_feat)
                 + lin(2, pred @ lane_feat) + lin(3, succ @ lane_feat)
                 + lin(4, pred2 @ lane_feat) + lin(5, succ2 @ lane_feat))
    h = jnp.maximum(_layernorm(next_feat, gamma, beta), 0.0)
    out = h @ out_w + out_b
    out = jnp.maximum(_layernorm(out, gamma, beta), 0.0) + lane_feat
    return jnp.maximum(out, 0.0)


def make_params(key, hidden):
    """Deterministic synthetic parameters (shapes follow nn.Linear / nn.LayerNorm)."""
    keys = jax.random.split(key, 8)
    scale = (6.0 / (hidden + hidden)) ** 0.5  # xavier-uniform bound
    # 6 linear layers: W, W_nbr, W_pred, W_succ, W_pred_2, W_succ_2 ; stored as (in, out)
    w_all = jax.random.uniform(keys[0], (6, hidden, hidden), jnp.float32, -scale, scale)
    b_all = jax.random.uniform(keys[1], (6, 1, hidden), jnp.float32, -0.1, 0.1)
    out_w = jax.random.uniform(keys[2], (hidden, hidden), jnp.float32, -scale, scale)
    out_b = jax.random.uniform(keys[3], (1, hidden), jnp.float32, -0.1, 0.1)
    gamma = jnp.ones((1, hidden), jnp.float32)   # nn.LayerNorm default init
    beta = jnp.zeros((1, hidden), jnp.float32)
    return (w_all, b_all, out_w, out_b, gamma, beta)


if __name__ == "__main__":
    N, H = 256, 32  # nodes, hidden_size (H < 128 deliberately exercises lane padding)
    key = jax.random.PRNGKey(0)
    k_feat, k_nbr, k_pred, k_succ, k_par = jax.random.split(key, 5)

    lane_feat = jax.random.normal(k_feat, (N, H), jnp.float32)
    # 0/1 adjacency matrices (so pred@pred can exceed 1 and exercise the clamp)
    nbr = jax.random.bernoulli(k_nbr, 0.1, (N, N)).astype(jnp.float32)
    pred = jax.random.bernoulli(k_pred, 0.1, (N, N)).astype(jnp.float32)
    succ = jax.random.bernoulli(k_succ, 0.1, (N, N)).astype(jnp.float32)
    mask = jnp.ones((N,), jnp.float32)  # unused, matches PyTorch signature

    params = make_params(k_par, H)

    # tile_n=128 / tile_k=128 -> grid (2, 2): exercises the parallel row-tile axis
    # and the K accumulation path.
    out = gcn_block(lane_feat, nbr, pred, succ, mask, params, tile_n=128, tile_k=128)
    out = jax.block_until_ready(out)

    ref = gcn_block_ref(lane_feat, nbr, pred, succ, mask, params)
    assert out.shape == (N, H)
    max_err = jnp.max(jnp.abs(out - ref))
    assert jnp.allclose(out, ref, atol=1e-3, rtol=1e-3), f"mismatch vs JAX reference: {max_err}"

    print("KERNEL_OK")
</pallas_src>

<mosaic_0001>
module attributes {stable_mosaic.version = 11 : i64} {
  func.func @gcn_block_kernel(%arg0: i32, %arg1: i32, %arg2: memref<256x128xf32, #tpu.memory_space<vmem>>, %arg3: memref<128x128xbf16, #tpu.memory_space<vmem>>, %arg4: memref<128x128xbf16, #tpu.memory_space<vmem>>, %arg5: memref<128x128xbf16, #tpu.memory_space<vmem>>, %arg6: memref<128x256xbf16, #tpu.memory_space<vmem>>, %arg7: memref<128x256xbf16, #tpu.memory_space<vmem>>, %arg8: memref<768x128xf32, #tpu.memory_space<vmem>>, %arg9: memref<1x128xf32, #tpu.memory_space<vmem>>, %arg10: memref<128x128xf32, #tpu.memory_space<vmem>>, %arg11: memref<1x128xf32, #tpu.memory_space<vmem>>, %arg12: memref<1x128xf32, #tpu.memory_space<vmem>>, %arg13: memref<1x128xf32, #tpu.memory_space<vmem>>, %arg14: memref<128x128xf32, #tpu.memory_space<vmem>>, %arg15: memref<128x768xf32, #tpu.memory_space<vmem>>, %arg16: memref<128x256xf32, #tpu.memory_space<vmem>>, %arg17: memref<128x256xf32, #tpu.memory_space<vmem>>) attributes {dimension_semantics = [#tpu.dimension_semantics<parallel>, #tpu.dimension_semantics<arbitrary>], iteration_bounds = array<i64: 2, 2>, scalar_prefetch = 0 : i64, scratch_operands = 3 : i64, tpu.core_type = #tpu.core_type<tc>, window_params = [{pipeline_mode = #tpu.pipeline_mode<synchronous>, transform_indices = @transform_0, window_bounds = array<i64: 256, 128>}, {transform_indices = @transform_1, window_bounds = array<i64: 128, 128>}, {transform_indices = @transform_2, window_bounds = array<i64: 128, 128>}, {transform_indices = @transform_3, window_bounds = array<i64: 128, 128>}, {transform_indices = @transform_4, window_bounds = array<i64: 128, 256>}, {transform_indices = @transform_5, window_bounds = array<i64: 128, 256>}, {pipeline_mode = #tpu.pipeline_mode<synchronous>, transform_indices = @transform_6, window_bounds = array<i64: 768, 128>}, {pipeline_mode = #tpu.pipeline_mode<synchronous>, transform_indices = @transform_7, window_bounds = array<i64: 1, 128>}, {pipeline_mode = #tpu.pipeline_mode<synchronous>, transform_indices = @transform_8, window_bounds = array<i64: 128, 128>}, {pipeline_mode = #tpu.pipeline_mode<synchronous>, transform_indices = @transform_9, window_bounds = array<i64: 1, 128>}, {pipeline_mode = #tpu.pipeline_mode<synchronous>, transform_indices = @transform_10, window_bounds = array<i64: 1, 128>}, {pipeline_mode = #tpu.pipeline_mode<synchronous>, transform_indices = @transform_11, window_bounds = array<i64: 1, 128>}, {transform_indices = @transform_12, window_bounds = array<i64: 128, 128>}]} {
    %c0_i32 = arith.constant 0 : i32
    %0 = arith.cmpi eq, %arg1, %c0_i32 : i32
    %1 = arith.extui %0 : i1 to i32
    %c0_i32_0 = arith.constant 0 : i32
    %2 = arith.cmpi ne, %1, %c0_i32_0 : i32
    scf.if %2 {
      %cst_33 = arith.constant 0.000000e+00 : f32
      %38 = vector.broadcast %cst_33 : f32 to vector<128x768xf32>
      %c0_34 = arith.constant 0 : index
      %c0_35 = arith.constant 0 : index
      %39 = vector.load %arg15[%c0_34, %c0_35] : memref<128x768xf32, #tpu.memory_space<vmem>>, vector<128x768xf32>
      tpu.vector_store %arg15[%c0_34, %c0_35], %38 {strides = array<i32>} : memref<128x768xf32, #tpu.memory_space<vmem>>, vector<128x768xf32>,
      %cst_36 = arith.constant 0.000000e+00 : f32
      %40 = vector.broadcast %cst_36 : f32 to vector<128x256xf32>
      %c0_37 = arith.constant 0 : index
      %c0_38 = arith.constant 0 : index
      %41 = vector.load %arg16[%c0_37, %c0_38] : memref<128x256xf32, #tpu.memory_space<vmem>>, vector<128x256xf32>
      tpu.vector_store %arg16[%c0_37, %c0_38], %40 {strides = array<i32>} : memref<128x256xf32, #tpu.memory_space<vmem>>, vector<128x256xf32>,
      %cst_39 = arith.constant 0.000000e+00 : f32
      %42 = vector.broadcast %cst_39 : f32 to vector<128x256xf32>
      %c0_40 = arith.constant 0 : index
      %c0_41 = arith.constant 0 : index
      %43 = vector.load %arg17[%c0_40, %c0_41] : memref<128x256xf32, #tpu.memory_space<vmem>>, vector<128x256xf32>
      tpu.vector_store %arg17[%c0_40, %c0_41], %42 {strides = array<i32>} : memref<128x256xf32, #tpu.memory_space<vmem>>, vector<128x256xf32>,
    } else {
    }
    %c128_i32 = arith.constant 128 : i32
    %3 = arith.muli %arg1, %c128_i32 : i32
    %4 = tpu.assume_multiple %3, 128 : i32
    %5 = arith.index_cast %4 : i32 to index
    %c0 = arith.constant 0 : index
    %6 = vector.load %arg2[%5, %c0] : memref<256x128xf32, #tpu.memory_space<vmem>>, vector<128x128xf32>
    %c0_1 = arith.constant 0 : index
    %c0_2 = arith.constant 0 : index
    %7 = vector.load %arg3[%c0_1, %c0_2] : memref<128x128xbf16, #tpu.memory_space<vmem>>, vector<128x128xbf16>
    %c0_3 = arith.constant 0 : index
    %c0_4 = arith.constant 0 : index
    %8 = vector.load %arg4[%c0_3, %c0_4] : memref<128x128xbf16, #tpu.memory_space<vmem>>, vector<128x128xbf16>
    %c0_5 = arith.constant 0 : index
    %c0_6 = arith.constant 0 : index
    %9 = vector.load %arg5[%c0_5, %c0_6] : memref<128x128xbf16, #tpu.memory_space<vmem>>, vector<128x128xbf16>
    %c0_7 = arith.constant 0 : index
    %c128 = arith.constant 128 : index
    %10 = vector.load %arg15[%c0_7, %c128] : memref<128x768xf32, #tpu.memory_space<vmem>>, vector<128x128xf32>
    %11 = arith.extf %7 : vector<128x128xbf16> to vector<128x128xf32>
    %cst = arith.constant dense<0.000000e+00> : vector<128x128xf32>
    %12 = tpu.matmul %11, %6, %cst {dimension_numbers = #tpu.dot_dimension_numbers<[1], [0], [0], [1], [0, 0, 1, 1], [], []>} : vector<128x128xf32>, vector<128x128xf32>, vector<128x128xf32> -> vector<128x128xf32>
    %13 = arith.addf %10, %12 : vector<128x128xf32>
    %c0_8 = arith.constant 0 : index
    %c128_9 = arith.constant 128 : index
    %14 = vector.load %arg15[%c0_8, %c128_9] : memref<128x768xf32, #tpu.memory_space<vmem>>, vector<128x128xf32>
    tpu.vector_store %arg15[%c0_8, %c128_9], %13 {strides = array<i32>} : memref<128x768xf32, #tpu.memory_space<vmem>>, vector<128x128xf32>,
    %c0_10 = arith.constant 0 : index
    %c256 = arith.constant 256 : index
    %15 = vector.load %arg15[%c0_10, %c256] : memref<128x768xf32, #tpu.memory_space<vmem>>, vector<128x128xf32>
    %16 = arith.extf %8 : vector<128x128xbf16> to vector<128x128xf32>
    %cst_11 = arith.constant dense<0.000000e+00> : vector<128x128xf32>
    %17 = tpu.matmul %16, %6, %cst_11 {dimension_numbers = #tpu.dot_dimension_numbers<[1], [0], [0], [1], [0, 0, 1, 1], [], []>} : vector<128x128xf32>, vector<128x128xf32>, vector<128x128xf32> -> vector<128x128xf32>
    %18 = arith.addf %15, %17 : vector<128x128xf32>
    %c0_12 = arith.constant 0 : index
    %c256_13 = arith.constant 256 : index
    %19 = vector.load %arg15[%c0_12, %c256_13] : memref<128x768xf32, #tpu.memory_space<vmem>>, vector<128x128xf32>
    tpu.vector_store %arg15[%c0_12, %c256_13], %18 {strides = array<i32>} : memref<128x768xf32, #tpu.memory_space<vmem>>, vector<128x128xf32>,
    %c0_14 = arith.constant 0 : index
    %c384 = arith.constant 384 : index
    %20 = vector.load %arg15[%c0_14, %c384] : memref<128x768xf32, #tpu.memory_space<vmem>>, vector<128x128xf32>
    %21 = arith.extf %9 : vector<128x128xbf16> to vector<128x128xf32>
    %cst_15 = arith.constant dense<0.000000e+00> : vector<128x128xf32>
    %22 = tpu.matmul %21, %6, %cst_15 {dimension_numbers = #tpu.dot_dimension_numbers<[1], [0], [0], [1], [0, 0, 1, 1], [], []>} : vector<128x128xf32>, vector<128x128xf32>, vector<128x128xf32> -> vector<128x128xf32>
    %23 = arith.addf %20, %22 : vector<128x128xf32>
    %c0_16 = arith.constant 0 : index
    %c384_17 = arith.constant 384 : index
    %24 = vector.load %arg15[%c0_16, %c384_17] : memref<128x768xf32, #tpu.memory_space<vmem>>, vector<128x128xf32>
    tpu.vector_store %arg15[%c0_16, %c384_17], %23 {strides = array<i32>} : memref<128x768xf32, #tpu.memory_space<vmem>>, vector<128x128xf32>,
    %c0_18 = arith.constant 0 : index
    %c0_19 = arith.constant 0 : index
    %25 = vector.load %arg16[%c0_18, %c0_19] : memref<128x256xf32, #tpu.memory_space<vmem>>, vector<128x256xf32>
    %c0_20 = arith.constant 0 : index
    %c0_21 = arith.constant 0 : index
    %26 = vector.load %arg6[%c0_20, %c0_21] : memref<128x256xbf16, #tpu.memory_space<vmem>>, vector<128x256xbf16>
    %cst_22 = arith.constant dense<0.000000e+00> : vector<128x256xf32>
    %27 = tpu.matmul %8, %26, %cst_22 {dimension_numbers = #tpu.dot_dimension_numbers<[1], [0], [0], [1], [0, 0, 1, 1], [], []>} : vector<128x128xbf16>, vector<128x256xbf16>, vector<128x256xf32> -> vector<128x256xf32>
    %28 = arith.addf %25, %27 : vector<128x256xf32>
    %c0_23 = arith.constant 0 : index
    %c0_24 = arith.constant 0 : index
    %29 = vector.load %arg16[%c0_23, %c0_24] : memref<128x256xf32, #tpu.memory_space<vmem>>, vector<128x256xf32>
    tpu.vector_store %arg16[%c0_23, %c0_24], %28 {strides = array<i32>} : memref<128x256xf32, #tpu.memory_space<vmem>>, vector<128x256xf32>,
    %c0_25 = arith.constant 0 : index
    %c0_26 = arith.constant 0 : index
    %30 = vector.load %arg17[%c0_25, %c0_26] : memref<128x256xf32, #tpu.memory_space<vmem>>, vector<128x256xf32>
    %c0_27 = arith.constant 0 : index
    %c0_28 = arith.constant 0 : index
    %31 = vector.load %arg7[%c0_27, %c0_28] : memref<128x256xbf16, #tpu.memory_space<vmem>>, vector<128x256xbf16>
    %cst_29 = arith.constant dense<0.000000e+00> : vector<128x256xf32>
    %32 = tpu.matmul %9, %31, %cst_29 {dimension_numbers = #tpu.dot_dimension_numbers<[1], [0], [0], [1], [0, 0, 1, 1], [], []>} : vector<128x128xbf16>, vector<128x256xbf16>, vector<128x256xf32> -> vector<128x256xf32>
    %33 = arith.addf %30, %32 : vector<128x256xf32>
    %c0_30 = arith.constant 0 : index
    %c0_31 = arith.constant 0 : index
    %34 = vector.load %arg17[%c0_30, %c0_31] : memref<128x256xf32, #tpu.memory_space<vmem>>, vector<128x256xf32>
    tpu.vector_store %arg17[%c0_30, %c0_31], %33 {strides = array<i32>} : memref<128x256xf32, #tpu.memory_space<vmem>>, vector<128x256xf32>,
    %c1_i32 = arith.constant 1 : i32
    %35 = arith.cmpi eq, %arg1, %c1_i32 : i32
    %36 = arith.extui %35 : i1 to i32
    %c0_i32_32 = arith.constant 0 : i32
    %37 = arith.cmpi ne, %36, %c0_i32_32 : i32
    scf.if %37 {
      %c0_33 = arith.constant 0 : index
      %c0_34 = arith.constant 0 : index
      %38 = vector.load %arg2[%c0_33, %c0_34] : memref<256x128xf32, #tpu.memory_space<vmem>>, vector<256x128xf32>
      %c128_i32_35 = arith.constant 128 : i32
      %39 = arith.muli %arg0, %c128_i32_35 : i32
      %40 = tpu.assume_multiple %39, 128 : i32
      %41 = arith.index_cast %40 : i32 to index
      %c0_36 = arith.constant 0 : index
      %42 = vector.load %arg2[%41, %c0_36] : memref<256x128xf32, #tpu.memory_space<vmem>>, vector<128x128xf32>
      %c0_37 = arith.constant 0 : index
      %c0_38 = arith.constant 0 : index
      %43 = vector.load %arg16[%c0_37, %c0_38] : memref<128x256xf32, #tpu.memory_space<vmem>>, vector<128x256xf32>
      %cst_39 = arith.constant 1.000000e+00 : f32
      %44 = vector.broadcast %cst_39 : f32 to vector<128x256xf32>
      %45 = arith.minimumf %43, %44 : vector<128x256xf32>
      %c0_40 = arith.constant 0 : index
      %c0_41 = arith.constant 0 : index
      %46 = vector.load %arg17[%c0_40, %c0_41] : memref<128x256xf32, #tpu.memory_space<vmem>>, vector<128x256xf32>
      %cst_42 = arith.constant 1.000000e+00 : f32
      %47 = vector.broadcast %cst_42 : f32 to vector<128x256xf32>
      %48 = arith.minimumf %46, %47 : vector<128x256xf32>
      %c0_43 = arith.constant 0 : index
      %c0_44 = arith.constant 0 : index
      %49 = vector.load %arg15[%c0_43, %c0_44] : memref<128x768xf32, #tpu.memory_space<vmem>>, vector<128x128xf32>
      tpu.vector_store %arg15[%c0_43, %c0_44], %42 {strides = array<i32>} : memref<128x768xf32, #tpu.memory_space<vmem>>, vector<128x128xf32>,
      %cst_45 = arith.constant dense<0.000000e+00> : vector<128x128xf32>
      %50 = tpu.matmul %45, %38, %cst_45 {dimension_numbers = #tpu.dot_dimension_numbers<[1], [0], [0], [1], [0, 0, 1, 1], [], []>} : vector<128x256xf32>, vector<256x128xf32>, vector<128x128xf32> -> vector<128x128xf32>
      %c0_46 = arith.constant 0 : index
      %c512 = arith.constant 512 : index
      %51 = vector.load %arg15[%c0_46, %c512] : memref<128x768xf32, #tpu.memory_space<vmem>>, vector<128x128xf32>
      tpu.vector_store %arg15[%c0_46, %c512], %50 {strides = array<i32>} : memref<128x768xf32, #tpu.memory_space<vmem>>, vector<128x128xf32>,
      %cst_47 = arith.constant dense<0.000000e+00> : vector<128x128xf32>
      %52 = tpu.matmul %48, %38, %cst_47 {dimension_numbers = #tpu.dot_dimension_numbers<[1], [0], [0], [1], [0, 0, 1, 1], [], []>} : vector<128x256xf32>, vector<256x128xf32>, vector<128x128xf32> -> vector<128x128xf32>
      %c0_48 = arith.constant 0 : index
      %c640 = arith.constant 640 : index
      %53 = vector.load %arg15[%c0_48, %c640] : memref<128x768xf32, #tpu.memory_space<vmem>>, vector<128x128xf32>
      tpu.vector_store %arg15[%c0_48, %c640], %52 {strides = array<i32>} : memref<128x768xf32, #tpu.memory_space<vmem>>, vector<128x128xf32>,
      %c0_49 = arith.constant 0 : index
      %c0_50 = arith.constant 0 : index
      %54 = vector.load %arg12[%c0_49, %c0_50] : memref<1x128xf32, #tpu.memory_space<vmem>>, vector<1x128xf32>
      %c0_51 = arith.constant 0 : index
      %c0_52 = arith.constant 0 : index
      %55 = vector.load %arg13[%c0_51, %c0_52] : memref<1x128xf32, #tpu.memory_space<vmem>>, vector<1x128xf32>
      %56 = tpu.iota {dimensions = array<i32: 1>} : vector<1x128xi32>
      %c32_i32 = arith.constant 32 : i32
      %57 = vector.broadcast %c32_i32 : i32 to vector<1x128xi32>
      %58 = arith.cmpi slt, %56, %57 : vector<1x128xi32>
      %59 = arith.extui %58 : vector<1x128xi1> to vector<1x128xi32>
      %60 = arith.sitofp %59 : vector<1x128xi32> to vector<1x128xf32>
      %c0_53 = arith.constant 0 : index
      %c0_54 = arith.constant 0 : index
      %61 = vector.load %arg15[%c0_53, %c0_54] : memref<128x768xf32, #tpu.memory_space<vmem>>, vector<128x768xf32>
      %c0_55 = arith.constant 0 : index
      %c0_56 = arith.constant 0 : index
      %62 = vector.load %arg8[%c0_55, %c0_56] : memref<768x128xf32, #tpu.memory_space<vmem>>, vector<768x128xf32>
      %cst_57 = arith.constant dense<0.000000e+00> : vector<128x128xf32>
      %63 = tpu.matmul %61, %62, %cst_57 {dimension_numbers = #tpu.dot_dimension_numbers<[1], [0], [0], [1], [0, 0, 1, 1], [], []>} : vector<128x768xf32>, vector<768x128xf32>, vector<128x128xf32> -> vector<128x128xf32>
      %c0_58 = arith.constant 0 : index
      %c0_59 = arith.constant 0 : index
      %64 = vector.load %arg9[%c0_58, %c0_59] : memref<1x128xf32, #tpu.memory_space<vmem>>, vector<1x128xf32>
      %65 = vector.broadcast %64 : vector<1x128xf32> to vector<128x128xf32>
      %66 = arith.addf %63, %65 : vector<128x128xf32>
      %cst_60 = arith.constant dense<0.000000e+00> : vector<128xf32>
      %67 = vector.multi_reduction <add>, %66, %cst_60 [1] : vector<128x128xf32> to vector<128xf32>
      %68 = vector.shape_cast %67 : vector<128xf32> to vector<128x1xf32>
      %cst_61 = arith.constant 3.125000e-02 : f32
      %69 = vector.broadcast %cst_61 : f32 to vector<128x1xf32>
      %70 = arith.mulf %68, %69 : vector<128x1xf32>
      %71 = vector.broadcast %70 : vector<128x1xf32> to vector<128x128xf32>
      %72 = arith.subf %66, %71 : vector<128x128xf32>
      %73 = vector.broadcast %60 : vector<1x128xf32> to vector<128x128xf32>
      %74 = arith.mulf %72, %73 : vector<128x128xf32>
      %75 = arith.mulf %74, %74 : vector<128x128xf32>
      %cst_62 = arith.constant dense<0.000000e+00> : vector<128xf32>
      %76 = vector.multi_reduction <add>, %75, %cst_62 [1] : vector<128x128xf32> to vector<128xf32>
      %77 = vector.shape_cast %76 : vector<128xf32> to vector<128x1xf32>
      %cst_63 = arith.constant 3.125000e-02 : f32
      %78 = vector.broadcast %cst_63 : f32 to vector<128x1xf32>
      %79 = arith.mulf %77, %78 : vector<128x1xf32>
      %cst_64 = arith.constant 9.99999974E-6 : f32
      %80 = vector.broadcast %cst_64 : f32 to vector<128x1xf32>
      %81 = arith.addf %79, %80 : vector<128x1xf32>
      %82 = math.rsqrt %81 : vector<128x1xf32>
      %83 = vector.broadcast %82 : vector<128x1xf32> to vector<128x128xf32>
      %84 = arith.mulf %74, %83 : vector<128x128xf32>
      %85 = vector.broadcast %54 : vector<1x128xf32> to vector<128x128xf32>
      %86 = arith.mulf %84, %85 : vector<128x128xf32>
      %87 = vector.broadcast %55 : vector<1x128xf32> to vector<128x128xf32>
      %88 = arith.addf %86, %87 : vector<128x128xf32>
      %cst_65 = arith.constant 0.000000e+00 : f32
      %89 = vector.broadcast %cst_65 : f32 to vector<128x128xf32>
      %90 = arith.maximumf %88, %89 : vector<128x128xf32>
      %c0_66 = arith.constant 0 : index
      %c0_67 = arith.constant 0 : index
      %91 = vector.load %arg10[%c0_66, %c0_67] : memref<128x128xf32, #tpu.memory_space<vmem>>, vector<128x128xf32>
      %cst_68 = arith.constant dense<0.000000e+00> : vector<128x128xf32>
      %92 = tpu.matmul %90, %91, %cst_68 {dimension_numbers = #tpu.dot_dimension_numbers<[1], [0], [0], [1], [0, 0, 1, 1], [], []>} : vector<128x128xf32>, vector<128x128xf32>, vector<128x128xf32> -> vector<128x128xf32>
      %c0_69 = arith.constant 0 : index
      %c0_70 = arith.constant 0 : index
      %93 = vector.load %arg11[%c0_69, %c0_70] : memref<1x128xf32, #tpu.memory_space<vmem>>, vector<1x128xf32>
      %94 = vector.broadcast %93 : vector<1x128xf32> to vector<128x128xf32>
      %95 = arith.addf %92, %94 : vector<128x128xf32>
      %cst_71 = arith.constant dense<0.000000e+00> : vector<128xf32>
      %96 = vector.multi_reduction <add>, %95, %cst_71 [1] : vector<128x128xf32> to vector<128xf32>
      %97 = vector.shape_cast %96 : vector<128xf32> to vector<128x1xf32>
      %cst_72 = arith.constant 3.125000e-02 : f32
      %98 = vector.broadcast %cst_72 : f32 to vector<128x1xf32>
      %99 = arith.mulf %97, %98 : vector<128x1xf32>
      %100 = vector.broadcast %99 : vector<128x1xf32> to vector<128x128xf32>
      %101 = arith.subf %95, %100 : vector<128x128xf32>
      %102 = vector.broadcast %60 : vector<1x128xf32> to vector<128x128xf32>
      %103 = arith.mulf %101, %102 : vector<128x128xf32>
      %104 = arith.mulf %103, %103 : vector<128x128xf32>
      %cst_73 = arith.constant dense<0.000000e+00> : vector<128xf32>
      %105 = vector.multi_reduction <add>, %104, %cst_73 [1] : vector<128x128xf32> to vector<128xf32>
      %106 = vector.shape_cast %105 : vector<128xf32> to vector<128x1xf32>
      %cst_74 = arith.constant 3.125000e-02 : f32
      %107 = vector.broadcast %cst_74 : f32 to vector<128x1xf32>
      %108 = arith.mulf %106, %107 : vector<128x1xf32>
      %cst_75 = arith.constant 9.99999974E-6 : f32
      %109 = vector.broadcast %cst_75 : f32 to vector<128x1xf32>
      %110 = arith.addf %108, %109 : vector<128x1xf32>
      %111 = math.rsqrt %110 : vector<128x1xf32>
      %112 = vector.broadcast %111 : vector<128x1xf32> to vector<128x128xf32>
      %113 = arith.mulf %103, %112 : vector<128x128xf32>
      %114 = vector.broadcast %54 : vector<1x128xf32> to vector<128x128xf32>
      %115 = arith.mulf %113, %114 : vector<128x128xf32>
      %116 = vector.broadcast %55 : vector<1x128xf32> to vector<128x128xf32>
      %117 = arith.addf %115, %116 : vector<128x128xf32>
      %cst_76 = arith.constant 0.000000e+00 : f32
      %118 = vector.broadcast %cst_76 : f32 to vector<128x128xf32>
      %119 = arith.maximumf %117, %118 : vector<128x128xf32>
      %120 = arith.addf %119, %42 : vector<128x128xf32>
      %cst_77 = arith.constant 0.000000e+00 : f32
      %121 = vector.broadcast %cst_77 : f32 to vector<128x128xf32>
      %122 = arith.maximumf %120, %121 : vector<128x128xf32>
      %c0_78 = arith.constant 0 : index
      %c0_79 = arith.constant 0 : index
      %123 = vector.load %arg14[%c0_78, %c0_79] : memref<128x128xf32, #tpu.memory_space<vmem>>, vector<128x128xf32>
      tpu.vector_store %arg14[%c0_78, %c0_79], %122 {strides = array<i32>} : memref<128x128xf32, #tpu.memory_space<vmem>>, vector<128x128xf32>,
    } else {
    }
    return
  }
  func.func @transform_0(%arg0: i32, %arg1: i32) -> (i32, i32) {
    %c0_i32 = arith.constant 0 : i32
    %c0_i32_0 = arith.constant 0 : i32
    %c0_i32_1 = arith.constant 0 : i32
    return %c0_i32, %c0_i32_0 : i32, i32
  }
  func.func @transform_1(%arg0: i32, %arg1: i32) -> (i32, i32) {
    %c0_i32 = arith.constant 0 : i32
    return %arg0, %arg1 : i32, i32
  }
  func.func @transform_2(%arg0: i32, %arg1: i32) -> (i32, i32) {
    %c0_i32 = arith.constant 0 : i32
    return %arg0, %arg1 : i32, i32
  }
  func.func @transform_3(%arg0: i32, %arg1: i32) -> (i32, i32) {
    %c0_i32 = arith.constant 0 : i32
    return %arg0, %arg1 : i32, i32
  }
  func.func @transform_4(%arg0: i32, %arg1: i32) -> (i32, i32) {
    %c0_i32 = arith.constant 0 : i32
    %c0_i32_0 = arith.constant 0 : i32
    return %arg1, %c0_i32 : i32, i32
  }
  func.func @transform_5(%arg0: i32, %arg1: i32) -> (i32, i32) {
    %c0_i32 = arith.constant 0 : i32
    %c0_i32_0 = arith.constant 0 : i32
    return %arg1, %c0_i32 : i32, i32
  }
  func.func @transform_6(%arg0: i32, %arg1: i32) -> (i32, i32) {
    %c0_i32 = arith.constant 0 : i32
    %c0_i32_0 = arith.constant 0 : i32
    %c0_i32_1 = arith.constant 0 : i32
    return %c0_i32, %c0_i32_0 : i32, i32
  }
  func.func @transform_7(%arg0: i32, %arg1: i32) -> (i32, i32) {
    %c0_i32 = arith.constant 0 : i32
    %c0_i32_0 = arith.constant 0 : i32
    %c0_i32_1 = arith.constant 0 : i32
    return %c0_i32, %c0_i32_0 : i32, i32
  }
  func.func @transform_8(%arg0: i32, %arg1: i32) -> (i32, i32) {
    %c0_i32 = arith.constant 0 : i32
    %c0_i32_0 = arith.constant 0 : i32
    %c0_i32_1 = arith.constant 0 : i32
    return %c0_i32, %c0_i32_0 : i32, i32
  }
  func.func @transform_9(%arg0: i32, %arg1: i32) -> (i32, i32) {
    %c0_i32 = arith.constant 0 : i32
    %c0_i32_0 = arith.constant 0 : i32
    %c0_i32_1 = arith.constant 0 : i32
    return %c0_i32, %c0_i32_0 : i32, i32
  }
  func.func @transform_10(%arg0: i32, %arg1: i32) -> (i32, i32) {
    %c0_i32 = arith.constant 0 : i32
    %c0_i32_0 = arith.constant 0 : i32
    %c0_i32_1 = arith.constant 0 : i32
    return %c0_i32, %c0_i32_0 : i32, i32
  }
  func.func @transform_11(%arg0: i32, %arg1: i32) -> (i32, i32) {
    %c0_i32 = arith.constant 0 : i32
    %c0_i32_0 = arith.constant 0 : i32
    %c0_i32_1 = arith.constant 0 : i32
    return %c0_i32, %c0_i32_0 : i32, i32
  }
  func.func @transform_12(%arg0: i32, %arg1: i32) -> (i32, i32) {
    %c0_i32 = arith.constant 0 : i32
    %c0_i32_0 = arith.constant 0 : i32
    return %arg0, %c0_i32 : i32, i32
  }
}

</mosaic_0001>

<llo_original>
// kernel: gcn_block.1
$region0: #{gcn_block.1}
  #allocation0 [shape = 'u32[]', space=smem, size = 0x4, offset = 0x4, fixed_abs, tag = 'smem constant byte address 0x4 - core index']
  #allocation1 [shape = 'u32[72,128]{1,0:T(1,128)}', space=vmem, size = 0x9000, scoped, tag = 'internal scratch']
  #allocation2 [shape = 'f32[128,768]{1,0:T(8,128)}', space=vmem, size = 0x60000, scoped, tag = 'scratch operand']
  #allocation3 [shape = 'f32[128,256]{1,0:T(8,128)}', space=vmem, size = 0x20000, scoped, tag = 'scratch operand']
  #allocation4 [shape = 'f32[128,256]{1,0:T(8,128)}', space=vmem, size = 0x20000, scoped, tag = 'scratch operand']
  %s0 = inlined_call_operand.vmem [shape: f32[256,128], index: 0, kind: input, shape index: {}]
  %s1 = inlined_call_operand.vmem [shape: bf16[256,256], index: 1, kind: input, shape index: {}]
  %s2 = inlined_call_operand.vmem [shape: bf16[256,256], index: 2, kind: input, shape index: {}, may-alias: {2,4}]
  %s3 = inlined_call_operand.vmem [shape: bf16[256,256], index: 3, kind: input, shape index: {}, may-alias: {3,5}]
  %s4 = inlined_call_operand.vmem [shape: bf16[256,256], index: 4, kind: input, shape index: {}, may-alias: {2,4}]
  %s5 = inlined_call_operand.vmem [shape: bf16[256,256], index: 5, kind: input, shape index: {}, may-alias: {3,5}]
  %s6 = inlined_call_operand.vmem [shape: f32[768,128], index: 6, kind: input, shape index: {}]
  %s7 = inlined_call_operand.vmem [shape: f32[1,128], index: 7, kind: input, shape index: {}]
  %s8 = inlined_call_operand.vmem [shape: f32[128,128], index: 8, kind: input, shape index: {}]
  %s9 = inlined_call_operand.vmem [shape: f32[1,128], index: 9, kind: input, shape index: {}]
  %s10 = inlined_call_operand.vmem [shape: f32[1,128], index: 10, kind: input, shape index: {}]
  %s11 = inlined_call_operand.vmem [shape: f32[1,128], index: 11, kind: input, shape index: {}]
  %s12 = inlined_call_operand.vmem [shape: f32[256,128], index: 12, kind: output, shape index: {}]
  %s13 = sld [smem:[#allocation0]]
  $region212: #{gcn_block.1} parent=0
    _
  %s15 = ssub.s32 1, %s13
  %s16 = scalar_select 0, %s15, %s13
  $region1: #{gcn_block.1} parent=0
    #allocation5 [shape = 'u8[65536]{0}', space=vmem, size = 0x10000, scoped, tag = 'input window, operand 1']
    #allocation6 [shape = 'u8[65536]{0}', space=vmem, size = 0x10000, scoped, tag = 'input window, operand 2']
    #allocation7 [shape = 'u8[65536]{0}', space=vmem, size = 0x10000, scoped, tag = 'input window, operand 3']
    loop: start=0, step=1, limit=6
    $region2: #{gcn_block.1} parent=1 // loop_pre_header
      _
    $region3: #{gcn_block.1} parent=1 // loop_header
      %s18 = sphi 0, %s22
      %p19 = scmp.ge.s32.totalorder %s18, 6
      %s25 = sphi 0, %s37
      %s26 = sphi 0, %s33
      %s27 = sphi 0, %s25
      %s28 = sphi 0, %s26
      %s29 = sphi 0, %s27
      %s30 = sphi 0, %s28
      %s38 = sphi 0, %s38
      %s40 = sphi 0, %s38
      %s41 = sphi 0, %s40
      %s55 = sphi 0, %s41
      %s63 = sphi 0, %s65
      %s66 = sphi 0, %s63
      %s67 = sphi 0, %s66
      %s83 = sphi 0, %s67
      %s91 = sphi 0, %s93
      %s94 = sphi 0, %s91
      %s95 = sphi 0, %s94
      %s111 = sphi 0, %s95
      %s119 = sphi 0, %s121
      %s122 = sphi 0, %s119
      %s123 = sphi 0, %s122
      %s139 = sphi 0, %s123
      %s145 = sphi 0, %s147
      %s148 = sphi 0, %s145
      %s149 = sphi 0, %s148
      %s165 = sphi 0, %s149
      %s171 = sphi 0, %s173
      %s174 = sphi 0, %s171
      %s175 = sphi 0, %s174
      %s191 = sphi 0, %s175
      %s195 = sphi 0, %s195
      %s197 = sphi 0, %s195
      %s198 = sphi 0, %s197
      %s212 = sphi 0, %s198
      %s216 = sphi 0, %s216
      %s218 = sphi 0, %s216
      %s219 = sphi 0, %s218
      %s233 = sphi 0, %s219
      %s237 = sphi 0, %s237
      %s239 = sphi 0, %s237
      %s240 = sphi 0, %s239
      %s254 = sphi 0, %s240
      %s258 = sphi 0, %s258
      %s260 = sphi 0, %s258
      %s261 = sphi 0, %s260
      %s275 = sphi 0, %s261
      %s279 = sphi 0, %s279
      %s281 = sphi 0, %s279
      %s282 = sphi 0, %s281
      %s296 = sphi 0, %s282
      %s300 = sphi 0, %s300
      %s302 = sphi 0, %s300
      %s303 = sphi 0, %s302
      %s317 = sphi 0, %s303
      %s323 = sphi 0, %s325
      %s326 = sphi 0, %s323
      %s327 = sphi 0, %s326
      %s343 = sphi 0, %s327
    $region4: #{gcn_block.1} parent=1 // loop_header_branch
      %21 = sbr.rel (%p19) target = $region8
    $region5: #{gcn_block.1} parent=1 // loop_body
      %s23 = ssub.s32 %s18, 1
      %s24 = ssub.s32 %s18, 2
      %s31 = sadd.s32 1, %s26
      %p32 = scmp.ge.s32.totalorder %s31, 2
      %s33 = scalar_select %p32, 0, %s31
      %s34 = sadd.s32 1, %s25
      %s35 = scalar_select %p32, %s34, %s25
      %p36 = scmp.ge.s32.totalorder %s35, 2
      %s37 = scalar_select %p36, 0, %s35
      %s39 = sadd.s32 %s38, 1
      %p42 = scmp.eq.s32.totalorder %s18, 3
      %p43 = scmp.ne.s32.totalorder %s38, %s40
      %p44 = scmp.eq.s32.totalorder %s18, 0
      %p45 = por %p43, %p44
      %p46 = scmp.ne.s32.totalorder %s38, %s40
      %p47 = scmp.eq.s32.totalorder %s23, 3
      %p48 = por %p46, %p47
      %p49 = scmp.ne.s32.totalorder %s40, %s41
      %p50 = scmp.eq.s32.totalorder %s23, 0
      %p51 = por %p49, %p50
      %p52 = scmp.ne.s32.totalorder %s40, %s41
      %p53 = scmp.eq.s32.totalorder %s24, 3
      %p54 = por %p52, %p53
      %p56 = scmp.ne.s32.totalorder %s41, %s55
      %p57 = scmp.eq.s32.totalorder %s24, 0
      %p58 = por %p56, %p57
      %s59 = ssub.s32 %s25, %s37
      %s60 = ssub.s32 %s26, %s33
      %s61 = sor.u32 %s59, %s60
      %p62 = scmp.eq.s32.totalorder %s61, 0
      %s64 = sadd.s32 %s63, 1
      %s65 = scalar_select %p62, %s63, %s64
      %p68 = pneg %p62
      %p69 = scmp.eq.s32.totalorder %s18, 3
      %p70 = por %p68, %p69
      %p71 = scmp.ne.s32.totalorder %s63, %s66
      %p72 = scmp.eq.s32.totalorder %s18, 0
      %p73 = por %p71, %p72
      %p74 = scmp.ne.s32.totalorder %s63, %s66
      %p75 = scmp.eq.s32.totalorder %s23, 3
      %p76 = por %p74, %p75
      %p77 = scmp.ne.s32.totalorder %s66, %s67
      %p78 = scmp.eq.s32.totalorder %s23, 0
      %p79 = por %p77, %p78
      %p80 = scmp.ne.s32.totalorder %s66, %s67
      %p81 = scmp.eq.s32.totalorder %s24, 3
      %p82 = por %p80, %p81
      %p84 = scmp.ne.s32.totalorder %s67, %s83
      %p85 = scmp.eq.s32.totalorder %s24, 0
      %p86 = por %p84, %p85
      %s87 = ssub.s32 %s25, %s37
      %s88 = ssub.s32 %s26, %s33
      %s89 = sor.u32 %s87, %s88
      %p90 = scmp.eq.s32.totalorder %s89, 0
      %s92 = sadd.s32 %s91, 1
      %s93 = scalar_select %p90, %s91, %s92
      %p96 = pneg %p90
      %p97 = scmp.eq.s32.totalorder %s18, 3
      %p98 = por %p96, %p97
      %p99 = scmp.ne.s32.totalorder %s91, %s94
      %p100 = scmp.eq.s32.totalorder %s18, 0
      %p101 = por %p99, %p100
      %p102 = scmp.ne.s32.totalorder %s91, %s94
      %p103 = scmp.eq.s32.totalorder %s23, 3
      %p104 = por %p102, %p103
      %p105 = scmp.ne.s32.totalorder %s94, %s95
      %p106 = scmp.eq.s32.totalorder %s23, 0
      %p107 = por %p105, %p106
      %p108 = scmp.ne.s32.totalorder %s94, %s95
      %p109 = scmp.eq.s32.totalorder %s24, 3
      %p110 = por %p108, %p109
      %p112 = scmp.ne.s32.totalorder %s95, %s111
      %p113 = scmp.eq.s32.totalorder %s24, 0
      %p114 = por %p112, %p113
      %s115 = ssub.s32 %s25, %s37
      %s116 = ssub.s32 %s26, %s33
      %s117 = sor.u32 %s115, %s116
      %p118 = scmp.eq.s32.totalorder %s117, 0
      %s120 = sadd.s32 %s119, 1
      %s121 = scalar_select %p118, %s119, %s120
      %p124 = pneg %p118
      %p125 = scmp.eq.s32.totalorder %s18, 3
      %p126 = por %p124, %p125
      %p127 = scmp.ne.s32.totalorder %s119, %s122
      %p128 = scmp.eq.s32.totalorder %s18, 0
      %p129 = por %p127, %p128
      %p130 = scmp.ne.s32.totalorder %s119, %s122
      %p131 = scmp.eq.s32.totalorder %s23, 3
      %p132 = por %p130, %p131
      %p133 = scmp.ne.s32.totalorder %s122, %s123
      %p134 = scmp.eq.s32.totalorder %s23, 0
      %p135 = por %p133, %p134
      %p136 = scmp.ne.s32.totalorder %s122, %s123
      %p137 = scmp.eq.s32.totalorder %s24, 3
      %p138 = por %p136, %p137
      %p140 = scmp.ne.s32.totalorder %s123, %s139
      %p141 = scmp.eq.s32.totalorder %s24, 0
      %p142 = por %p140, %p141
      %s143 = ssub.s32 %s26, %s33
      %p144 = scmp.eq.s32.totalorder %s143, 0
      %s146 = sadd.s32 %s145, 1
      %s147 = scalar_select %p144, %s145, %s146
      %p150 = pneg %p144
      %p151 = scmp.eq.s32.totalorder %s18, 3
      %p152 = por %p150, %p151
      %p153 = scmp.ne.s32.totalorder %s145, %s148
      %p154 = scmp.eq.s32.totalorder %s18, 0
      %p155 = por %p153, %p154
      %p156 = scmp.ne.s32.totalorder %s145, %s148
      %p157 = scmp.eq.s32.totalorder %s23, 3
      %p158 = por %p156, %p157
      %p159 = scmp.ne.s32.totalorder %s148, %s149
      %p160 = scmp.eq.s32.totalorder %s23, 0
      %p161 = por %p159, %p160
      %p162 = scmp.ne.s32.totalorder %s148, %s149
      %p163 = scmp.eq.s32.totalorder %s24, 3
      %p164 = por %p162, %p163
      %p166 = scmp.ne.s32.totalorder %s149, %s165
      %p167 = scmp.eq.s32.totalorder %s24, 0
      %p168 = por %p166, %p167
      %s169 = ssub.s32 %s26, %s33
      %p170 = scmp.eq.s32.totalorder %s169, 0
      %s172 = sadd.s32 %s171, 1
      %s173 = scalar_select %p170, %s171, %s172
      %p176 = pneg %p170
      %p177 = scmp.eq.s32.totalorder %s18, 3
      %p178 = por %p176, %p177
      %p179 = scmp.ne.s32.totalorder %s171, %s174
      %p180 = scmp.eq.s32.totalorder %s18, 0
      %p181 = por %p179, %p180
      %p182 = scmp.ne.s32.totalorder %s171, %s174
      %p183 = scmp.eq.s32.totalorder %s23, 3
      %p184 = por %p182, %p183
      %p185 = scmp.ne.s32.totalorder %s174, %s175
      %p186 = scmp.eq.s32.totalorder %s23, 0
      %p187 = por %p185, %p186
      %p188 = scmp.ne.s32.totalorder %s174, %s175
      %p189 = scmp.eq.s32.totalorder %s24, 3
      %p190 = por %p188, %p189
      %p192 = scmp.ne.s32.totalorder %s175, %s191
      %p193 = scmp.eq.s32.totalorder %s24, 0
      %p194 = por %p192, %p193
      %s196 = sadd.s32 %s195, 1
      %p199 = scmp.eq.s32.totalorder %s18, 3
      %p200 = scmp.ne.s32.totalorder %s195, %s197
      %p201 = scmp.eq.s32.totalorder %s18, 0
      %p202 = por %p200, %p201
      %p203 = scmp.ne.s32.totalorder %s195, %s197
      %p204 = scmp.eq.s32.totalorder %s23, 3
      %p205 = por %p203, %p204
      %p206 = scmp.ne.s32.totalorder %s197, %s198
      %p207 = scmp.eq.s32.totalorder %s23, 0
      %p208 = por %p206, %p207
      %p209 = scmp.ne.s32.totalorder %s197, %s198
      %p210 = scmp.eq.s32.totalorder %s24, 3
      %p211 = por %p209, %p210
      %p213 = scmp.ne.s32.totalorder %s198, %s212
      %p214 = scmp.eq.s32.totalorder %s24, 0
      %p215 = por %p213, %p214
      %s217 = sadd.s32 %s216, 1
      %p220 = scmp.eq.s32.totalorder %s18, 3
      %p221 = scmp.ne.s32.totalorder %s216, %s218
      %p222 = scmp.eq.s32.totalorder %s18, 0
      %p223 = por %p221, %p222
      %p224 = scmp.ne.s32.totalorder %s216, %s218
      %p225 = scmp.eq.s32.totalorder %s23, 3
      %p226 = por %p224, %p225
      %p227 = scmp.ne.s32.totalorder %s218, %s219
      %p228 = scmp.eq.s32.totalorder %s23, 0
      %p229 = por %p227, %p228
      %p230 = scmp.ne.s32.totalorder %s218, %s219
      %p231 = scmp.eq.s32.totalorder %s24, 3
      %p232 = por %p230, %p231
      %p234 = scmp.ne.s32.totalorder %s219, %s233
      %p235 = scmp.eq.s32.totalorder %s24, 0
      %p236 = por %p234, %p235
      %s238 = sadd.s32 %s237, 1
      %p241 = scmp.eq.s32.totalorder %s18, 3
      %p242 = scmp.ne.s32.totalorder %s237, %s239
      %p243 = scmp.eq.s32.totalorder %s18, 0
      %p244 = por %p242, %p243
      %p245 = scmp.ne.s32.totalorder %s237, %s239
      %p246 = scmp.eq.s32.totalorder %s23, 3
      %p247 = por %p245, %p246
      %p248 = scmp.ne.s32.totalorder %s239, %s240
      %p249 = scmp.eq.s32.totalorder %s23, 0
      %p250 = por %p248, %p249
      %p251 = scmp.ne.s32.totalorder %s239, %s240
      %p252 = scmp.eq.s32.totalorder %s24, 3
      %p253 = por %p251, %p252
      %p255 = scmp.ne.s32.totalorder %s240, %s254
      %p256 = scmp.eq.s32.totalorder %s24, 0
      %p257 = por %p255, %p256
      %s259 = sadd.s32 %s258, 1
      %p262 = scmp.eq.s32.totalorder %s18, 3
      %p263 = scmp.ne.s32.totalorder %s258, %s260
      %p264 = scmp.eq.s32.totalorder %s18, 0
      %p265 = por %p263, %p264
      %p266 = scmp.ne.s32.totalorder %s258, %s260
      %p267 = scmp.eq.s32.totalorder %s23, 3
      %p268 = por %p266, %p267
      %p269 = scmp.ne.s32.totalorder %s260, %s261
      %p270 = scmp.eq.s32.totalorder %s23, 0
      %p271 = por %p269, %p270
      %p272 = scmp.ne.s32.totalorder %s260, %s261
      %p273 = scmp.eq.s32.totalorder %s24, 3
      %p274 = por %p272, %p273
      %p276 = scmp.ne.s32.totalorder %s261, %s275
      %p277 = scmp.eq.s32.totalorder %s24, 0
      %p278 = por %p276, %p277
      %s280 = sadd.s32 %s279, 1
      %p283 = scmp.eq.s32.totalorder %s18, 3
      %p284 = scmp.ne.s32.totalorder %s279, %s281
      %p285 = scmp.eq.s32.totalorder %s18, 0
      %p286 = por %p284, %p285
      %p287 = scmp.ne.s32.totalorder %s279, %s281
      %p288 = scmp.eq.s32.totalorder %s23, 3
      %p289 = por %p287, %p288
      %p290 = scmp.ne.s32.totalorder %s281, %s282
      %p291 = scmp.eq.s32.totalorder %s23, 0
      %p292 = por %p290, %p291
      %p293 = scmp.ne.s32.totalorder %s281, %s282
      %p294 = scmp.eq.s32.totalorder %s24, 3
      %p295 = por %p293, %p294
      %p297 = scmp.ne.s32.totalorder %s282, %s296
      %p298 = scmp.eq.s32.totalorder %s24, 0
      %p299 = por %p297, %p298
      %s301 = sadd.s32 %s300, 1
      %p304 = scmp.eq.s32.totalorder %s18, 3
      %p305 = scmp.ne.s32.totalorder %s300, %s302
      %p306 = scmp.eq.s32.totalorder %s18, 0
      %p307 = por %p305, %p306
      %p308 = scmp.ne.s32.totalorder %s300, %s302
      %p309 = scmp.eq.s32.totalorder %s23, 3
      %p310 = por %p308, %p309
      %p311 = scmp.ne.s32.totalorder %s302, %s303
      %p312 = scmp.eq.s32.totalorder %s23, 0
      %p313 = por %p311, %p312
      %p314 = scmp.ne.s32.totalorder %s302, %s303
      %p315 = scmp.eq.s32.totalorder %s24, 3
      %p316 = por %p314, %p315
      %p318 = scmp.ne.s32.totalorder %s303, %s317
      %p319 = scmp.eq.s32.totalorder %s24, 0
      %p320 = por %p318, %p319
      %s321 = ssub.s32 %s25, %s37
      %p322 = scmp.eq.s32.totalorder %s321, 0
      %s324 = sadd.s32 %s323, 1
      %s325 = scalar_select %p322, %s323, %s324
      %p328 = pneg %p322
      %p329 = scmp.eq.s32.totalorder %s18, 3
      %p330 = por %p328, %p329
      %p331 = scmp.ne.s32.totalorder %s323, %s326
      %p332 = scmp.eq.s32.totalorder %s18, 0
      %p333 = por %p331, %p332
      %p334 = scmp.ne.s32.totalorder %s323, %s326
      %p335 = scmp.eq.s32.totalorder %s23, 3
      %p336 = por %p334, %p335
      %p337 = scmp.ne.s32.totalorder %s326, %s327
      %p338 = scmp.eq.s32.totalorder %s23, 0
      %p339 = por %p337, %p338
      %p340 = scmp.ne.s32.totalorder %s326, %s327
      %p341 = scmp.eq.s32.totalorder %s24, 3
      %p342 = por %p340, %p341
      %p344 = scmp.ne.s32.totalorder %s327, %s343
      %p345 = scmp.eq.s32.totalorder %s24, 0
      %p346 = por %p344, %p345
      %p347 = scmp.le.s32.totalorder 1, %s18
      %p348 = scmp.lt.s32.totalorder %s18, 5
      %p349 = pnand %p347, %p348
      %p350 = pneg %p349
      // Predicated region
      $region9: #{gcn_block.1} parent=5 // pred_check
        _
      $region10: #{gcn_block.1} parent=5 // pred_check_branch
        %352 = sbr.rel (%p349) target = $region12
      $region11: #{gcn_block.1} parent=5 // pred_region
        %s353 = ssub.s32 %s18, 1
        // Predicated region
        $region13: #{gcn_block.1} parent=11 // pred_check
          %p354 = pneg %p51
        $region14: #{gcn_block.1} parent=11 // pred_check_branch
          %356 = sbr.rel (%p354) target = $region16
        $region15: #{gcn_block.1} parent=11 // pred_region
          _
        $region16: #{gcn_block.1} parent=11 // pred_fallthru
          _
        // Predicated region
        $region17: #{gcn_block.1} parent=11 // pred_check
          %p357 = pneg %p208
        $region18: #{gcn_block.1} parent=11 // pred_check_branch
          %359 = sbr.rel (%p357) target = $region20
        $region19: #{gcn_block.1} parent=11 // pred_region
          _
        $region20: #{gcn_block.1} parent=11 // pred_fallthru
          _
        // Predicated region
        $region21: #{gcn_block.1} parent=11 // pred_check
          %p360 = pneg %p229
        $region22: #{gcn_block.1} parent=11 // pred_check_branch
          %362 = sbr.rel (%p360) target = $region24
        $region23: #{gcn_block.1} parent=11 // pred_region
          _
        $region24: #{gcn_block.1} parent=11 // pred_fallthru
          _
        // Predicated region
        $region25: #{gcn_block.1} parent=11 // pred_check
          %p363 = pneg %p250
        $region26: #{gcn_block.1} parent=11 // pred_check_branch
          %365 = sbr.rel (%p363) target = $region28
        $region27: #{gcn_block.1} parent=11 // pred_region
          _
        $region28: #{gcn_block.1} parent=11 // pred_fallthru
          _
        // Predicated region
        $region29: #{gcn_block.1} parent=11 // pred_check
          %p366 = pneg %p271
        $region30: #{gcn_block.1} parent=11 // pred_check_branch
          %368 = sbr.rel (%p366) target = $region32
        $region31: #{gcn_block.1} parent=11 // pred_region
          _
        $region32: #{gcn_block.1} parent=11 // pred_fallthru
          _
        // Predicated region
        $region33: #{gcn_block.1} parent=11 // pred_check
          %p369 = pneg %p292
        $region34: #{gcn_block.1} parent=11 // pred_check_branch
          %371 = sbr.rel (%p369) target = $region36
        $region35: #{gcn_block.1} parent=11 // pred_region
          _
        $region36: #{gcn_block.1} parent=11 // pred_fallthru
          _
        // Predicated region
        $region37: #{gcn_block.1} parent=11 // pred_check
          %p372 = pneg %p313
        $region38: #{gcn_block.1} parent=11 // pred_check_branch
          %374 = sbr.rel (%p372) target = $region40
        $region39: #{gcn_block.1} parent=11 // pred_region
          _
        $region40: #{gcn_block.1} parent=11 // pred_fallthru
          _
      $region12: #{gcn_block.1} parent=5 // pred_fallthru
        _
      %p375 = scmp.lt.s32.totalorder %s18, 4
      // Predicated region
      $region41: #{gcn_block.1} parent=5 // pred_check
        %p376 = pneg %p375
      $region42: #{gcn_block.1} parent=5 // pred_check_branch
        %378 = sbr.rel (%p376) target = $region44
      $region43: #{gcn_block.1} parent=5 // pred_region
        // Predicated region
        $region45: #{gcn_block.1} parent=43 // pred_check
          %p379 = pneg %p73
        $region46: #{gcn_block.1} parent=43 // pred_check_branch
          %381 = sbr.rel (%p379) target = $region48
        $region47: #{gcn_block.1} parent=43 // pred_region
          %s382 = sand.u32 %s63, 1
          %s383 = sand.u32 %s63, 1
          %s384 = smul.addr %s383, 64
          %s385 = scalar_lea.vmem [#allocation5], %s384
          %s386 = smul.u32 16, %s25
          %s387 = smul.addr %s386, 2
          %s388 = sadd.s32 %s26, %s387
          %s389 = smul.addr %s388, 4
          %s390 = scalar_lea.vmem %s1, %s389
          // Predicated region
          $region49: #{gcn_block.1} parent=47 // pred_check
            _
          $region50: #{gcn_block.1} parent=47 // pred_check_branch
            %392 = sbr.rel (0) target = $region52
          $region51: #{gcn_block.1} parent=47 // pred_region
            // Predicated region
            $region53: #{gcn_block.1} parent=51 // pred_check
              _
            $region54: #{gcn_block.1} parent=51 // pred_check_branch
              %394 = sbr.rel target = $region56
            $region55: #{gcn_block.1} parent=51 // pred_region
              // Predicated region
              $region68: #{gcn_block.1} parent=55 // pred_check
                _
              $region69: #{gcn_block.1} parent=55 // pred_check_branch
                %440 = sbr.rel (0) target = $region71
              $region70: #{gcn_block.1} parent=55 // pred_region
                loop: start=0, step=1, limit=1
                $region72: #{gcn_block.1} parent=70 // loop_pre_header
                  _
                $region73: #{gcn_block.1} parent=70 // loop_header
                  %s442 = sphi 0, %s446
                  %p443 = scmp.ge.s32.totalorder %s442, 1
                  %s447 = sphi %s390, %s390
                  %s448 = sphi %s385, %s385
                $region74: #{gcn_block.1} parent=70 // loop_header_branch
                  %445 = sbr.rel (%p443) target = $region78
                $region75: #{gcn_block.1} parent=70 // loop_body
                  _
                $region76: #{gcn_block.1} parent=70 // loop_footer
                  %s446 = sadd.s32 1, %s442
                $region77: #{gcn_block.1} parent=70 // loop_footer_branch
                  %441 = sbr.rel target = $region73
                $region78: #{gcn_block.1} parent=70 // loop_exit
                  _
                %s450 = ssub.s32 16, 1
                loop: start=0, step=1, limit=1
                $region79: #{gcn_block.1} parent=70 // loop_pre_header
                  _
                $region80: #{gcn_block.1} parent=70 // loop_header
                  %s452 = sphi 0, %s456
                  %p453 = scmp.ge.s32.totalorder %s452, 1
                  %s457 = sphi %s390, %s390
                  %s458 = sphi %s385, %s385
                $region81: #{gcn_block.1} parent=70 // loop_header_branch
                  %455 = sbr.rel (%p453) target = $region85
                $region82: #{gcn_block.1} parent=70 // loop_body
                  %v459 = vld [vmem:[%s457] sm:%s450]
                  %460 = vst [vmem:[%s458] sm:%s450] %v459
                  %v461 = vld [vmem:[%s457 + $0x8] sm:%s450]
                  %462 = vst [vmem:[%s458 + $0x4] sm:%s450] %v461
                  %v463 = vld [vmem:[%s457 + $0x10] sm:%s450]
                  %464 = vst [vmem:[%s458 + $0x8] sm:%s450] %v463
                  %v465 = vld [vmem:[%s457 + $0x18] sm:%s450]
                  %466 = vst [vmem:[%s458 + $0xc] sm:%s450] %v465
                  %v467 = vld [vmem:[%s457 + $0x20] sm:%s450]
                  %468 = vst [vmem:[%s458 + $0x10] sm:%s450] %v467
                  %v469 = vld [vmem:[%s457 + $0x28] sm:%s450]
                  %470 = vst [vmem:[%s458 + $0x14] sm:%s450] %v469
                  %v471 = vld [vmem:[%s457 + $0x30] sm:%s450]
                  %472 = vst [vmem:[%s458 + $0x18] sm:%s450] %v471
                  %v473 = vld [vmem:[%s457 + $0x38] sm:%s450]
                  %474 = vst [vmem:[%s458 + $0x1c] sm:%s450] %v473
                  %v475 = vld [vmem:[%s457 + $0x40] sm:%s450]
                  %476 = vst [vmem:[%s458 + $0x20] sm:%s450] %v475
                  %v477 = vld [vmem:[%s457 + $0x48] sm:%s450]
                  %478 = vst [vmem:[%s458 + $0x24] sm:%s450] %v477
                  %v479 = vld [vmem:[%s457 + $0x50] sm:%s450]
                  %480 = vst [vmem:[%s458 + $0x28] sm:%s450] %v479
                  %v481 = vld [vmem:[%s457 + $0x58] sm:%s450]
                  %482 = vst [vmem:[%s458 + $0x2c] sm:%s450] %v481
                  %v483 = vld [vmem:[%s457 + $0x60] sm:%s450]
                  %484 = vst [vmem:[%s458 + $0x30] sm:%s450] %v483
                  %v485 = vld [vmem:[%s457 + $0x68] sm:%s450]
                  %486 = vst [vmem:[%s458 + $0x34] sm:%s450] %v485
                  %v487 = vld [vmem:[%s457 + $0x70] sm:%s450]
                  %488 = vst [vmem:[%s458 + $0x38] sm:%s450] %v487
                  %v489 = vld [vmem:[%s457 + $0x78] sm:%s450]
                  %490 = vst [vmem:[%s458 + $0x3c] sm:%s450] %v489
                $region83: #{gcn_block.1} parent=70 // loop_footer
                  %s456 = sadd.s32 1, %s452
                $region84: #{gcn_block.1} parent=70 // loop_footer_branch
                  %451 = sbr.rel target = $region80
                $region85: #{gcn_block.1} parent=70 // loop_exit
                  _
              $region71: #{gcn_block.1} parent=55 // pred_fallthru
                _
            $region56: #{gcn_block.1} parent=51 // pred_fallthru
              _
            // Predicated region
            $region57: #{gcn_block.1} parent=51 // pred_check
              _
            $region58: #{gcn_block.1} parent=51 // pred_check_branch
              %396 = sbr.rel (0) target = $region60
            $region59: #{gcn_block.1} parent=51 // pred_region
              %s398 = ssub.s32 16, 1
              loop: start=0, step=1, limit=1
              $region61: #{gcn_block.1} parent=59 // loop_pre_header
                _
              $region62: #{gcn_block.1} parent=59 // loop_header
                %s400 = sphi 0, %s404
                %p401 = scmp.ge.s32.totalorder %s400, 1
                %s405 = sphi %s390, %s390
                %s406 = sphi %s385, %s385
              $region63: #{gcn_block.1} parent=59 // loop_header_branch
                %403 = sbr.rel (%p401) target = $region67
              $region64: #{gcn_block.1} parent=59 // loop_body
                %v407 = vld [vmem:[%s405] sm:%s398]
                %408 = vst [vmem:[%s406] sm:%s398] %v407
                %v409 = vld [vmem:[%s405 + $0x8] sm:%s398]
                %410 = vst [vmem:[%s406 + $0x4] sm:%s398] %v409
                %v411 = vld [vmem:[%s405 + $0x10] sm:%s398]
                %412 = vst [vmem:[%s406 + $0x8] sm:%s398] %v411
                %v413 = vld [vmem:[%s405 + $0x18] sm:%s398]
                %414 = vst [vmem:[%s406 + $0xc] sm:%s398] %v413
                %v415 = vld [vmem:[%s405 + $0x20] sm:%s398]
                %416 = vst [vmem:[%s406 + $0x10] sm:%s398] %v415
                %v417 = vld [vmem:[%s405 + $0x28] sm:%s398]
                %418 = vst [vmem:[%s406 + $0x14] sm:%s398] %v417
                %v419 = vld [vmem:[%s405 + $0x30] sm:%s398]
                %420 = vst [vmem:[%s406 + $0x18] sm:%s398] %v419
                %v421 = vld [vmem:[%s405 + $0x38] sm:%s398]
                %422 = vst [vmem:[%s406 + $0x1c] sm:%s398] %v421
                %v423 = vld [vmem:[%s405 + $0x40] sm:%s398]
                %424 = vst [vmem:[%s406 + $0x20] sm:%s398] %v423
                %v425 = vld [vmem:[%s405 + $0x48] sm:%s398]
                %426 = vst [vmem:[%s406 + $0x24] sm:%s398] %v425
                %v427 = vld [vmem:[%s405 + $0x50] sm:%s398]
                %428 = vst [vmem:[%s406 + $0x28] sm:%s398] %v427
                %v429 = vld [vmem:[%s405 + $0x58] sm:%s398]
                %430 = vst [vmem:[%s406 + $0x2c] sm:%s398] %v429
                %v431 = vld [vmem:[%s405 + $0x60] sm:%s398]
                %432 = vst [vmem:[%s406 + $0x30] sm:%s398] %v431
                %v433 = vld [vmem:[%s405 + $0x68] sm:%s398]
                %434 = vst [vmem:[%s406 + $0x34] sm:%s398] %v433
                %v435 = vld [vmem:[%s405 + $0x70] sm:%s398]
                %436 = vst [vmem:[%s406 + $0x38] sm:%s398] %v435
                %v437 = vld [vmem:[%s405 + $0x78] sm:%s398]
                %438 = vst [vmem:[%s406 + $0x3c] sm:%s398] %v437
              $region65: #{gcn_block.1} parent=59 // loop_footer
                %s404 = sadd.s32 1, %s400
              $region66: #{gcn_block.1} parent=59 // loop_footer_branch
                %399 = sbr.rel target = $region62
              $region67: #{gcn_block.1} parent=59 // loop_exit
                _
            $region60: #{gcn_block.1} parent=51 // pred_fallthru
              _
          $region52: #{gcn_block.1} parent=47 // pred_fallthru
            _
          %491 = vnop
        $region48: #{gcn_block.1} parent=43 // pred_fallthru
          _
        // Predicated region
        $region86: #{gcn_block.1} parent=43 // pred_check
          %p492 = pneg %p101
        $region87: #{gcn_block.1} parent=43 // pred_check_branch
          %494 = sbr.rel (%p492) target = $region89
        $region88: #{gcn_block.1} parent=43 // pred_region
          %s495 = sand.u32 %s91, 1
          %s496 = sand.u32 %s91, 1
          %s497 = smul.addr %s496, 64
          %s498 = scalar_lea.vmem [#allocation6], %s497
          %s499 = smul.u32 16, %s25
          %s500 = smul.addr %s499, 2
          %s501 = sadd.s32 %s26, %s500
          %s502 = smul.addr %s501, 4
          %s503 = scalar_lea.vmem %s2, %s502
          // Predicated region
          $region90: #{gcn_block.1} parent=88 // pred_check
            _
          $region91: #{gcn_block.1} parent=88 // pred_check_branch
            %505 = sbr.rel (0) target = $region93
          $region92: #{gcn_block.1} parent=88 // pred_region
            // Predicated region
            $region94: #{gcn_block.1} parent=92 // pred_check
              _
            $region95: #{gcn_block.1} parent=92 // pred_check_branch
              %507 = sbr.rel target = $region97
            $region96: #{gcn_block.1} parent=92 // pred_region
              // Predicated region
              $region109: #{gcn_block.1} parent=96 // pred_check
                _
              $region110: #{gcn_block.1} parent=96 // pred_check_branch
                %553 = sbr.rel (0) target = $region112
              $region111: #{gcn_block.1} parent=96 // pred_region
                loop: start=0, step=1, limit=1
                $region113: #{gcn_block.1} parent=111 // loop_pre_header
                  _
                $region114: #{gcn_block.1} parent=111 // loop_header
                  %s555 = sphi 0, %s559
                  %p556 = scmp.ge.s32.totalorder %s555, 1
                  %s560 = sphi %s503, %s503
                  %s561 = sphi %s498, %s498
                $region115: #{gcn_block.1} parent=111 // loop_header_branch
                  %558 = sbr.rel (%p556) target = $region119
                $region116: #{gcn_block.1} parent=111 // loop_body
                  _
                $region117: #{gcn_block.1} parent=111 // loop_footer
                  %s559 = sadd.s32 1, %s555
                $region118: #{gcn_block.1} parent=111 // loop_footer_branch
                  %554 = sbr.rel target = $region114
                $region119: #{gcn_block.1} parent=111 // loop_exit
                  _
                %s563 = ssub.s32 16, 1
                loop: start=0, step=1, limit=1
                $region120: #{gcn_block.1} parent=111 // loop_pre_header
                  _
                $region121: #{gcn_block.1} parent=111 // loop_header
                  %s565 = sphi 0, %s569
                  %p566 = scmp.ge.s32.totalorder %s565, 1
                  %s570 = sphi %s503, %s503
                  %s571 = sphi %s498, %s498
                $region122: #{gcn_block.1} parent=111 // loop_header_branch
                  %568 = sbr.rel (%p566) target = $region126
                $region123: #{gcn_block.1} parent=111 // loop_body
                  %v572 = vld [vmem:[%s570] sm:%s563]
                  %573 = vst [vmem:[%s571] sm:%s563] %v572
                  %v574 = vld [vmem:[%s570 + $0x8] sm:%s563]
                  %575 = vst [vmem:[%s571 + $0x4] sm:%s563] %v574
                  %v576 = vld [vmem:[%s570 + $0x10] sm:%s563]
                  %577 = vst [vmem:[%s571 + $0x8] sm:%s563] %v576
                  %v578 = vld [vmem:[%s570 + $0x18] sm:%s563]
                  %579 = vst [vmem:[%s571 + $0xc] sm:%s563] %v578
                  %v580 = vld [vmem:[%s570 + $0x20] sm:%s563]
                  %581 = vst [vmem:[%s571 + $0x10] sm:%s563] %v580
                  %v582 = vld [vmem:[%s570 + $0x28] sm:%s563]
                  %583 = vst [vmem:[%s571 + $0x14] sm:%s563] %v582
                  %v584 = vld [vmem:[%s570 + $0x30] sm:%s563]
                  %585 = vst [vmem:[%s571 + $0x18] sm:%s563] %v584
                  %v586 = vld [vmem:[%s570 + $0x38] sm:%s563]
                  %587 = vst [vmem:[%s571 + $0x1c] sm:%s563] %v586
                  %v588 = vld [vmem:[%s570 + $0x40] sm:%s563]
                  %589 = vst [vmem:[%s571 + $0x20] sm:%s563] %v588
                  %v590 = vld [vmem:[%s570 + $0x48] sm:%s563]
                  %591 = vst [vmem:[%s571 + $0x24] sm:%s563] %v590
                  %v592 = vld [vmem:[%s570 + $0x50] sm:%s563]
                  %593 = vst [vmem:[%s571 + $0x28] sm:%s563] %v592
                  %v594 = vld [vmem:[%s570 + $0x58] sm:%s563]
                  %595 = vst [vmem:[%s571 + $0x2c] sm:%s563] %v594
                  %v596 = vld [vmem:[%s570 + $0x60] sm:%s563]
                  %597 = vst [vmem:[%s571 + $0x30] sm:%s563] %v596
                  %v598 = vld [vmem:[%s570 + $0x68] sm:%s563]
                  %599 = vst [vmem:[%s571 + $0x34] sm:%s563] %v598
                  %v600 = vld [vmem:[%s570 + $0x70] sm:%s563]
                  %601 = vst [vmem:[%s571 + $0x38] sm:%s563] %v600
                  %v602 = vld [vmem:[%s570 + $0x78] sm:%s563]
                  %603 = vst [vmem:[%s571 + $0x3c] sm:%s563] %v602
                $region124: #{gcn_block.1} parent=111 // loop_footer
                  %s569 = sadd.s32 1, %s565
                $region125: #{gcn_block.1} parent=111 // loop_footer_branch
                  %564 = sbr.rel target = $region121
                $region126: #{gcn_block.1} parent=111 // loop_exit
                  _
              $region112: #{gcn_block.1} parent=96 // pred_fallthru
                _
            $region97: #{gcn_block.1} parent=92 // pred_fallthru
              _
            // Predicated region
            $region98: #{gcn_block.1} parent=92 // pred_check
              _
            $region99: #{gcn_block.1} parent=92 // pred_check_branch
              %509 = sbr.rel (0) target = $region101
            $region100: #{gcn_block.1} parent=92 // pred_region
              %s511 = ssub.s32 16, 1
              loop: start=0, step=1, limit=1
              $region102: #{gcn_block.1} parent=100 // loop_pre_header
                _
              $region103: #{gcn_block.1} parent=100 // loop_header
                %s513 = sphi 0, %s517
                %p514 = scmp.ge.s32.totalorder %s513, 1
                %s518 = sphi %s503, %s503
                %s519 = sphi %s498, %s498
              $region104: #{gcn_block.1} parent=100 // loop_header_branch
                %516 = sbr.rel (%p514) target = $region108
              $region105: #{gcn_block.1} parent=100 // loop_body
                %v520 = vld [vmem:[%s518] sm:%s511]
                %521 = vst [vmem:[%s519] sm:%s511] %v520
                %v522 = vld [vmem:[%s518 + $0x8] sm:%s511]
                %523 = vst [vmem:[%s519 + $0x4] sm:%s511] %v522
                %v524 = vld [vmem:[%s518 + $0x10] sm:%s511]
                %525 = vst [vmem:[%s519 + $0x8] sm:%s511] %v524
                %v526 = vld [vmem:[%s518 + $0x18] sm:%s511]
                %527 = vst [vmem:[%s519 + $0xc] sm:%s511] %v526
                %v528 = vld [vmem:[%s518 + $0x20] sm:%s511]
                %529 = vst [vmem:[%s519 + $0x10] sm:%s511] %v528
                %v530 = vld [vmem:[%s518 + $0x28] sm:%s511]
                %531 = vst [vmem:[%s519 + $0x14] sm:%s511] %v530
                %v532 = vld [vmem:[%s518 + $0x30] sm:%s511]
                %533 = vst [vmem:[%s519 + $0x18] sm:%s511] %v532
                %v534 = vld [vmem:[%s518 + $0x38] sm:%s511]
                %535 = vst [vmem:[%s519 + $0x1c] sm:%s511] %v534
                %v536 = vld [vmem:[%s518 + $0x40] sm:%s511]
                %537 = vst [vmem:[%s519 + $0x20] sm:%s511] %v536
                %v538 = vld [vmem:[%s518 + $0x48] sm:%s511]
                %539 = vst [vmem:[%s519 + $0x24] sm:%s511] %v538
                %v540 = vld [vmem:[%s518 + $0x50] sm:%s511]
                %541 = vst [vmem:[%s519 + $0x28] sm:%s511] %v540
                %v542 = vld [vmem:[%s518 + $0x58] sm:%s511]
                %543 = vst [vmem:[%s519 + $0x2c] sm:%s511] %v542
                %v544 = vld [vmem:[%s518 + $0x60] sm:%s511]
                %545 = vst [vmem:[%s519 + $0x30] sm:%s511] %v544
                %v546 = vld [vmem:[%s518 + $0x68] sm:%s511]
                %547 = vst [vmem:[%s519 + $0x34] sm:%s511] %v546
                %v548 = vld [vmem:[%s518 + $0x70] sm:%s511]
                %549 = vst [vmem:[%s519 + $0x38] sm:%s511] %v548
                %v550 = vld [vmem:[%s518 + $0x78] sm:%s511]
                %551 = vst [vmem:[%s519 + $0x3c] sm:%s511] %v550
              $region106: #{gcn_block.1} parent=100 // loop_footer
                %s517 = sadd.s32 1, %s513
              $region107: #{gcn_block.1} parent=100 // loop_footer_branch
                %512 = sbr.rel target = $region103
              $region108: #{gcn_block.1} parent=100 // loop_exit
                _
            $region101: #{gcn_block.1} parent=92 // pred_fallthru
              _
          $region93: #{gcn_block.1} parent=88 // pred_fallthru
            _
          %604 = vnop
        $region89: #{gcn_block.1} parent=43 // pred_fallthru
          _
        // Predicated region
        $region127: #{gcn_block.1} parent=43 // pred_check
          %p605 = pneg %p129
        $region128: #{gcn_block.1} parent=43 // pred_check_branch
          %607 = sbr.rel (%p605) target = $region130
        $region129: #{gcn_block.1} parent=43 // pred_region
          %s608 = sand.u32 %s119, 1
          %s609 = sand.u32 %s119, 1
          %s610 = smul.addr %s609, 64
          %s611 = scalar_lea.vmem [#allocation7], %s610
          %s612 = smul.u32 16, %s25
          %s613 = smul.addr %s612, 2
          %s614 = sadd.s32 %s26, %s613
          %s615 = smul.addr %s614, 4
          %s616 = scalar_lea.vmem %s3, %s615
          // Predicated region
          $region131: #{gcn_block.1} parent=129 // pred_check
            _
          $region132: #{gcn_block.1} parent=129 // pred_check_branch
            %618 = sbr.rel (0) target = $region134
          $region133: #{gcn_block.1} parent=129 // pred_region
            // Predicated region
            $region135: #{gcn_block.1} parent=133 // pred_check
              _
            $region136: #{gcn_block.1} parent=133 // pred_check_branch
              %620 = sbr.rel target = $region138
            $region137: #{gcn_block.1} parent=133 // pred_region
              // Predicated region
              $region150: #{gcn_block.1} parent=137 // pred_check
                _
              $region151: #{gcn_block.1} parent=137 // pred_check_branch
                %666 = sbr.rel (0) target = $region153
              $region152: #{gcn_block.1} parent=137 // pred_region
                loop: start=0, step=1, limit=1
                $region154: #{gcn_block.1} parent=152 // loop_pre_header
                  _
                $region155: #{gcn_block.1} parent=152 // loop_header
                  %s668 = sphi 0, %s672
                  %p669 = scmp.ge.s32.totalorder %s668, 1
                  %s673 = sphi %s616, %s616
                  %s674 = sphi %s611, %s611
                $region156: #{gcn_block.1} parent=152 // loop_header_branch
                  %671 = sbr.rel (%p669) target = $region160
                $region157: #{gcn_block.1} parent=152 // loop_body
                  _
                $region158: #{gcn_block.1} parent=152 // loop_footer
                  %s672 = sadd.s32 1, %s668
                $region159: #{gcn_block.1} parent=152 // loop_footer_branch
                  %667 = sbr.rel target = $region155
                $region160: #{gcn_block.1} parent=152 // loop_exit
                  _
                %s676 = ssub.s32 16, 1
                loop: start=0, step=1, limit=1
                $region161: #{gcn_block.1} parent=152 // loop_pre_header
                  _
                $region162: #{gcn_block.1} parent=152 // loop_header
                  %s678 = sphi 0, %s682
                  %p679 = scmp.ge.s32.totalorder %s678, 1
                  %s683 = sphi %s616, %s616
                  %s684 = sphi %s611, %s611
                $region163: #{gcn_block.1} parent=152 // loop_header_branch
                  %681 = sbr.rel (%p679) target = $region167
                $region164: #{gcn_block.1} parent=152 // loop_body
                  %v685 = vld [vmem:[%s683] sm:%s676]
                  %686 = vst [vmem:[%s684] sm:%s676] %v685
                  %v687 = vld [vmem:[%s683 + $0x8] sm:%s676]
                  %688 = vst [vmem:[%s684 + $0x4] sm:%s676] %v687
                  %v689 = vld [vmem:[%s683 + $0x10] sm:%s676]
                  %690 = vst [vmem:[%s684 + $0x8] sm:%s676] %v689
                  %v691 = vld [vmem:[%s683 + $0x18] sm:%s676]
                  %692 = vst [vmem:[%s684 + $0xc] sm:%s676] %v691
                  %v693 = vld [vmem:[%s683 + $0x20] sm:%s676]
                  %694 = vst [vmem:[%s684 + $0x10] sm:%s676] %v693
                  %v695 = vld [vmem:[%s683 + $0x28] sm:%s676]
                  %696 = vst [vmem:[%s684 + $0x14] sm:%s676] %v695
                  %v697 = vld [vmem:[%s683 + $0x30] sm:%s676]
                  %698 = vst [vmem:[%s684 + $0x18] sm:%s676] %v697
                  %v699 = vld [vmem:[%s683 + $0x38] sm:%s676]
                  %700 = vst [vmem:[%s684 + $0x1c] sm:%s676] %v699
                  %v701 = vld [vmem:[%s683 + $0x40] sm:%s676]
                  %702 = vst [vmem:[%s684 + $0x20] sm:%s676] %v701
                  %v703 = vld [vmem:[%s683 + $0x48] sm:%s676]
                  %704 = vst [vmem:[%s684 + $0x24] sm:%s676] %v703
                  %v705 = vld [vmem:[%s683 + $0x50] sm:%s676]
                  %706 = vst [vmem:[%s684 + $0x28] sm:%s676] %v705
                  %v707 = vld [vmem:[%s683 + $0x58] sm:%s676]
                  %708 = vst [vmem:[%s684 + $0x2c] sm:%s676] %v707
                  %v709 = vld [vmem:[%s683 + $0x60] sm:%s676]
                  %710 = vst [vmem:[%s684 + $0x30] sm:%s676] %v709
                  %v711 = vld [vmem:[%s683 + $0x68] sm:%s676]
                  %712 = vst [vmem:[%s684 + $0x34] sm:%s676] %v711
                  %v713 = vld [vmem:[%s683 + $0x70] sm:%s676]
                  %714 = vst [vmem:[%s684 + $0x38] sm:%s676] %v713
                  %v715 = vld [vmem:[%s683 + $0x78] sm:%s676]
                  %716 = vst [vmem:[%s684 + $0x3c] sm:%s676] %v715
                $region165: #{gcn_block.1} parent=152 // loop_footer
                  %s682 = sadd.s32 1, %s678
                $region166: #{gcn_block.1} parent=152 // loop_footer_branch
                  %677 = sbr.rel target = $region162
                $region167: #{gcn_block.1} parent=152 // loop_exit
                  _
              $region153: #{gcn_block.1} parent=137 // pred_fallthru
                _
            $region138: #{gcn_block.1} parent=133 // pred_fallthru
              _
            // Predicated region
            $region139: #{gcn_block.1} parent=133 // pred_check
              _
            $region140: #{gcn_block.1} parent=133 // pred_check_branch
              %622 = sbr.rel (0) target = $region142
            $region141: #{gcn_block.1} parent=133 // pred_region
              %s624 = ssub.s32 16, 1
              loop: start=0, step=1, limit=1
              $region143: #{gcn_block.1} parent=141 // loop_pre_header
                _
              $region144: #{gcn_block.1} parent=141 // loop_header
                %s626 = sphi 0, %s630
                %p627 = scmp.ge.s32.totalorder %s626, 1
                %s631 = sphi %s616, %s616
                %s632 = sphi %s611, %s611
              $region145: #{gcn_block.1} parent=141 // loop_header_branch
                %629 = sbr.rel (%p627) target = $region149
              $region146: #{gcn_block.1} parent=141 // loop_body
                %v633 = vld [vmem:[%s631] sm:%s624]
                %634 = vst [vmem:[%s632] sm:%s624] %v633
                %v635 = vld [vmem:[%s631 + $0x8] sm:%s624]
                %636 = vst [vmem:[%s632 + $0x4] sm:%s624] %v635
                %v637 = vld [vmem:[%s631 + $0x10] sm:%s624]
                %638 = vst [vmem:[%s632 + $0x8] sm:%s624] %v637
                %v639 = vld [vmem:[%s631 + $0x18] sm:%s624]
                %640 = vst [vmem:[%s632 + $0xc] sm:%s624] %v639
                %v641 = vld [vmem:[%s631 + $0x20] sm:%s624]
                %642 = vst [vmem:[%s632 + $0x10] sm:%s624] %v641
                %v643 = vld [vmem:[%s631 + $0x28] sm:%s624]
                %644 = vst [vmem:[%s632 + $0x14] sm:%s624] %v643
                %v645 = vld [vmem:[%s631 + $0x30] sm:%s624]
                %646 = vst [vmem:[%s632 + $0x18] sm:%s624] %v645
                %v647 = vld [vmem:[%s631 + $0x38] sm:%s624]
                %648 = vst [vmem:[%s632 + $0x1c] sm:%s624] %v647
                %v649 = vld [vmem:[%s631 + $0x40] sm:%s624]
                %650 = vst [vmem:[%s632 + $0x20] sm:%s624] %v649
                %v651 = vld [vmem:[%s631 + $0x48] sm:%s624]
                %652 = vst [vmem:[%s632 + $0x24] sm:%s624] %v651
                %v653 = vld [vmem:[%s631 + $0x50] sm:%s624]
                %654 = vst [vmem:[%s632 + $0x28] sm:%s624] %v653
                %v655 = vld [vmem:[%s631 + $0x58] sm:%s624]
                %656 = vst [vmem:[%s632 + $0x2c] sm:%s624] %v655
                %v657 = vld [vmem:[%s631 + $0x60] sm:%s624]
                %658 = vst [vmem:[%s632 + $0x30] sm:%s624] %v657
                %v659 = vld [vmem:[%s631 + $0x68] sm:%s624]
                %660 = vst [vmem:[%s632 + $0x34] sm:%s624] %v659
                %v661 = vld [vmem:[%s631 + $0x70] sm:%s624]
                %662 = vst [vmem:[%s632 + $0x38] sm:%s624] %v661
                %v663 = vld [vmem:[%s631 + $0x78] sm:%s624]
                %664 = vst [vmem:[%s632 + $0x3c] sm:%s624] %v663
              $region147: #{gcn_block.1} parent=141 // loop_footer
                %s630 = sadd.s32 1, %s626
              $region148: #{gcn_block.1} parent=141 // loop_footer_branch
                %625 = sbr.rel target = $region144
              $region149: #{gcn_block.1} parent=141 // loop_exit
                _
            $region142: #{gcn_block.1} parent=133 // pred_fallthru
              _
          $region134: #{gcn_block.1} parent=129 // pred_fallthru
            _
          %717 = vnop
        $region130: #{gcn_block.1} parent=43 // pred_fallthru
          _
        // Predicated region
        $region168: #{gcn_block.1} parent=43 // pred_check
          %p718 = pneg %p155
        $region169: #{gcn_block.1} parent=43 // pred_check_branch
          %720 = sbr.rel (%p718) target = $region171
        $region170: #{gcn_block.1} parent=43 // pred_region
          %s721 = smul.u32 16, %s26
          %p722 = scmp.lt.s32.totalorder %s721, 31
          %s723 = scalar_select %p722, %s721, 31
          %s724 = smul.addr %s723, 2
          %s725 = smul.addr %s724, 4
          %s726 = scalar_lea.vmem %s4, %s725
          %s727 = smul.u32 16, %s26
        $region171: #{gcn_block.1} parent=43 // pred_fallthru
          _
        // Predicated region
        $region172: #{gcn_block.1} parent=43 // pred_check
          %p728 = pneg %p181
        $region173: #{gcn_block.1} parent=43 // pred_check_branch
          %730 = sbr.rel (%p728) target = $region175
        $region174: #{gcn_block.1} parent=43 // pred_region
          %s731 = smul.u32 16, %s26
          %p732 = scmp.lt.s32.totalorder %s731, 31
          %s733 = scalar_select %p732, %s731, 31
          %s734 = smul.addr %s733, 2
          %s735 = smul.addr %s734, 4
          %s736 = scalar_lea.vmem %s5, %s735
          %s737 = smul.u32 16, %s26
        $region175: #{gcn_block.1} parent=43 // pred_fallthru
          _
      $region44: #{gcn_block.1} parent=5 // pred_fallthru
        _
      %p738 = scmp.le.s32.totalorder 1, %s18
      %p739 = scmp.lt.s32.totalorder %s18, 5
      %p740 = pnand %p738, %p739
      %p741 = pneg %p740
      // Predicated region
      $region176: #{gcn_block.1} parent=5 // pred_check
        _
      $region177: #{gcn_block.1} parent=5 // pred_check_branch
        %743 = sbr.rel (%p740) target = $region179
      $region178: #{gcn_block.1} parent=5 // pred_region
        %s744 = ssub.s32 %s18, 1
        %s745 = sand.u32 %s66, 1
        %s746 = sand.u32 %s66, 1
        %s747 = smul.addr %s746, 64
        %s748 = scalar_lea.vmem [#allocation5], %s747
        // Predicated region
        $region180: #{gcn_block.1} parent=178 // pred_check
          %p749 = pneg %p79
        $region181: #{gcn_block.1} parent=178 // pred_check_branch
          %751 = sbr.rel (%p749) target = $region183
        $region182: #{gcn_block.1} parent=178 // pred_region
          _
        $region183: #{gcn_block.1} parent=178 // pred_fallthru
          _
        %s752 = sand.u32 %s94, 1
        %s753 = sand.u32 %s94, 1
        %s754 = smul.addr %s753, 64
        %s755 = scalar_lea.vmem [#allocation6], %s754
        // Predicated region
        $region184: #{gcn_block.1} parent=178 // pred_check
          %p756 = pneg %p107
        $region185: #{gcn_block.1} parent=178 // pred_check_branch
          %758 = sbr.rel (%p756) target = $region187
        $region186: #{gcn_block.1} parent=178 // pred_region
          _
        $region187: #{gcn_block.1} parent=178 // pred_fallthru
          _
        %s759 = sand.u32 %s122, 1
        %s760 = sand.u32 %s122, 1
        %s761 = smul.addr %s760, 64
        %s762 = scalar_lea.vmem [#allocation7], %s761
        // Predicated region
        $region188: #{gcn_block.1} parent=178 // pred_check
          %p763 = pneg %p135
        $region189: #{gcn_block.1} parent=178 // pred_check_branch
          %765 = sbr.rel (%p763) target = $region191
        $region190: #{gcn_block.1} parent=178 // pred_region
          _
        $region191: #{gcn_block.1} parent=178 // pred_fallthru
          _
        %p766 = pneg %p51
        %p767 = pneg %p48
        %s768 = sand.u32 %s66, 1
        %s769 = sand.u32 %s66, 1
        %s770 = smul.addr %s769, 64
        %s771 = scalar_lea.vmem [#allocation5], %s770
        %p772 = pneg %p79
        %p773 = pneg %p76
        %s774 = sand.u32 %s94, 1
        %s775 = sand.u32 %s94, 1
        %s776 = smul.addr %s775, 64
        %s777 = scalar_lea.vmem [#allocation6], %s776
        %p778 = pneg %p107
        %p779 = pneg %p104
        %s780 = sand.u32 %s122, 1
        %s781 = sand.u32 %s122, 1
        %s782 = smul.addr %s781, 64
        %s783 = scalar_lea.vmem [#allocation7], %s782
        %p784 = pneg %p135
        %p785 = pneg %p132
        %s786 = smul.u32 16, %s28
        %p787 = scmp.lt.s32.totalorder %s786, 31
        %s788 = scalar_select %p787, %s786, 31
        %s789 = smul.addr %s788, 2
        %s790 = smul.addr %s789, 4
        %s791 = scalar_lea.vmem %s4, %s790
        %p792 = pneg %p161
        %p793 = pneg %p158
        %s794 = smul.u32 16, %s28
        %p795 = scmp.lt.s32.totalorder %s794, 31
        %s796 = scalar_select %p795, %s794, 31
        %s797 = smul.addr %s796, 2
        %s798 = smul.addr %s797, 4
        %s799 = scalar_lea.vmem %s5, %s798
        %p800 = pneg %p187
        %p801 = pneg %p184
        %p802 = pneg %p208
        %p803 = pneg %p205
        %p804 = pneg %p229
        %p805 = pneg %p226
        %p806 = pneg %p250
        %p807 = pneg %p247
        %p808 = pneg %p271
        %p809 = pneg %p268
        %p810 = pneg %p292
        %p811 = pneg %p289
        %p812 = pneg %p313
        %p813 = pneg %p310
        %p814 = pneg %p339
        %p815 = pneg %p336
        %s816 = smul.u32 16, %s27
        %p817 = scmp.lt.s32.totalorder %s816, 31
        %s818 = scalar_select %p817, %s816, 31
        %s819 = smul.addr %s818, 8
        %s820 = scalar_lea.vmem %s12, %s819
        %s821 = smul.u32 16, %s27
        %s822 = smul.u32 16, %s27
        %s823 = smul.u32 16, %s27
        %s824 = smul.u32 16, %s28
        %p825 = scmp.lt.s32.totalorder %s824, 31
        %s826 = scalar_select %p825, %s824, 31
        %s827 = smul.addr %s826, 2
        %s828 = smul.addr %s827, 4
        %s829 = scalar_lea.vmem %s4, %s828
        %s830 = smul.u32 16, %s28
        %s831 = smul.u32 16, %s28
        %p832 = scmp.lt.s32.totalorder %s831, 31
        %s833 = scalar_select %p832, %s831, 31
        %s834 = smul.addr %s833, 2
        %s835 = smul.addr %s834, 4
        %s836 = scalar_lea.vmem %s5, %s835
        %s837 = smul.u32 16, %s28
        %s838 = smul.u32 16, %s27
        %p839 = scmp.lt.s32.totalorder %s838, 31
        %s840 = scalar_select %p839, %s838, 31
        %s841 = smul.addr %s840, 8
        %s842 = scalar_lea.vmem %s12, %s841
        %s843 = smul.u32 16, %s27
        %p844 = scmp.eq.s32.totalorder %s28, 0
        // Predicated region
        $region192: #{gcn_block.1} parent=178 // pred_check
          %p845 = pneg %p844
        $region193: #{gcn_block.1} parent=178 // pred_check_branch
          %847 = sbr.rel (%p845) target = $region195
        $region194: #{gcn_block.1} parent=178 // pred_region
          %848 = vst [vmem:[#allocation2] sm:$0xff] 0.0
          %849 = vst [vmem:[#allocation2 + $0x8] sm:$0xff] 0.0
          %850 = vst [vmem:[#allocation2 + $0x10] sm:$0xff] 0.0
          %851 = vst [vmem:[#allocation2 + $0x18] sm:$0xff] 0.0
          %852 = vst [vmem:[#allocation2 + $0x20] sm:$0xff] 0.0
          %853 = vst [vmem:[#allocation2 + $0x28] sm:$0xff] 0.0
          %854 = vst [vmem:[#allocation2 + $0x30] sm:$0xff] 0.0
          %855 = vst [vmem:[#allocation2 + $0x38] sm:$0xff] 0.0
          %856 = vst [vmem:[#allocation2 + $0x40] sm:$0xff] 0.0
          %857 = vst [vmem:[#allocation2 + $0x48] sm:$0xff] 0.0
          %858 = vst [vmem:[#allocation2 + $0x50] sm:$0xff] 0.0
          %859 = vst [vmem:[#allocation2 + $0x58] sm:$0xff] 0.0
          %860 = vst [vmem:[#allocation2 + $0x60] sm:$0xff] 0.0
          %861 = vst [vmem:[#allocation2 + $0x68] sm:$0xff] 0.0
          %862 = vst [vmem:[#allocation2 + $0x70] sm:$0xff] 0.0
          %863 = vst [vmem:[#allocation2 + $0x78] sm:$0xff] 0.0
          %864 = vst [vmem:[#allocation2 + $0x80] sm:$0xff] 0.0
          %865 = vst [vmem:[#allocation2 + $0x88] sm:$0xff] 0.0
          %866 = vst [vmem:[#allocation2 + $0x90] sm:$0xff] 0.0
          %867 = vst [vmem:[#allocation2 + $0x98] sm:$0xff] 0.0
          %868 = vst [vmem:[#allocation2 + $0xa0] sm:$0xff] 0.0
          %869 = vst [vmem:[#allocation2 + $0xa8] sm:$0xff] 0.0
          %870 = vst [vmem:[#allocation2 + $0xb0] sm:$0xff] 0.0
          %871 = vst [vmem:[#allocation2 + $0xb8] sm:$0xff] 0.0
          %872 = vst [vmem:[#allocation2 + $0xc0] sm:$0xff] 0.0
          %873 = vst [vmem:[#allocation2 + $0xc8] sm:$0xff] 0.0
          %874 = vst [vmem:[#allocation2 + $0xd0] sm:$0xff] 0.0
          %875 = vst [vmem:[#allocation2 + $0xd8] sm:$0xff] 0.0
          %876 = vst [vmem:[#allocation2 + $0xe0] sm:$0xff] 0.0
          %877 = vst [vmem:[#allocation2 + $0xe8] sm:$0xff] 0.0
          %878 = vst [vmem:[#allocation2 + $0xf0] sm:$0xff] 0.0
          %879 = vst [vmem:[#allocation2 + $0xf8] sm:$0xff] 0.0
          %880 = vst [vmem:[#allocation2 + $0x100] sm:$0xff] 0.0
          %881 = vst [vmem:[#allocation2 + $0x108] sm:$0xff] 0.0
          %882 = vst [vmem:[#allocation2 + $0x110] sm:$0xff] 0.0
          %883 = vst [vmem:[#allocation2 + $0x118] sm:$0xff] 0.0
          %884 = vst [vmem:[#allocation2 + $0x120] sm:$0xff] 0.0
          %885 = vst [vmem:[#allocation2 + $0x128] sm:$0xff] 0.0
          %886 = vst [vmem:[#allocation2 + $0x130] sm:$0xff] 0.0
          %887 = vst [vmem:[#allocation2 + $0x138] sm:$0xff] 0.0
          %888 = vst [vmem:[#allocation2 + $0x140] sm:$0xff] 0.0
          %889 = vst [vmem:[#allocation2 + $0x148] sm:$0xff] 0.0
          %890 = vst [vmem:[#allocation2 + $0x150] sm:$0xff] 0.0
          %891 = vst [vmem:[#allocation2 + $0x158] sm:$0xff] 0.0
          %892 = vst [vmem:[#allocation2 + $0x160] sm:$0xff] 0.0
          %893 = vst [vmem:[#allocation2 + $0x168] sm:$0xff] 0.0
          %894 = vst [vmem:[#allocation2 + $0x170] sm:$0xff] 0.0
          %895 = vst [vmem:[#allocation2 + $0x178] sm:$0xff] 0.0
          %896 = vst [vmem:[#allocation2 + $0x180] sm:$0xff] 0.0
          %897 = vst [vmem:[#allocation2 + $0x188] sm:$0xff] 0.0
          %898 = vst [vmem:[#allocation2 + $0x190] sm:$0xff] 0.0
          %899 = vst [vmem:[#allocation2 + $0x198] sm:$0xff] 0.0
          %900 = vst [vmem:[#allocation2 + $0x1a0] sm:$0xff] 0.0
          %901 = vst [vmem:[#allocation2 + $0x1a8] sm:$0xff] 0.0
          %902 = vst [vmem:[#allocation2 + $0x1b0] sm:$0xff] 0.0
          %903 = vst [vmem:[#allocation2 + $0x1b8] sm:$0xff] 0.0
          %904 = vst [vmem:[#allocation2 + $0x1c0] sm:$0xff] 0.0
          %905 = vst [vmem:[#allocation2 + $0x1c8] sm:$0xff] 0.0
          %906 = vst [vmem:[#allocation2 + $0x1d0] sm:$0xff] 0.0
          %907 = vst [vmem:[#allocation2 + $0x1d8] sm:$0xff] 0.0
          %908 = vst [vmem:[#allocation2 + $0x1e0] sm:$0xff] 0.0
          %909 = vst [vmem:[#allocation2 + $0x1e8] sm:$0xff] 0.0
          %910 = vst [vmem:[#allocation2 + $0x1f0] sm:$0xff] 0.0
          %911 = vst [vmem:[#allocation2 + $0x1f8] sm:$0xff] 0.0
          %912 = vst [vmem:[#allocation2 + $0x200] sm:$0xff] 0.0
          %913 = vst [vmem:[#allocation2 + $0x208] sm:$0xff] 0.0
          %914 = vst [vmem:[#allocation2 + $0x210] sm:$0xff] 0.0
          %915 = vst [vmem:[#allocation2 + $0x218] sm:$0xff] 0.0
          %916 = vst [vmem:[#allocation2 + $0x220] sm:$0xff] 0.0
          %917 = vst [vmem:[#allocation2 + $0x228] sm:$0xff] 0.0
          %918 = vst [vmem:[#allocation2 + $0x230] sm:$0xff] 0.0
          %919 = vst [vmem:[#allocation2 + $0x238] sm:$0xff] 0.0
          %920 = vst [vmem:[#allocation2 + $0x240] sm:$0xff] 0.0
          %921 = vst [vmem:[#allocation2 + $0x248] sm:$0xff] 0.0
          %922 = vst [vmem:[#allocation2 + $0x250] sm:$0xff] 0.0
          %923 = vst [vmem:[#allocation2 + $0x258] sm:$0xff] 0.0
          %924 = vst [vmem:[#allocation2 + $0x260] sm:$0xff] 0.0
          %925 = vst [vmem:[#allocation2 + $0x268] sm:$0xff] 0.0
          %926 = vst [vmem:[#allocation2 + $0x270] sm:$0xff] 0.0
          %927 = vst [vmem:[#allocation2 + $0x278] sm:$0xff] 0.0
          %928 = vst [vmem:[#allocation2 + $0x280] sm:$0xff] 0.0
          %929 = vst [vmem:[#allocation2 + $0x288] sm:$0xff] 0.0
          %930 = vst [vmem:[#allocation2 + $0x290] sm:$0xff] 0.0
          %931 = vst [vmem:[#allocation2 + $0x298] sm:$0xff] 0.0
          %932 = vst [vmem:[#allocation2 + $0x2a0] sm:$0xff] 0.0
          %933 = vst [vmem:[#allocation2 + $0x2a8] sm:$0xff] 0.0
          %934 = vst [vmem:[#allocation2 + $0x2b0] sm:$0xff] 0.0
          %935 = vst [vmem:[#allocation2 + $0x2b8] sm:$0xff] 0.0
          %936 = vst [vmem:[#allocation2 + $0x2c0] sm:$0xff] 0.0
          %937 = vst [vmem:[#allocation2 + $0x2c8] sm:$0xff] 0.0
          %938 = vst [vmem:[#allocation2 + $0x2d0] sm:$0xff] 0.0
          %939 = vst [vmem:[#allocation2 + $0x2d8] sm:$0xff] 0.0
          %940 = vst [vmem:[#allocation2 + $0x2e0] sm:$0xff] 0.0
          %941 = vst [vmem:[#allocation2 + $0x2e8] sm:$0xff] 0.0
          %942 = vst [vmem:[#allocation2 + $0x2f0] sm:$0xff] 0.0
          %943 = vst [vmem:[#allocation2 + $0x2f8] sm:$0xff] 0.0
          %944 = vst [vmem:[#allocation3] sm:$0xff] 0.0
          %945 = vst [vmem:[#allocation3 + $0x8] sm:$0xff] 0.0
          %946 = vst [vmem:[#allocation3 + $0x10] sm:$0xff] 0.0
          %947 = vst [vmem:[#allocation3 + $0x18] sm:$0xff] 0.0
          %948 = vst [vmem:[#allocation3 + $0x20] sm:$0xff] 0.0
          %949 = vst [vmem:[#allocation3 + $0x28] sm:$0xff] 0.0
          %950 = vst [vmem:[#allocation3 + $0x30] sm:$0xff] 0.0
          %951 = vst [vmem:[#allocation3 + $0x38] sm:$0xff] 0.0
          %952 = vst [vmem:[#allocation3 + $0x40] sm:$0xff] 0.0
          %953 = vst [vmem:[#allocation3 + $0x48] sm:$0xff] 0.0
          %954 = vst [vmem:[#allocation3 + $0x50] sm:$0xff] 0.0
          %955 = vst [vmem:[#allocation3 + $0x58] sm:$0xff] 0.0
          %956 = vst [vmem:[#allocation3 + $0x60] sm:$0xff] 0.0
          %957 = vst [vmem:[#allocation3 + $0x68] sm:$0xff] 0.0
          %958 = vst [vmem:[#allocation3 + $0x70] sm:$0xff] 0.0
          %959 = vst [vmem:[#allocation3 + $0x78] sm:$0xff] 0.0
          %960 = vst [vmem:[#allocation3 + $0x80] sm:$0xff] 0.0
          %961 = vst [vmem:[#allocation3 + $0x88] sm:$0xff] 0.0
          %962 = vst [vmem:[#allocation3 + $0x90] sm:$0xff] 0.0
          %963 = vst [vmem:[#allocation3 + $0x98] sm:$0xff] 0.0
          %964 = vst [vmem:[#allocation3 + $0xa0] sm:$0xff] 0.0
          %965 = vst [vmem:[#allocation3 + $0xa8] sm:$0xff] 0.0
          %966 = vst [vmem:[#allocation3 + $0xb0] sm:$0xff] 0.0
          %967 = vst [vmem:[#allocation3 + $0xb8] sm:$0xff] 0.0
          %968 = vst [vmem:[#allocation3 + $0xc0] sm:$0xff] 0.0
          %969 = vst [vmem:[#allocation3 + $0xc8] sm:$0xff] 0.0
          %970 = vst [vmem:[#allocation3 + $0xd0] sm:$0xff] 0.0
          %971 = vst [vmem:[#allocation3 + $0xd8] sm:$0xff] 0.0
          %972 = vst [vmem:[#allocation3 + $0xe0] sm:$0xff] 0.0
          %973 = vst [vmem:[#allocation3 + $0xe8] sm:$0xff] 0.0
          %974 = vst [vmem:[#allocation3 + $0xf0] sm:$0xff] 0.0
          %975 = vst [vmem:[#allocation3 + $0xf8] sm:$0xff] 0.0
          %976 = vst [vmem:[#allocation4] sm:$0xff] 0.0
          %977 = vst [vmem:[#allocation4 + $0x8] sm:$0xff] 0.0
          %978 = vst [vmem:[#allocation4 + $0x10] sm:$0xff] 0.0
          %979 = vst [vmem:[#allocation4 + $0x18] sm:$0xff] 0.0
          %980 = vst [vmem:[#allocation4 + $0x20] sm:$0xff] 0.0
          %981 = vst [vmem:[#allocation4 + $0x28] sm:$0xff] 0.0
          %982 = vst [vmem:[#allocation4 + $0x30] sm:$0xff] 0.0
          %983 = vst [vmem:[#allocation4 + $0x38] sm:$0xff] 0.0
          %984 = vst [vmem:[#allocation4 + $0x40] sm:$0xff] 0.0
          %985 = vst [vmem:[#allocation4 + $0x48] sm:$0xff] 0.0
          %986 = vst [vmem:[#allocation4 + $0x50] sm:$0xff] 0.0
          %987 = vst [vmem:[#allocation4 + $0x58] sm:$0xff] 0.0
          %988 = vst [vmem:[#allocation4 + $0x60] sm:$0xff] 0.0
          %989 = vst [vmem:[#allocation4 + $0x68] sm:$0xff] 0.0
          %990 = vst [vmem:[#allocation4 + $0x70] sm:$0xff] 0.0
          %991 = vst [vmem:[#allocation4 + $0x78] sm:$0xff] 0.0
          %992 = vst [vmem:[#allocation4 + $0x80] sm:$0xff] 0.0
          %993 = vst [vmem:[#allocation4 + $0x88] sm:$0xff] 0.0
          %994 = vst [vmem:[#allocation4 + $0x90] sm:$0xff] 0.0
          %995 = vst [vmem:[#allocation4 + $0x98] sm:$0xff] 0.0
          %996 = vst [vmem:[#allocation4 + $0xa0] sm:$0xff] 0.0
          %997 = vst [vmem:[#allocation4 + $0xa8] sm:$0xff] 0.0
          %998 = vst [vmem:[#allocation4 + $0xb0] sm:$0xff] 0.0
          %999 = vst [vmem:[#allocation4 + $0xb8] sm:$0xff] 0.0
          %1000 = vst [vmem:[#allocation4 + $0xc0] sm:$0xff] 0.0
          %1001 = vst [vmem:[#allocation4 + $0xc8] sm:$0xff] 0.0
          %1002 = vst [vmem:[#allocation4 + $0xd0] sm:$0xff] 0.0
          %1003 = vst [vmem:[#allocation4 + $0xd8] sm:$0xff] 0.0
          %1004 = vst [vmem:[#allocation4 + $0xe0] sm:$0xff] 0.0
          %1005 = vst [vmem:[#allocation4 + $0xe8] sm:$0xff] 0.0
          %1006 = vst [vmem:[#allocation4 + $0xf0] sm:$0xff] 0.0
          %1007 = vst [vmem:[#allocation4 + $0xf8] sm:$0xff] 0.0
        $region195: #{gcn_block.1} parent=178 // pred_fallthru
          _
        %s1008 = smul.u32 %s28, 128
        %s1009 = scalar_lea.vmem %s0, %s1008
        %v1010 = vld [vmem:[%s1009] sm:$0xff]
        %v1011 = vld [vmem:[%s1009 + $0x8] sm:$0xff]
        %v1012 = vld [vmem:[%s1009 + $0x10] sm:$0xff]
        %v1013 = vld [vmem:[%s1009 + $0x18] sm:$0xff]
        %v1014 = vld [vmem:[%s1009 + $0x20] sm:$0xff]
        %v1015 = vld [vmem:[%s1009 + $0x28] sm:$0xff]
        %v1016 = vld [vmem:[%s1009 + $0x30] sm:$0xff]
        %v1017 = vld [vmem:[%s1009 + $0x38] sm:$0xff]
        %v1018 = vld [vmem:[%s1009 + $0x40] sm:$0xff]
        %v1019 = vld [vmem:[%s1009 + $0x48] sm:$0xff]
        %v1020 = vld [vmem:[%s1009 + $0x50] sm:$0xff]
        %v1021 = vld [vmem:[%s1009 + $0x58] sm:$0xff]
        %v1022 = vld [vmem:[%s1009 + $0x60] sm:$0xff]
        %v1023 = vld [vmem:[%s1009 + $0x68] sm:$0xff]
        %v1024 = vld [vmem:[%s1009 + $0x70] sm:$0xff]
        %v1025 = vld [vmem:[%s1009 + $0x78] sm:$0xff]
        %v1026 = vld [vmem:[%s748] sm:$0xf]
        %v1027 = vld [vmem:[%s748 + $0x4] sm:$0xf]
        %v1028 = vld [vmem:[%s748 + $0x8] sm:$0xf]
        %v1029 = vld [vmem:[%s748 + $0xc] sm:$0xf]
        %v1030 = vld [vmem:[%s748 + $0x10] sm:$0xf]
        %v1031 = vld [vmem:[%s748 + $0x14] sm:$0xf]
        %v1032 = vld [vmem:[%s748 + $0x18] sm:$0xf]
        %v1033 = vld [vmem:[%s748 + $0x1c] sm:$0xf]
        %v1034 = vld [vmem:[%s748 + $0x20] sm:$0xf]
        %v1035 = vld [vmem:[%s748 + $0x24] sm:$0xf]
        %v1036 = vld [vmem:[%s748 + $0x28] sm:$0xf]
        %v1037 = vld [vmem:[%s748 + $0x2c] sm:$0xf]
        %v1038 = vld [vmem:[%s748 + $0x30] sm:$0xf]
        %v1039 = vld [vmem:[%s748 + $0x34] sm:$0xf]
        %v1040 = vld [vmem:[%s748 + $0x38] sm:$0xf]
        %v1041 = vld [vmem:[%s748 + $0x3c] sm:$0xf]
        %v1042 = vld [vmem:[%s755] sm:$0xf]
        %v1043 = vld [vmem:[%s755 + $0x4] sm:$0xf]
        %v1044 = vld [vmem:[%s755 + $0x8] sm:$0xf]
        %v1045 = vld [vmem:[%s755 + $0xc] sm:$0xf]
        %v1046 = vld [vmem:[%s755 + $0x10] sm:$0xf]
        %v1047 = vld [vmem:[%s755 + $0x14] sm:$0xf]
        %v1048 = vld [vmem:[%s755 + $0x18] sm:$0xf]
        %v1049 = vld [vmem:[%s755 + $0x1c] sm:$0xf]
        %v1050 = vld [vmem:[%s755 + $0x20] sm:$0xf]
        %v1051 = vld [vmem:[%s755 + $0x24] sm:$0xf]
        %v1052 = vld [vmem:[%s755 + $0x28] sm:$0xf]
        %v1053 = vld [vmem:[%s755 + $0x2c] sm:$0xf]
        %v1054 = vld [vmem:[%s755 + $0x30] sm:$0xf]
        %v1055 = vld [vmem:[%s755 + $0x34] sm:$0xf]
        %v1056 = vld [vmem:[%s755 + $0x38] sm:$0xf]
        %v1057 = vld [vmem:[%s755 + $0x3c] sm:$0xf]
        %v1058 = vld [vmem:[%s762] sm:$0xf]
        %v1059 = vld [vmem:[%s762 + $0x4] sm:$0xf]
        %v1060 = vld [vmem:[%s762 + $0x8] sm:$0xf]
        %v1061 = vld [vmem:[%s762 + $0xc] sm:$0xf]
        %v1062 = vld [vmem:[%s762 + $0x10] sm:$0xf]
        %v1063 = vld [vmem:[%s762 + $0x14] sm:$0xf]
        %v1064 = vld [vmem:[%s762 + $0x18] sm:$0xf]
        %v1065 = vld [vmem:[%s762 + $0x1c] sm:$0xf]
        %v1066 = vld [vmem:[%s762 + $0x20] sm:$0xf]
        %v1067 = vld [vmem:[%s762 + $0x24] sm:$0xf]
        %v1068 = vld [vmem:[%s762 + $0x28] sm:$0xf]
        %v1069 = vld [vmem:[%s762 + $0x2c] sm:$0xf]
        %v1070 = vld [vmem:[%s762 + $0x30] sm:$0xf]
        %v1071 = vld [vmem:[%s762 + $0x34] sm:$0xf]
        %v1072 = vld [vmem:[%s762 + $0x38] sm:$0xf]
        %v1073 = vld [vmem:[%s762 + $0x3c] sm:$0xf]
        %v1074 = vld [vmem:[#allocation2 + $0x8] sm:$0xff]
        %v1075 = vld [vmem:[#allocation2 + $0x38] sm:$0xff]
        %v1076 = vld [vmem:[#allocation2 + $0x68] sm:$0xff]
        %v1077 = vld [vmem:[#allocation2 + $0x98] sm:$0xff]
        %v1078 = vld [vmem:[#allocation2 + $0xc8] sm:$0xff]
        %v1079 = vld [vmem:[#allocation2 + $0xf8] sm:$0xff]
        %v1080 = vld [vmem:[#allocation2 + $0x128] sm:$0xff]
        %v1081 = vld [vmem:[#allocation2 + $0x158] sm:$0xff]
        %v1082 = vld [vmem:[#allocation2 + $0x188] sm:$0xff]
        %v1083 = vld [vmem:[#allocation2 + $0x1b8] sm:$0xff]
        %v1084 = vld [vmem:[#allocation2 + $0x1e8] sm:$0xff]
        %v1085 = vld [vmem:[#allocation2 + $0x218] sm:$0xff]
        %v1086 = vld [vmem:[#allocation2 + $0x248] sm:$0xff]
        %v1087 = vld [vmem:[#allocation2 + $0x278] sm:$0xff]
        %v1088 = vld [vmem:[#allocation2 + $0x2a8] sm:$0xff]
        %v1089 = vld [vmem:[#allocation2 + $0x2d8] sm:$0xff]
        %v1090 = vunpack.c.l.bf16 %v1026
        %v1091 = vunpack.c.l.bf16 %v1027
        %v1092 = vunpack.c.l.bf16 %v1028
        %v1093 = vunpack.c.l.bf16 %v1029
        %v1094 = vunpack.c.l.bf16 %v1030
        %v1095 = vunpack.c.l.bf16 %v1031
        %v1096 = vunpack.c.l.bf16 %v1032
        %v1097 = vunpack.c.l.bf16 %v1033
        %v1098 = vunpack.c.l.bf16 %v1034
        %v1099 = vunpack.c.l.bf16 %v1035
        %v1100 = vunpack.c.l.bf16 %v1036
        %v1101 = vunpack.c.l.bf16 %v1037
        %v1102 = vunpack.c.l.bf16 %v1038
        %v1103 = vunpack.c.l.bf16 %v1039
        %v1104 = vunpack.c.l.bf16 %v1040
        %v1105 = vunpack.c.l.bf16 %v1041
        %1106 = vmatpush.msra.mxu0 %v1025
        %1107 = vmatpush.msra.mxu0 %v1024
        %1108 = vmatpush.msra.mxu0 %v1023
        %1109 = vmatpush.msra.mxu0 %v1022
        %1110 = vmatpush.msra.mxu0 %v1021
        %1111 = vmatpush.msra.mxu0 %v1020
        %1112 = vmatpush.msra.mxu0 %v1019
        %1113 = vmatpush.msra.mxu0 %v1018
        %1114 = vmatpush.msra.mxu0 %v1017
        %1115 = vmatpush.msra.mxu0 %v1016
        %1116 = vmatpush.msra.mxu0 %v1015
        %1117 = vmatpush.msra.mxu0 %v1014
        %1118 = vmatpush.msra.mxu0 %v1013
        %1119 = vmatpush.msra.mxu0 %v1012
        %1120 = vmatpush.msra.mxu0 %v1011
        %1121 = vmatpush.msra.mxu0 %v1010
        %1122 = vmatmul.f32.gmra.mxu0 %v1090
        %v1123 = vpop.f32.mrf.mxu0
        %v1124 = vadd.f32 0.0, %v1123
        %1125 = vmatmul.f32.gmra.mxu0 %v1091
        %v1126 = vpop.f32.mrf.mxu0
        %v1127 = vadd.f32 0.0, %v1126
        %1128 = vmatmul.f32.gmra.mxu0 %v1092
        %v1129 = vpop.f32.mrf.mxu0
        %v1130 = vadd.f32 0.0, %v1129
        %1131 = vmatmul.f32.gmra.mxu0 %v1093
        %v1132 = vpop.f32.mrf.mxu0
        %v1133 = vadd.f32 0.0, %v1132
        %1134 = vmatmul.f32.gmra.mxu0 %v1094
        %v1135 = vpop.f32.mrf.mxu0
        %v1136 = vadd.f32 0.0, %v1135
        %1137 = vmatmul.f32.gmra.mxu0 %v1095
        %v1138 = vpop.f32.mrf.mxu0
        %v1139 = vadd.f32 0.0, %v1138
        %1140 = vmatmul.f32.gmra.mxu0 %v1096
        %v1141 = vpop.f32.mrf.mxu0
        %v1142 = vadd.f32 0.0, %v1141
        %1143 = vmatmul.f32.gmra.mxu0 %v1097
        %v1144 = vpop.f32.mrf.mxu0
        %v1145 = vadd.f32 0.0, %v1144
        %1146 = vmatmul.f32.gmra.mxu0 %v1098
        %v1147 = vpop.f32.mrf.mxu0
        %v1148 = vadd.f32 0.0, %v1147
        %1149 = vmatmul.f32.gmra.mxu0 %v1099
        %v1150 = vpop.f32.mrf.mxu0
        %v1151 = vadd.f32 0.0, %v1150
        %1152 = vmatmul.f32.gmra.mxu0 %v1100
        %v1153 = vpop.f32.mrf.mxu0
        %v1154 = vadd.f32 0.0, %v1153
        %1155 = vmatmul.f32.gmra.mxu0 %v1101
        %v1156 = vpop.f32.mrf.mxu0
        %v1157 = vadd.f32 0.0, %v1156
        %1158 = vmatmul.f32.gmra.mxu0 %v1102
        %v1159 = vpop.f32.mrf.mxu0
        %v1160 = vadd.f32 0.0, %v1159
        %1161 = vmatmul.f32.gmra.mxu0 %v1103
        %v1162 = vpop.f32.mrf.mxu0
        %v1163 = vadd.f32 0.0, %v1162
        %1164 = vmatmul.f32.gmra.mxu0 %v1104
        %v1165 = vpop.f32.mrf.mxu0
        %v1166 = vadd.f32 0.0, %v1165
        %1167 = vmatmul.f32.gmra.mxu0 %v1105
        %v1168 = vpop.f32.mrf.mxu0
        %v1169 = vadd.f32 0.0, %v1168
        %1170 = vdwg.mxu0
        %v1171 = vadd.f32 %v1074, %v1124
        %v1172 = vadd.f32 %v1075, %v1127
        %v1173 = vadd.f32 %v1076, %v1130
        %v1174 = vadd.f32 %v1077, %v1133
        %v1175 = vadd.f32 %v1078, %v1136
        %v1176 = vadd.f32 %v1079, %v1139
        %v1177 = vadd.f32 %v1080, %v1142
        %v1178 = vadd.f32 %v1081, %v1145
        %v1179 = vadd.f32 %v1082, %v1148
        %v1180 = vadd.f32 %v1083, %v1151
        %v1181 = vadd.f32 %v1084, %v1154
        %v1182 = vadd.f32 %v1085, %v1157
        %v1183 = vadd.f32 %v1086, %v1160
        %v1184 = vadd.f32 %v1087, %v1163
        %v1185 = vadd.f32 %v1088, %v1166
        %v1186 = vadd.f32 %v1089, %v1169
        %1187 = vst [vmem:[#allocation2 + $0x8] sm:$0xff] %v1171
        %1188 = vst [vmem:[#allocation2 + $0x38] sm:$0xff] %v1172
        %1189 = vst [vmem:[#allocation2 + $0x68] sm:$0xff] %v1173
        %1190 = vst [vmem:[#allocation2 + $0x98] sm:$0xff] %v1174
        %1191 = vst [vmem:[#allocation2 + $0xc8] sm:$0xff] %v1175
        %1192 = vst [vmem:[#allocation2 + $0xf8] sm:$0xff] %v1176
        %1193 = vst [vmem:[#allocation2 + $0x128] sm:$0xff] %v1177
        %1194 = vst [vmem:[#allocation2 + $0x158] sm:$0xff] %v1178
        %1195 = vst [vmem:[#allocation2 + $0x188] sm:$0xff] %v1179
        %1196 = vst [vmem:[#allocation2 + $0x1b8] sm:$0xff] %v1180
        %1197 = vst [vmem:[#allocation2 + $0x1e8] sm:$0xff] %v1181
        %1198 = vst [vmem:[#allocation2 + $0x218] sm:$0xff] %v1182
        %1199 = vst [vmem:[#allocation2 + $0x248] sm:$0xff] %v1183
        %1200 = vst [vmem:[#allocation2 + $0x278] sm:$0xff] %v1184
        %1201 = vst [vmem:[#allocation2 + $0x2a8] sm:$0xff] %v1185
        %1202 = vst [vmem:[#allocation2 + $0x2d8] sm:$0xff] %v1186
        %v1203 = vld [vmem:[#allocation2 + $0x10] sm:$0xff]
        %v1204 = vld [vmem:[#allocation2 + $0x40] sm:$0xff]
        %v1205 = vld [vmem:[#allocation2 + $0x70] sm:$0xff]
        %v1206 = vld [vmem:[#allocation2 + $0xa0] sm:$0xff]
        %v1207 = vld [vmem:[#allocation2 + $0xd0] sm:$0xff]
        %v1208 = vld [vmem:[#allocation2 + $0x100] sm:$0xff]
        %v1209 = vld [vmem:[#allocation2 + $0x130] sm:$0xff]
        %v1210 = vld [vmem:[#allocation2 + $0x160] sm:$0xff]
        %v1211 = vld [vmem:[#allocation2 + $0x190] sm:$0xff]
        %v1212 = vld [vmem:[#allocation2 + $0x1c0] sm:$0xff]
        %v1213 = vld [vmem:[#allocation2 + $0x1f0] sm:$0xff]
        %v1214 = vld [vmem:[#allocation2 + $0x220] sm:$0xff]
        %v1215 = vld [vmem:[#allocation2 + $0x250] sm:$0xff]
        %v1216 = vld [vmem:[#allocation2 + $0x280] sm:$0xff]
        %v1217 = vld [vmem:[#allocation2 + $0x2b0] sm:$0xff]
        %v1218 = vld [vmem:[#allocation2 + $0x2e0] sm:$0xff]
        %v1219 = vunpack.c.l.bf16 %v1042
        %v1220 = vunpack.c.l.bf16 %v1043
        %v1221 = vunpack.c.l.bf16 %v1044
        %v1222 = vunpack.c.l.bf16 %v1045
        %v1223 = vunpack.c.l.bf16 %v1046
        %v1224 = vunpack.c.l.bf16 %v1047
        %v1225 = vunpack.c.l.bf16 %v1048
        %v1226 = vunpack.c.l.bf16 %v1049
        %v1227 = vunpack.c.l.bf16 %v1050
        %v1228 = vunpack.c.l.bf16 %v1051
        %v1229 = vunpack.c.l.bf16 %v1052
        %v1230 = vunpack.c.l.bf16 %v1053
        %v1231 = vunpack.c.l.bf16 %v1054
        %v1232 = vunpack.c.l.bf16 %v1055
        %v1233 = vunpack.c.l.bf16 %v1056
        %v1234 = vunpack.c.l.bf16 %v1057
        %1235 = vmatpush.msra.mxu0 %v1025
        %1236 = vmatpush.msra.mxu0 %v1024
        %1237 = vmatpush.msra.mxu0 %v1023
        %1238 = vmatpush.msra.mxu0 %v1022
        %1239 = vmatpush.msra.mxu0 %v1021
        %1240 = vmatpush.msra.mxu0 %v1020
        %1241 = vmatpush.msra.mxu0 %v1019
        %1242 = vmatpush.msra.mxu0 %v1018
        %1243 = vmatpush.msra.mxu0 %v1017
        %1244 = vmatpush.msra.mxu0 %v1016
        %1245 = vmatpush.msra.mxu0 %v1015
        %1246 = vmatpush.msra.mxu0 %v1014
        %1247 = vmatpush.msra.mxu0 %v1013
        %1248 = vmatpush.msra.mxu0 %v1012
        %1249 = vmatpush.msra.mxu0 %v1011
        %1250 = vmatpush.msra.mxu0 %v1010
        %1251 = vmatmul.f32.gmra.mxu0 %v1219
        %v1252 = vpop.f32.mrf.mxu0
        %v1253 = vadd.f32 0.0, %v1252
        %1254 = vmatmul.f32.gmra.mxu0 %v1220
        %v1255 = vpop.f32.mrf.mxu0
        %v1256 = vadd.f32 0.0, %v1255
        %1257 = vmatmul.f32.gmra.mxu0 %v1221
        %v1258 = vpop.f32.mrf.mxu0
        %v1259 = vadd.f32 0.0, %v1258
        %1260 = vmatmul.f32.gmra.mxu0 %v1222
        %v1261 = vpop.f32.mrf.mxu0
        %v1262 = vadd.f32 0.0, %v1261
        %1263 = vmatmul.f32.gmra.mxu0 %v1223
        %v1264 = vpop.f32.mrf.mxu0
        %v1265 = vadd.f32 0.0, %v1264
        %1266 = vmatmul.f32.gmra.mxu0 %v1224
        %v1267 = vpop.f32.mrf.mxu0
        %v1268 = vadd.f32 0.0, %v1267
        %1269 = vmatmul.f32.gmra.mxu0 %v1225
        %v1270 = vpop.f32.mrf.mxu0
        %v1271 = vadd.f32 0.0, %v1270
        %1272 = vmatmul.f32.gmra.mxu0 %v1226
        %v1273 = vpop.f32.mrf.mxu0
        %v1274 = vadd.f32 0.0, %v1273
        %1275 = vmatmul.f32.gmra.mxu0 %v1227
        %v1276 = vpop.f32.mrf.mxu0
        %v1277 = vadd.f32 0.0, %v1276
        %1278 = vmatmul.f32.gmra.mxu0 %v1228
        %v1279 = vpop.f32.mrf.mxu0
        %v1280 = vadd.f32 0.0, %v1279
        %1281 = vmatmul.f32.gmra.mxu0 %v1229
        %v1282 = vpop.f32.mrf.mxu0
        %v1283 = vadd.f32 0.0, %v1282
        %1284 = vmatmul.f32.gmra.mxu0 %v1230
        %v1285 = vpop.f32.mrf.mxu0
        %v1286 = vadd.f32 0.0, %v1285
        %1287 = vmatmul.f32.gmra.mxu0 %v1231
        %v1288 = vpop.f32.mrf.mxu0
        %v1289 = vadd.f32 0.0, %v1288
        %1290 = vmatmul.f32.gmra.mxu0 %v1232
        %v1291 = vpop.f32.mrf.mxu0
        %v1292 = vadd.f32 0.0, %v1291
        %1293 = vmatmul.f32.gmra.mxu0 %v1233
        %v1294 = vpop.f32.mrf.mxu0
        %v1295 = vadd.f32 0.0, %v1294
        %1296 = vmatmul.f32.gmra.mxu0 %v1234
        %v1297 = vpop.f32.mrf.mxu0
        %v1298 = vadd.f32 0.0, %v1297
        %1299 = vdwg.mxu0
        %v1300 = vadd.f32 %v1203, %v1253
        %v1301 = vadd.f32 %v1204, %v1256
        %v1302 = vadd.f32 %v1205, %v1259
        %v1303 = vadd.f32 %v1206, %v1262
        %v1304 = vadd.f32 %v1207, %v1265
        %v1305 = vadd.f32 %v1208, %v1268
        %v1306 = vadd.f32 %v1209, %v1271
        %v1307 = vadd.f32 %v1210, %v1274
        %v1308 = vadd.f32 %v1211, %v1277
        %v1309 = vadd.f32 %v1212, %v1280
        %v1310 = vadd.f32 %v1213, %v1283
        %v1311 = vadd.f32 %v1214, %v1286
        %v1312 = vadd.f32 %v1215, %v1289
        %v1313 = vadd.f32 %v1216, %v1292
        %v1314 = vadd.f32 %v1217, %v1295
        %v1315 = vadd.f32 %v1218, %v1298
        %1316 = vst [vmem:[#allocation2 + $0x10] sm:$0xff] %v1300
        %1317 = vst [vmem:[#allocation2 + $0x40] sm:$0xff] %v1301
        %1318 = vst [vmem:[#allocation2 + $0x70] sm:$0xff] %v1302
        %1319 = vst [vmem:[#allocation2 + $0xa0] sm:$0xff] %v1303
        %1320 = vst [vmem:[#allocation2 + $0xd0] sm:$0xff] %v1304
        %1321 = vst [vmem:[#allocation2 + $0x100] sm:$0xff] %v1305
        %1322 = vst [vmem:[#allocation2 + $0x130] sm:$0xff] %v1306
        %1323 = vst [vmem:[#allocation2 + $0x160] sm:$0xff] %v1307
        %1324 = vst [vmem:[#allocation2 + $0x190] sm:$0xff] %v1308
        %1325 = vst [vmem:[#allocation2 + $0x1c0] sm:$0xff] %v1309
        %1326 = vst [vmem:[#allocation2 + $0x1f0] sm:$0xff] %v1310
        %1327 = vst [vmem:[#allocation2 + $0x220] sm:$0xff] %v1311
        %1328 = vst [vmem:[#allocation2 + $0x250] sm:$0xff] %v1312
        %1329 = vst [vmem:[#allocation2 + $0x280] sm:$0xff] %v1313
        %1330 = vst [vmem:[#allocation2 + $0x2b0] sm:$0xff] %v1314
        %1331 = vst [vmem:[#allocation2 + $0x2e0] sm:$0xff] %v1315
        %v1332 = vld [vmem:[#allocation2 + $0x18] sm:$0xff]
        %v1333 = vld [vmem:[#allocation2 + $0x48] sm:$0xff]
        %v1334 = vld [vmem:[#allocation2 + $0x78] sm:$0xff]
        %v1335 = vld [vmem:[#allocation2 + $0xa8] sm:$0xff]
        %v1336 = vld [vmem:[#allocation2 + $0xd8] sm:$0xff]
        %v1337 = vld [vmem:[#allocation2 + $0x108] sm:$0xff]
        %v1338 = vld [vmem:[#allocation2 + $0x138] sm:$0xff]
        %v1339 = vld [vmem:[#allocation2 + $0x168] sm:$0xff]
        %v1340 = vld [vmem:[#allocation2 + $0x198] sm:$0xff]
        %v1341 = vld [vmem:[#allocation2 + $0x1c8] sm:$0xff]
        %v1342 = vld [vmem:[#allocation2 + $0x1f8] sm:$0xff]
        %v1343 = vld [vmem:[#allocation2 + $0x228] sm:$0xff]
        %v1344 = vld [vmem:[#allocation2 + $0x258] sm:$0xff]
        %v1345 = vld [vmem:[#allocation2 + $0x288] sm:$0xff]
        %v1346 = vld [vmem:[#allocation2 + $0x2b8] sm:$0xff]
        %v1347 = vld [vmem:[#allocation2 + $0x2e8] sm:$0xff]
        %v1348 = vunpack.c.l.bf16 %v1058
        %v1349 = vunpack.c.l.bf16 %v1059
        %v1350 = vunpack.c.l.bf16 %v1060
        %v1351 = vunpack.c.l.bf16 %v1061
        %v1352 = vunpack.c.l.bf16 %v1062
        %v1353 = vunpack.c.l.bf16 %v1063
        %v1354 = vunpack.c.l.bf16 %v1064
        %v1355 = vunpack.c.l.bf16 %v1065
        %v1356 = vunpack.c.l.bf16 %v1066
        %v1357 = vunpack.c.l.bf16 %v1067
        %v1358 = vunpack.c.l.bf16 %v1068
        %v1359 = vunpack.c.l.bf16 %v1069
        %v1360 = vunpack.c.l.bf16 %v1070
        %v1361 = vunpack.c.l.bf16 %v1071
        %v1362 = vunpack.c.l.bf16 %v1072
        %v1363 = vunpack.c.l.bf16 %v1073
        %1364 = vmatpush.msra.mxu0 %v1025
        %1365 = vmatpush.msra.mxu0 %v1024
        %1366 = vmatpush.msra.mxu0 %v1023
        %1367 = vmatpush.msra.mxu0 %v1022
        %1368 = vmatpush.msra.mxu0 %v1021
        %1369 = vmatpush.msra.mxu0 %v1020
        %1370 = vmatpush.msra.mxu0 %v1019
        %1371 = vmatpush.msra.mxu0 %v1018
        %1372 = vmatpush.msra.mxu0 %v1017
        %1373 = vmatpush.msra.mxu0 %v1016
        %1374 = vmatpush.msra.mxu0 %v1015
        %1375 = vmatpush.msra.mxu0 %v1014
        %1376 = vmatpush.msra.mxu0 %v1013
        %1377 = vmatpush.msra.mxu0 %v1012
        %1378 = vmatpush.msra.mxu0 %v1011
        %1379 = vmatpush.msra.mxu0 %v1010
        %1380 = vmatmul.f32.gmra.mxu0 %v1348
        %v1381 = vpop.f32.mrf.mxu0
        %v1382 = vadd.f32 0.0, %v1381
        %1383 = vmatmul.f32.gmra.mxu0 %v1349
        %v1384 = vpop.f32.mrf.mxu0
        %v1385 = vadd.f32 0.0, %v1384
        %1386 = vmatmul.f32.gmra.mxu0 %v1350
        %v1387 = vpop.f32.mrf.mxu0
        %v1388 = vadd.f32 0.0, %v1387
        %1389 = vmatmul.f32.gmra.mxu0 %v1351
        %v1390 = vpop.f32.mrf.mxu0
        %v1391 = vadd.f32 0.0, %v1390
        %1392 = vmatmul.f32.gmra.mxu0 %v1352
        %v1393 = vpop.f32.mrf.mxu0
        %v1394 = vadd.f32 0.0, %v1393
        %1395 = vmatmul.f32.gmra.mxu0 %v1353
        %v1396 = vpop.f32.mrf.mxu0
        %v1397 = vadd.f32 0.0, %v1396
        %1398 = vmatmul.f32.gmra.mxu0 %v1354
        %v1399 = vpop.f32.mrf.mxu0
        %v1400 = vadd.f32 0.0, %v1399
        %1401 = vmatmul.f32.gmra.mxu0 %v1355
        %v1402 = vpop.f32.mrf.mxu0
        %v1403 = vadd.f32 0.0, %v1402
        %1404 = vmatmul.f32.gmra.mxu0 %v1356
        %v1405 = vpop.f32.mrf.mxu0
        %v1406 = vadd.f32 0.0, %v1405
        %1407 = vmatmul.f32.gmra.mxu0 %v1357
        %v1408 = vpop.f32.mrf.mxu0
        %v1409 = vadd.f32 0.0, %v1408
        %1410 = vmatmul.f32.gmra.mxu0 %v1358
        %v1411 = vpop.f32.mrf.mxu0
        %v1412 = vadd.f32 0.0, %v1411
        %1413 = vmatmul.f32.gmra.mxu0 %v1359
        %v1414 = vpop.f32.mrf.mxu0
        %v1415 = vadd.f32 0.0, %v1414
        %1416 = vmatmul.f32.gmra.mxu0 %v1360
        %v1417 = vpop.f32.mrf.mxu0
        %v1418 = vadd.f32 0.0, %v1417
        %1419 = vmatmul.f32.gmra.mxu0 %v1361
        %v1420 = vpop.f32.mrf.mxu0
        %v1421 = vadd.f32 0.0, %v1420
        %1422 = vmatmul.f32.gmra.mxu0 %v1362
        %v1423 = vpop.f32.mrf.mxu0
        %v1424 = vadd.f32 0.0, %v1423
        %1425 = vmatmul.f32.gmra.mxu0 %v1363
        %v1426 = vpop.f32.mrf.mxu0
        %v1427 = vadd.f32 0.0, %v1426
        %1428 = vdwg.mxu0
        %v1429 = vadd.f32 %v1332, %v1382
        %v1430 = vadd.f32 %v1333, %v1385
        %v1431 = vadd.f32 %v1334, %v1388
        %v1432 = vadd.f32 %v1335, %v1391
        %v1433 = vadd.f32 %v1336, %v1394
        %v1434 = vadd.f32 %v1337, %v1397
        %v1435 = vadd.f32 %v1338, %v1400
        %v1436 = vadd.f32 %v1339, %v1403
        %v1437 = vadd.f32 %v1340, %v1406
        %v1438 = vadd.f32 %v1341, %v1409
        %v1439 = vadd.f32 %v1342, %v1412
        %v1440 = vadd.f32 %v1343, %v1415
        %v1441 = vadd.f32 %v1344, %v1418
        %v1442 = vadd.f32 %v1345, %v1421
        %v1443 = vadd.f32 %v1346, %v1424
        %v1444 = vadd.f32 %v1347, %v1427
        %1445 = vst [vmem:[#allocation2 + $0x18] sm:$0xff] %v1429
        %1446 = vst [vmem:[#allocation2 + $0x48] sm:$0xff] %v1430
        %1447 = vst [vmem:[#allocation2 + $0x78] sm:$0xff] %v1431
        %1448 = vst [vmem:[#allocation2 + $0xa8] sm:$0xff] %v1432
        %1449 = vst [vmem:[#allocation2 + $0xd8] sm:$0xff] %v1433
        %1450 = vst [vmem:[#allocation2 + $0x108] sm:$0xff] %v1434
        %1451 = vst [vmem:[#allocation2 + $0x138] sm:$0xff] %v1435
        %1452 = vst [vmem:[#allocation2 + $0x168] sm:$0xff] %v1436
        %1453 = vst [vmem:[#allocation2 + $0x198] sm:$0xff] %v1437
        %1454 = vst [vmem:[#allocation2 + $0x1c8] sm:$0xff] %v1438
        %1455 = vst [vmem:[#allocation2 + $0x1f8] sm:$0xff] %v1439
        %1456 = vst [vmem:[#allocation2 + $0x228] sm:$0xff] %v1440
        %1457 = vst [vmem:[#allocation2 + $0x258] sm:$0xff] %v1441
        %1458 = vst [vmem:[#allocation2 + $0x288] sm:$0xff] %v1442
        %1459 = vst [vmem:[#allocation2 + $0x2b8] sm:$0xff] %v1443
        %1460 = vst [vmem:[#allocation2 + $0x2e8] sm:$0xff] %v1444
        %v1461 = vld [vmem:[#allocation3] sm:$0xff]
        %v1462 = vld [vmem:[#allocation3 + $0x8] sm:$0xff]
        %v1463 = vld [vmem:[#allocation3 + $0x10] sm:$0xff]
        %v1464 = vld [vmem:[#allocation3 + $0x18] sm:$0xff]
        %v1465 = vld [vmem:[#allocation3 + $0x20] sm:$0xff]
        %v1466 = vld [vmem:[#allocation3 + $0x28] sm:$0xff]
        %v1467 = vld [vmem:[#allocation3 + $0x30] sm:$0xff]
        %v1468 = vld [vmem:[#allocation3 + $0x38] sm:$0xff]
        %v1469 = vld [vmem:[#allocation3 + $0x40] sm:$0xff]
        %v1470 = vld [vmem:[#allocation3 + $0x48] sm:$0xff]
        %v1471 = vld [vmem:[#allocation3 + $0x50] sm:$0xff]
        %v1472 = vld [vmem:[#allocation3 + $0x58] sm:$0xff]
        %v1473 = vld [vmem:[#allocation3 + $0x60] sm:$0xff]
        %v1474 = vld [vmem:[#allocation3 + $0x68] sm:$0xff]
        %v1475 = vld [vmem:[#allocation3 + $0x70] sm:$0xff]
        %v1476 = vld [vmem:[#allocation3 + $0x78] sm:$0xff]
        %v1477 = vld [vmem:[#allocation3 + $0x80] sm:$0xff]
        %v1478 = vld [vmem:[#allocation3 + $0x88] sm:$0xff]
        %v1479 = vld [vmem:[#allocation3 + $0x90] sm:$0xff]
        %v1480 = vld [vmem:[#allocation3 + $0x98] sm:$0xff]
        %v1481 = vld [vmem:[#allocation3 + $0xa0] sm:$0xff]
        %v1482 = vld [vmem:[#allocation3 + $0xa8] sm:$0xff]
        %v1483 = vld [vmem:[#allocation3 + $0xb0] sm:$0xff]
        %v1484 = vld [vmem:[#allocation3 + $0xb8] sm:$0xff]
        %v1485 = vld [vmem:[#allocation3 + $0xc0] sm:$0xff]
        %v1486 = vld [vmem:[#allocation3 + $0xc8] sm:$0xff]
        %v1487 = vld [vmem:[#allocation3 + $0xd0] sm:$0xff]
        %v1488 = vld [vmem:[#allocation3 + $0xd8] sm:$0xff]
        %v1489 = vld [vmem:[#allocation3 + $0xe0] sm:$0xff]
        %v1490 = vld [vmem:[#allocation3 + $0xe8] sm:$0xff]
        %v1491 = vld [vmem:[#allocation3 + $0xf0] sm:$0xff]
        %v1492 = vld [vmem:[#allocation3 + $0xf8] sm:$0xff]
        %v1493 = vld [vmem:[%s829] sm:$0xff]
        %v1494 = vld [vmem:[%s829 + $0x8] sm:$0xff]
        %v1495 = vld [vmem:[%s829 + $0x10] sm:$0xff]
        %v1496 = vld [vmem:[%s829 + $0x18] sm:$0xff]
        %v1497 = vld [vmem:[%s829 + $0x20] sm:$0xff]
        %v1498 = vld [vmem:[%s829 + $0x28] sm:$0xff]
        %v1499 = vld [vmem:[%s829 + $0x30] sm:$0xff]
        %v1500 = vld [vmem:[%s829 + $0x38] sm:$0xff]
        %v1501 = vld [vmem:[%s829 + $0x40] sm:$0xff]
        %v1502 = vld [vmem:[%s829 + $0x48] sm:$0xff]
        %v1503 = vld [vmem:[%s829 + $0x50] sm:$0xff]
        %v1504 = vld [vmem:[%s829 + $0x58] sm:$0xff]
        %v1505 = vld [vmem:[%s829 + $0x60] sm:$0xff]
        %v1506 = vld [vmem:[%s829 + $0x68] sm:$0xff]
        %v1507 = vld [vmem:[%s829 + $0x70] sm:$0xff]
        %v1508 = vld [vmem:[%s829 + $0x78] sm:$0xff]
        %v1525 = vunpack.c.l.b16 %v1042
        %v1526 = vunpack.c.l.b16 %v1043
        %v1527 = vunpack.c.l.b16 %v1044
        %v1528 = vunpack.c.l.b16 %v1045
        %v1529 = vunpack.c.l.b16 %v1046
        %v1530 = vunpack.c.l.b16 %v1047
        %v1531 = vunpack.c.l.b16 %v1048
        %v1532 = vunpack.c.l.b16 %v1049
        %v1533 = vunpack.c.l.b16 %v1050
        %v1534 = vunpack.c.l.b16 %v1051
        %v1535 = vunpack.c.l.b16 %v1052
        %v1536 = vunpack.c.l.b16 %v1053
        %v1537 = vunpack.c.l.b16 %v1054
        %v1538 = vunpack.c.l.b16 %v1055
        %v1539 = vunpack.c.l.b16 %v1056
        %v1540 = vunpack.c.l.b16 %v1057
        %v1541 = vpack.c.b16 %v1526, %v1525
        %v1542 = vpack.c.b16 %v1528, %v1527
        %v1543 = vpack.c.b16 %v1530, %v1529
        %v1544 = vpack.c.b16 %v1532, %v1531
        %v1545 = vpack.c.b16 %v1534, %v1533
        %v1546 = vpack.c.b16 %v1536, %v1535
        %v1547 = vpack.c.b16 %v1538, %v1537
        %v1548 = vpack.c.b16 %v1540, %v1539
        %v1573 = vunpack.c.l.b16 %v1493
        %v1574 = vunpack.c.h.b16 %v1493
        %v1575 = vunpack.c.l.b16 %v1494
        %v1576 = vunpack.c.h.b16 %v1494
        %v1577 = vunpack.c.l.b16 %v1495
        %v1578 = vunpack.c.h.b16 %v1495
        %v1579 = vunpack.c.l.b16 %v1496
        %v1580 = vunpack.c.h.b16 %v1496
        %v1581 = vunpack.c.l.b16 %v1497
        %v1582 = vunpack.c.h.b16 %v1497
        %v1583 = vunpack.c.l.b16 %v1498
        %v1584 = vunpack.c.h.b16 %v1498
        %v1585 = vunpack.c.l.b16 %v1499
        %v1586 = vunpack.c.h.b16 %v1499
        %v1587 = vunpack.c.l.b16 %v1500
        %v1588 = vunpack.c.h.b16 %v1500
        %v1589 = vunpack.c.l.b16 %v1501
        %v1590 = vunpack.c.h.b16 %v1501
        %v1591 = vunpack.c.l.b16 %v1502
        %v1592 = vunpack.c.h.b16 %v1502
        %v1593 = vunpack.c.l.b16 %v1503
        %v1594 = vunpack.c.h.b16 %v1503
        %v1595 = vunpack.c.l.b16 %v1504
        %v1596 = vunpack.c.h.b16 %v1504
        %v1597 = vunpack.c.l.b16 %v1505
        %v1598 = vunpack.c.h.b16 %v1505
        %v1599 = vunpack.c.l.b16 %v1506
        %v1600 = vunpack.c.h.b16 %v1506
        %v1601 = vunpack.c.l.b16 %v1507
        %v1602 = vunpack.c.h.b16 %v1507
        %v1603 = vunpack.c.l.b16 %v1508
        %v1604 = vunpack.c.h.b16 %v1508
        %v1605 = vpack.c.b16 %v1575, %v1573
        %v1606 = vpack.c.b16 %v1576, %v1574
        %v1607 = vpack.c.b16 %v1579, %v1577
        %v1608 = vpack.c.b16 %v1580, %v1578
        %v1609 = vpack.c.b16 %v1583, %v1581
        %v1610 = vpack.c.b16 %v1584, %v1582
        %v1611 = vpack.c.b16 %v1587, %v1585
        %v1612 = vpack.c.b16 %v1588, %v1586
        %v1613 = vpack.c.b16 %v1591, %v1589
        %v1614 = vpack.c.b16 %v1592, %v1590
        %v1615 = vpack.c.b16 %v1595, %v1593
        %v1616 = vpack.c.b16 %v1596, %v1594
        %v1617 = vpack.c.b16 %v1599, %v1597
        %v1618 = vpack.c.b16 %v1600, %v1598
        %v1619 = vpack.c.b16 %v1603, %v1601
        %v1620 = vpack.c.b16 %v1604, %v1602
        %1637 = vmatpush.bf16.msra.mxu0 %v1619
        %1638 = vmatpush.bf16.msra.mxu0 %v1617
        %1639 = vmatpush.bf16.msra.mxu0 %v1615
        %1640 = vmatpush.bf16.msra.mxu0 %v1613
        %1641 = vmatpush.bf16.msra.mxu0 %v1611
        %1642 = vmatpush.bf16.msra.mxu0 %v1609
        %1643 = vmatpush.bf16.msra.mxu0 %v1607
        %1644 = vmatpush.bf16.msra.mxu0 %v1605
        %1645 = vmatmul.bf16.gmra.mxu0 %v1541
        %v1646 = vpop.f32.mrf.mxu0
        %v1647 = vadd.f32 0.0, %v1646
        %v1648 = vpop.f32.mrf.mxu0
        %v1649 = vadd.f32 0.0, %v1648
        %1650 = vmatmul.bf16.gmra.mxu0 %v1542
        %v1651 = vpop.f32.mrf.mxu0
        %v1652 = vadd.f32 0.0, %v1651
        %v1653 = vpop.f32.mrf.mxu0
        %v1654 = vadd.f32 0.0, %v1653
        %1655 = vmatmul.bf16.gmra.mxu0 %v1543
        %v1656 = vpop.f32.mrf.mxu0
        %v1657 = vadd.f32 0.0, %v1656
        %v1658 = vpop.f32.mrf.mxu0
        %v1659 = vadd.f32 0.0, %v1658
        %1660 = vmatmul.bf16.gmra.mxu0 %v1544
        %v1661 = vpop.f32.mrf.mxu0
        %v1662 = vadd.f32 0.0, %v1661
        %v1663 = vpop.f32.mrf.mxu0
        %v1664 = vadd.f32 0.0, %v1663
        %1665 = vmatmul.bf16.gmra.mxu0 %v1545
        %v1666 = vpop.f32.mrf.mxu0
        %v1667 = vadd.f32 0.0, %v1666
        %v1668 = vpop.f32.mrf.mxu0
        %v1669 = vadd.f32 0.0, %v1668
        %1670 = vmatmul.bf16.gmra.mxu0 %v1546
        %v1671 = vpop.f32.mrf.mxu0
        %v1672 = vadd.f32 0.0, %v1671
        %v1673 = vpop.f32.mrf.mxu0
        %v1674 = vadd.f32 0.0, %v1673
        %1675 = vmatmul.bf16.gmra.mxu0 %v1547
        %v1676 = vpop.f32.mrf.mxu0
        %v1677 = vadd.f32 0.0, %v1676
        %v1678 = vpop.f32.mrf.mxu0
        %v1679 = vadd.f32 0.0, %v1678
        %1680 = vmatmul.bf16.gmra.mxu0 %v1548
        %v1681 = vpop.f32.mrf.mxu0
        %v1682 = vadd.f32 0.0, %v1681
        %v1683 = vpop.f32.mrf.mxu0
        %v1684 = vadd.f32 0.0, %v1683
        %1685 = vdwg.mxu0
        %1686 = vmatpush.bf16.msra.mxu0 %v1620
        %1687 = vmatpush.bf16.msra.mxu0 %v1618
        %1688 = vmatpush.bf16.msra.mxu0 %v1616
        %1689 = vmatpush.bf16.msra.mxu0 %v1614
        %1690 = vmatpush.bf16.msra.mxu0 %v1612
        %1691 = vmatpush.bf16.msra.mxu0 %v1610
        %1692 = vmatpush.bf16.msra.mxu0 %v1608
        %1693 = vmatpush.bf16.msra.mxu0 %v1606
        %1694 = vmatmul.bf16.gmra.mxu0 %v1541
        %v1695 = vpop.f32.mrf.mxu0
        %v1696 = vadd.f32 0.0, %v1695
        %v1697 = vpop.f32.mrf.mxu0
        %v1698 = vadd.f32 0.0, %v1697
        %1699 = vmatmul.bf16.gmra.mxu0 %v1542
        %v1700 = vpop.f32.mrf.mxu0
        %v1701 = vadd.f32 0.0, %v1700
        %v1702 = vpop.f32.mrf.mxu0
        %v1703 = vadd.f32 0.0, %v1702
        %1704 = vmatmul.bf16.gmra.mxu0 %v1543
        %v1705 = vpop.f32.mrf.mxu0
        %v1706 = vadd.f32 0.0, %v1705
        %v1707 = vpop.f32.mrf.mxu0
        %v1708 = vadd.f32 0.0, %v1707
        %1709 = vmatmul.bf16.gmra.mxu0 %v1544
        %v1710 = vpop.f32.mrf.mxu0
        %v1711 = vadd.f32 0.0, %v1710
        %v1712 = vpop.f32.mrf.mxu0
        %v1713 = vadd.f32 0.0, %v1712
        %1714 = vmatmul.bf16.gmra.mxu0 %v1545
        %v1715 = vpop.f32.mrf.mxu0
        %v1716 = vadd.f32 0.0, %v1715
        %v1717 = vpop.f32.mrf.mxu0
        %v1718 = vadd.f32 0.0, %v1717
        %1719 = vmatmul.bf16.gmra.mxu0 %v1546
        %v1720 = vpop.f32.mrf.mxu0
        %v1721 = vadd.f32 0.0, %v1720
        %v1722 = vpop.f32.mrf.mxu0
        %v1723 = vadd.f32 0.0, %v1722
        %1724 = vmatmul.bf16.gmra.mxu0 %v1547
        %v1725 = vpop.f32.mrf.mxu0
        %v1726 = vadd.f32 0.0, %v1725
        %v1727 = vpop.f32.mrf.mxu0
        %v1728 = vadd.f32 0.0, %v1727
        %1729 = vmatmul.bf16.gmra.mxu0 %v1548
        %v1730 = vpop.f32.mrf.mxu0
        %v1731 = vadd.f32 0.0, %v1730
        %v1732 = vpop.f32.mrf.mxu0
        %v1733 = vadd.f32 0.0, %v1732
        %1734 = vdwg.mxu0
        %v1735 = vadd.f32 %v1461, %v1647
        %v1736 = vadd.f32 %v1462, %v1696
        %v1737 = vadd.f32 %v1463, %v1649
        %v1738 = vadd.f32 %v1464, %v1698
        %v1739 = vadd.f32 %v1465, %v1652
        %v1740 = vadd.f32 %v1466, %v1701
        %v1741 = vadd.f32 %v1467, %v1654
        %v1742 = vadd.f32 %v1468, %v1703
        %v1743 = vadd.f32 %v1469, %v1657
        %v1744 = vadd.f32 %v1470, %v1706
        %v1745 = vadd.f32 %v1471, %v1659
        %v1746 = vadd.f32 %v1472, %v1708
        %v1747 = vadd.f32 %v1473, %v1662
        %v1748 = vadd.f32 %v1474, %v1711
        %v1749 = vadd.f32 %v1475, %v1664
        %v1750 = vadd.f32 %v1476, %v1713
        %v1751 = vadd.f32 %v1477, %v1667
        %v1752 = vadd.f32 %v1478, %v1716
        %v1753 = vadd.f32 %v1479, %v1669
        %v1754 = vadd.f32 %v1480, %v1718
        %v1755 = vadd.f32 %v1481, %v1672
        %v1756 = vadd.f32 %v1482, %v1721
        %v1757 = vadd.f32 %v1483, %v1674
        %v1758 = vadd.f32 %v1484, %v1723
        %v1759 = vadd.f32 %v1485, %v1677
        %v1760 = vadd.f32 %v1486, %v1726
        %v1761 = vadd.f32 %v1487, %v1679
        %v1762 = vadd.f32 %v1488, %v1728
        %v1763 = vadd.f32 %v1489, %v1682
        %v1764 = vadd.f32 %v1490, %v1731
        %v1765 = vadd.f32 %v1491, %v1684
        %v1766 = vadd.f32 %v1492, %v1733
        %1767 = vst [vmem:[#allocation3] sm:$0xff] %v1735
        %1768 = vst [vmem:[#allocation3 + $0x8] sm:$0xff] %v1736
        %1769 = vst [vmem:[#allocation3 + $0x10] sm:$0xff] %v1737
        %1770 = vst [vmem:[#allocation3 + $0x18] sm:$0xff] %v1738
        %1771 = vst [vmem:[#allocation3 + $0x20] sm:$0xff] %v1739
        %1772 = vst [vmem:[#allocation3 + $0x28] sm:$0xff] %v1740
        %1773 = vst [vmem:[#allocation3 + $0x30] sm:$0xff] %v1741
        %1774 = vst [vmem:[#allocation3 + $0x38] sm:$0xff] %v1742
        %1775 = vst [vmem:[#allocation3 + $0x40] sm:$0xff] %v1743
        %1776 = vst [vmem:[#allocation3 + $0x48] sm:$0xff] %v1744
        %1777 = vst [vmem:[#allocation3 + $0x50] sm:$0xff] %v1745
        %1778 = vst [vmem:[#allocation3 + $0x58] sm:$0xff] %v1746
        %1779 = vst [vmem:[#allocation3 + $0x60] sm:$0xff] %v1747
        %1780 = vst [vmem:[#allocation3 + $0x68] sm:$0xff] %v1748
        %1781 = vst [vmem:[#allocation3 + $0x70] sm:$0xff] %v1749
        %1782 = vst [vmem:[#allocation3 + $0x78] sm:$0xff] %v1750
        %1783 = vst [vmem:[#allocation3 + $0x80] sm:$0xff] %v1751
        %1784 = vst [vmem:[#allocation3 + $0x88] sm:$0xff] %v1752
        %1785 = vst [vmem:[#allocation3 + $0x90] sm:$0xff] %v1753
        %1786 = vst [vmem:[#allocation3 + $0x98] sm:$0xff] %v1754
        %1787 = vst [vmem:[#allocation3 + $0xa0] sm:$0xff] %v1755
        %1788 = vst [vmem:[#allocation3 + $0xa8] sm:$0xff] %v1756
        %1789 = vst [vmem:[#allocation3 + $0xb0] sm:$0xff] %v1757
        %1790 = vst [vmem:[#allocation3 + $0xb8] sm:$0xff] %v1758
        %1791 = vst [vmem:[#allocation3 + $0xc0] sm:$0xff] %v1759
        %1792 = vst [vmem:[#allocation3 + $0xc8] sm:$0xff] %v1760
        %1793 = vst [vmem:[#allocation3 + $0xd0] sm:$0xff] %v1761
        %1794 = vst [vmem:[#allocation3 + $0xd8] sm:$0xff] %v1762
        %1795 = vst [vmem:[#allocation3 + $0xe0] sm:$0xff] %v1763
        %1796 = vst [vmem:[#allocation3 + $0xe8] sm:$0xff] %v1764
        %1797 = vst [vmem:[#allocation3 + $0xf0] sm:$0xff] %v1765
        %1798 = vst [vmem:[#allocation3 + $0xf8] sm:$0xff] %v1766
        %v1799 = vld [vmem:[#allocation4] sm:$0xff]
        %v1800 = vld [vmem:[#allocation4 + $0x8] sm:$0xff]
        %v1801 = vld [vmem:[#allocation4 + $0x10] sm:$0xff]
        %v1802 = vld [vmem:[#allocation4 + $0x18] sm:$0xff]
        %v1803 = vld [vmem:[#allocation4 + $0x20] sm:$0xff]
        %v1804 = vld [vmem:[#allocation4 + $0x28] sm:$0xff]
        %v1805 = vld [vmem:[#allocation4 + $0x30] sm:$0xff]
        %v1806 = vld [vmem:[#allocation4 + $0x38] sm:$0xff]
        %v1807 = vld [vmem:[#allocation4 + $0x40] sm:$0xff]
        %v1808 = vld [vmem:[#allocation4 + $0x48] sm:$0xff]
        %v1809 = vld [vmem:[#allocation4 + $0x50] sm:$0xff]
        %v1810 = vld [vmem:[#allocation4 + $0x58] sm:$0xff]
        %v1811 = vld [vmem:[#allocation4 + $0x60] sm:$0xff]
        %v1812 = vld [vmem:[#allocation4 + $0x68] sm:$0xff]
        %v1813 = vld [vmem:[#allocation4 + $0x70] sm:$0xff]
        %v1814 = vld [vmem:[#allocation4 + $0x78] sm:$0xff]
        %v1815 = vld [vmem:[#allocation4 + $0x80] sm:$0xff]
        %v1816 = vld [vmem:[#allocation4 + $0x88] sm:$0xff]
        %v1817 = vld [vmem:[#allocation4 + $0x90] sm:$0xff]
        %v1818 = vld [vmem:[#allocation4 + $0x98] sm:$0xff]
        %v1819 = vld [vmem:[#allocation4 + $0xa0] sm:$0xff]
        %v1820 = vld [vmem:[#allocation4 + $0xa8] sm:$0xff]
        %v1821 = vld [vmem:[#allocation4 + $0xb0] sm:$0xff]
        %v1822 = vld [vmem:[#allocation4 + $0xb8] sm:$0xff]
        %v1823 = vld [vmem:[#allocation4 + $0xc0] sm:$0xff]
        %v1824 = vld [vmem:[#allocation4 + $0xc8] sm:$0xff]
        %v1825 = vld [vmem:[#allocation4 + $0xd0] sm:$0xff]
        %v1826 = vld [vmem:[#allocation4 + $0xd8] sm:$0xff]
        %v1827 = vld [vmem:[#allocation4 + $0xe0] sm:$0xff]
        %v1828 = vld [vmem:[#allocation4 + $0xe8] sm:$0xff]
        %v1829 = vld [vmem:[#allocation4 + $0xf0] sm:$0xff]
        %v1830 = vld [vmem:[#allocation4 + $0xf8] sm:$0xff]
        %v1831 = vld [vmem:[%s836] sm:$0xff]
        %v1832 = vld [vmem:[%s836 + $0x8] sm:$0xff]
        %v1833 = vld [vmem:[%s836 + $0x10] sm:$0xff]
        %v1834 = vld [vmem:[%s836 + $0x18] sm:$0xff]
        %v1835 = vld [vmem:[%s836 + $0x20] sm:$0xff]
        %v1836 = vld [vmem:[%s836 + $0x28] sm:$0xff]
        %v1837 = vld [vmem:[%s836 + $0x30] sm:$0xff]
        %v1838 = vld [vmem:[%s836 + $0x38] sm:$0xff]
        %v1839 = vld [vmem:[%s836 + $0x40] sm:$0xff]
        %v1840 = vld [vmem:[%s836 + $0x48] sm:$0xff]
        %v1841 = vld [vmem:[%s836 + $0x50] sm:$0xff]
        %v1842 = vld [vmem:[%s836 + $0x58] sm:$0xff]
        %v1843 = vld [vmem:[%s836 + $0x60] sm:$0xff]
        %v1844 = vld [vmem:[%s836 + $0x68] sm:$0xff]
        %v1845 = vld [vmem:[%s836 + $0x70] sm:$0xff]
        %v1846 = vld [vmem:[%s836 + $0x78] sm:$0xff]
        %v1863 = vunpack.c.l.b16 %v1058
        %v1864 = vunpack.c.l.b16 %v1059
        %v1865 = vunpack.c.l.b16 %v1060
        %v1866 = vunpack.c.l.b16 %v1061
        %v1867 = vunpack.c.l.b16 %v1062
        %v1868 = vunpack.c.l.b16 %v1063
        %v1869 = vunpack.c.l.b16 %v1064
        %v1870 = vunpack.c.l.b16 %v1065
        %v1871 = vunpack.c.l.b16 %v1066
        %v1872 = vunpack.c.l.b16 %v1067
        %v1873 = vunpack.c.l.b16 %v1068
        %v1874 = vunpack.c.l.b16 %v1069
        %v1875 = vunpack.c.l.b16 %v1070
        %v1876 = vunpack.c.l.b16 %v1071
        %v1877 = vunpack.c.l.b16 %v1072
        %v1878 = vunpack.c.l.b16 %v1073
        %v1879 = vpack.c.b16 %v1864, %v1863
        %v1880 = vpack.c.b16 %v1866, %v1865
        %v1881 = vpack.c.b16 %v1868, %v1867
        %v1882 = vpack.c.b16 %v1870, %v1869
        %v1883 = vpack.c.b16 %v1872, %v1871
        %v1884 = vpack.c.b16 %v1874, %v1873
        %v1885 = vpack.c.b16 %v1876, %v1875
        %v1886 = vpack.c.b16 %v1878, %v1877
        %v1911 = vunpack.c.l.b16 %v1831
        %v1912 = vunpack.c.h.b16 %v1831
        %v1913 = vunpack.c.l.b16 %v1832
        %v1914 = vunpack.c.h.b16 %v1832
        %v1915 = vunpack.c.l.b16 %v1833
        %v1916 = vunpack.c.h.b16 %v1833
        %v1917 = vunpack.c.l.b16 %v1834
        %v1918 = vunpack.c.h.b16 %v1834
        %v1919 = vunpack.c.l.b16 %v1835
        %v1920 = vunpack.c.h.b16 %v1835
        %v1921 = vunpack.c.l.b16 %v1836
        %v1922 = vunpack.c.h.b16 %v1836
        %v1923 = vunpack.c.l.b16 %v1837
        %v1924 = vunpack.c.h.b16 %v1837
        %v1925 = vunpack.c.l.b16 %v1838
        %v1926 = vunpack.c.h.b16 %v1838
        %v1927 = vunpack.c.l.b16 %v1839
        %v1928 = vunpack.c.h.b16 %v1839
        %v1929 = vunpack.c.l.b16 %v1840
        %v1930 = vunpack.c.h.b16 %v1840
        %v1931 = vunpack.c.l.b16 %v1841
        %v1932 = vunpack.c.h.b16 %v1841
        %v1933 = vunpack.c.l.b16 %v1842
        %v1934 = vunpack.c.h.b16 %v1842
        %v1935 = vunpack.c.l.b16 %v1843
        %v1936 = vunpack.c.h.b16 %v1843
        %v1937 = vunpack.c.l.b16 %v1844
        %v1938 = vunpack.c.h.b16 %v1844
        %v1939 = vunpack.c.l.b16 %v1845
        %v1940 = vunpack.c.h.b16 %v1845
        %v1941 = vunpack.c.l.b16 %v1846
        %v1942 = vunpack.c.h.b16 %v1846
        %v1943 = vpack.c.b16 %v1913, %v1911
        %v1944 = vpack.c.b16 %v1914, %v1912
        %v1945 = vpack.c.b16 %v1917, %v1915
        %v1946 = vpack.c.b16 %v1918, %v1916
        %v1947 = vpack.c.b16 %v1921, %v1919
        %v1948 = vpack.c.b16 %v1922, %v1920
        %v1949 = vpack.c.b16 %v1925, %v1923
        %v1950 = vpack.c.b16 %v1926, %v1924
        %v1951 = vpack.c.b16 %v1929, %v1927
        %v1952 = vpack.c.b16 %v1930, %v1928
        %v1953 = vpack.c.b16 %v1933, %v1931
        %v1954 = vpack.c.b16 %v1934, %v1932
        %v1955 = vpack.c.b16 %v1937, %v1935
        %v1956 = vpack.c.b16 %v1938, %v1936
        %v1957 = vpack.c.b16 %v1941, %v1939
        %v1958 = vpack.c.b16 %v1942, %v1940
        %1975 = vmatpush.bf16.msra.mxu0 %v1957
        %1976 = vmatpush.bf16.msra.mxu0 %v1955
        %1977 = vmatpush.bf16.msra.mxu0 %v1953
        %1978 = vmatpush.bf16.msra.mxu0 %v1951
        %1979 = vmatpush.bf16.msra.mxu0 %v1949
        %1980 = vmatpush.bf16.msra.mxu0 %v1947
        %1981 = vmatpush.bf16.msra.mxu0 %v1945
        %1982 = vmatpush.bf16.msra.mxu0 %v1943
        %1983 = vmatmul.bf16.gmra.mxu0 %v1879
        %v1984 = vpop.f32.mrf.mxu0
        %v1985 = vadd.f32 0.0, %v1984
        %v1986 = vpop.f32.mrf.mxu0
        %v1987 = vadd.f32 0.0, %v1986
        %1988 = vmatmul.bf16.gmra.mxu0 %v1880
        %v1989 = vpop.f32.mrf.mxu0
        %v1990 = vadd.f32 0.0, %v1989
        %v1991 = vpop.f32.mrf.mxu0
        %v1992 = vadd.f32 0.0, %v1991
        %1993 = vmatmul.bf16.gmra.mxu0 %v1881
        %v1994 = vpop.f32.mrf.mxu0
        %v1995 = vadd.f32 0.0, %v1994
        %v1996 = vpop.f32.mrf.mxu0
        %v1997 = vadd.f32 0.0, %v1996
        %1998 = vmatmul.bf16.gmra.mxu0 %v1882
        %v1999 = vpop.f32.mrf.mxu0
        %v2000 = vadd.f32 0.0, %v1999
        %v2001 = vpop.f32.mrf.mxu0
        %v2002 = vadd.f32 0.0, %v2001
        %2003 = vmatmul.bf16.gmra.mxu0 %v1883
        %v2004 = vpop.f32.mrf.mxu0
        %v2005 = vadd.f32 0.0, %v2004
        %v2006 = vpop.f32.mrf.mxu0
        %v2007 = vadd.f32 0.0, %v2006
        %2008 = vmatmul.bf16.gmra.mxu0 %v1884
        %v2009 = vpop.f32.mrf.mxu0
        %v2010 = vadd.f32 0.0, %v2009
        %v2011 = vpop.f32.mrf.mxu0
        %v2012 = vadd.f32 0.0, %v2011
        %2013 = vmatmul.bf16.gmra.mxu0 %v1885
        %v2014 = vpop.f32.mrf.mxu0
        %v2015 = vadd.f32 0.0, %v2014
        %v2016 = vpop.f32.mrf.mxu0
        %v2017 = vadd.f32 0.0, %v2016
        %2018 = vmatmul.bf16.gmra.mxu0 %v1886
        %v2019 = vpop.f32.mrf.mxu0
        %v2020 = vadd.f32 0.0, %v2019
        %v2021 = vpop.f32.mrf.mxu0
        %v2022 = vadd.f32 0.0, %v2021
        %2023 = vdwg.mxu0
        %2024 = vmatpush.bf16.msra.mxu0 %v1958
        %2025 = vmatpush.bf16.msra.mxu0 %v1956
        %2026 = vmatpush.bf16.msra.mxu0 %v1954
        %2027 = vmatpush.bf16.msra.mxu0 %v1952
        %2028 = vmatpush.bf16.msra.mxu0 %v1950
        %2029 = vmatpush.bf16.msra.mxu0 %v1948
        %2030 = vmatpush.bf16.msra.mxu0 %v1946
        %2031 = vmatpush.bf16.msra.mxu0 %v1944
        %2032 = vmatmul.bf16.gmra.mxu0 %v1879
        %v2033 = vpop.f32.mrf.mxu0
        %v2034 = vadd.f32 0.0, %v2033
        %v2035 = vpop.f32.mrf.mxu0
        %v2036 = vadd.f32 0.0, %v2035
        %2037 = vmatmul.bf16.gmra.mxu0 %v1880
        %v2038 = vpop.f32.mrf.mxu0
        %v2039 = vadd.f32 0.0, %v2038
        %v2040 = vpop.f32.mrf.mxu0
        %v2041 = vadd.f32 0.0, %v2040
        %2042 = vmatmul.bf16.gmra.mxu0 %v1881
        %v2043 = vpop.f32.mrf.mxu0
        %v2044 = vadd.f32 0.0, %v2043
        %v2045 = vpop.f32.mrf.mxu0
        %v2046 = vadd.f32 0.0, %v2045
        %2047 = vmatmul.bf16.gmra.mxu0 %v1882
        %v2048 = vpop.f32.mrf.mxu0
        %v2049 = vadd.f32 0.0, %v2048
        %v2050 = vpop.f32.mrf.mxu0
        %v2051 = vadd.f32 0.0, %v2050
        %2052 = vmatmul.bf16.gmra.mxu0 %v1883
        %v2053 = vpop.f32.mrf.mxu0
        %v2054 = vadd.f32 0.0, %v2053
        %v2055 = vpop.f32.mrf.mxu0
        %v2056 = vadd.f32 0.0, %v2055
        %2057 = vmatmul.bf16.gmra.mxu0 %v1884
        %v2058 = vpop.f32.mrf.mxu0
        %v2059 = vadd.f32 0.0, %v2058
        %v2060 = vpop.f32.mrf.mxu0
        %v2061 = vadd.f32 0.0, %v2060
        %2062 = vmatmul.bf16.gmra.mxu0 %v1885
        %v2063 = vpop.f32.mrf.mxu0
        %v2064 = vadd.f32 0.0, %v2063
        %v2065 = vpop.f32.mrf.mxu0
        %v2066 = vadd.f32 0.0, %v2065
        %2067 = vmatmul.bf16.gmra.mxu0 %v1886
        %v2068 = vpop.f32.mrf.mxu0
        %v2069 = vadd.f32 0.0, %v2068
        %v2070 = vpop.f32.mrf.mxu0
        %v2071 = vadd.f32 0.0, %v2070
        %2072 = vdwg.mxu0
        %v2073 = vadd.f32 %v1799, %v1985
        %v2074 = vadd.f32 %v1800, %v2034
        %v2075 = vadd.f32 %v1801, %v1987
        %v2076 = vadd.f32 %v1802, %v2036
        %v2077 = vadd.f32 %v1803, %v1990
        %v2078 = vadd.f32 %v1804, %v2039
        %v2079 = vadd.f32 %v1805, %v1992
        %v2080 = vadd.f32 %v1806, %v2041
        %v2081 = vadd.f32 %v1807, %v1995
        %v2082 = vadd.f32 %v1808, %v2044
        %v2083 = vadd.f32 %v1809, %v1997
        %v2084 = vadd.f32 %v1810, %v2046
        %v2085 = vadd.f32 %v1811, %v2000
        %v2086 = vadd.f32 %v1812, %v2049
        %v2087 = vadd.f32 %v1813, %v2002
        %v2088 = vadd.f32 %v1814, %v2051
        %v2089 = vadd.f32 %v1815, %v2005
        %v2090 = vadd.f32 %v1816, %v2054
        %v2091 = vadd.f32 %v1817, %v2007
        %v2092 = vadd.f32 %v1818, %v2056
        %v2093 = vadd.f32 %v1819, %v2010
        %v2094 = vadd.f32 %v1820, %v2059
        %v2095 = vadd.f32 %v1821, %v2012
        %v2096 = vadd.f32 %v1822, %v2061
        %v2097 = vadd.f32 %v1823, %v2015
        %v2098 = vadd.f32 %v1824, %v2064
        %v2099 = vadd.f32 %v1825, %v2017
        %v2100 = vadd.f32 %v1826, %v2066
        %v2101 = vadd.f32 %v1827, %v2020
        %v2102 = vadd.f32 %v1828, %v2069
        %v2103 = vadd.f32 %v1829, %v2022
        %v2104 = vadd.f32 %v1830, %v2071
        %2105 = vst [vmem:[#allocation4] sm:$0xff] %v2073
        %2106 = vst [vmem:[#allocation4 + $0x8] sm:$0xff] %v2074
        %2107 = vst [vmem:[#allocation4 + $0x10] sm:$0xff] %v2075
        %2108 = vst [vmem:[#allocation4 + $0x18] sm:$0xff] %v2076
        %2109 = vst [vmem:[#allocation4 + $0x20] sm:$0xff] %v2077
        %2110 = vst [vmem:[#allocation4 + $0x28] sm:$0xff] %v2078
        %2111 = vst [vmem:[#allocation4 + $0x30] sm:$0xff] %v2079
        %2112 = vst [vmem:[#allocation4 + $0x38] sm:$0xff] %v2080
        %2113 = vst [vmem:[#allocation4 + $0x40] sm:$0xff] %v2081
        %2114 = vst [vmem:[#allocation4 + $0x48] sm:$0xff] %v2082
        %2115 = vst [vmem:[#allocation4 + $0x50] sm:$0xff] %v2083
        %2116 = vst [vmem:[#allocation4 + $0x58] sm:$0xff] %v2084
        %2117 = vst [vmem:[#allocation4 + $0x60] sm:$0xff] %v2085
        %2118 = vst [vmem:[#allocation4 + $0x68] sm:$0xff] %v2086
        %2119 = vst [vmem:[#allocation4 + $0x70] sm:$0xff] %v2087
        %2120 = vst [vmem:[#allocation4 + $0x78] sm:$0xff] %v2088
        %2121 = vst [vmem:[#allocation4 + $0x80] sm:$0xff] %v2089
        %2122 = vst [vmem:[#allocation4 + $0x88] sm:$0xff] %v2090
        %2123 = vst [vmem:[#allocation4 + $0x90] sm:$0xff] %v2091
        %2124 = vst [vmem:[#allocation4 + $0x98] sm:$0xff] %v2092
        %2125 = vst [vmem:[#allocation4 + $0xa0] sm:$0xff] %v2093
        %2126 = vst [vmem:[#allocation4 + $0xa8] sm:$0xff] %v2094
        %2127 = vst [vmem:[#allocation4 + $0xb0] sm:$0xff] %v2095
        %2128 = vst [vmem:[#allocation4 + $0xb8] sm:$0xff] %v2096
        %2129 = vst [vmem:[#allocation4 + $0xc0] sm:$0xff] %v2097
        %2130 = vst [vmem:[#allocation4 + $0xc8] sm:$0xff] %v2098
        %2131 = vst [vmem:[#allocation4 + $0xd0] sm:$0xff] %v2099
        %2132 = vst [vmem:[#allocation4 + $0xd8] sm:$0xff] %v2100
        %2133 = vst [vmem:[#allocation4 + $0xe0] sm:$0xff] %v2101
        %2134 = vst [vmem:[#allocation4 + $0xe8] sm:$0xff] %v2102
        %2135 = vst [vmem:[#allocation4 + $0xf0] sm:$0xff] %v2103
        %2136 = vst [vmem:[#allocation4 + $0xf8] sm:$0xff] %v2104
        %p2137 = scmp.eq.s32.totalorder %s28, 1
        // Predicated region
        $region196: #{gcn_block.1} parent=178 // pred_check
          %p2138 = pneg %p2137
        $region197: #{gcn_block.1} parent=178 // pred_check_branch
          %2140 = sbr.rel (%p2138) target = $region199
        $region198: #{gcn_block.1} parent=178 // pred_region
          %v2141 = vld [vmem:[%s0] sm:$0xff]
          %v2142 = vld [vmem:[%s0 + $0x8] sm:$0xff]
          %v2143 = vld [vmem:[%s0 + $0x10] sm:$0xff]
          %v2144 = vld [vmem:[%s0 + $0x18] sm:$0xff]
          %v2145 = vld [vmem:[%s0 + $0x20] sm:$0xff]
          %v2146 = vld [vmem:[%s0 + $0x28] sm:$0xff]
          %v2147 = vld [vmem:[%s0 + $0x30] sm:$0xff]
          %v2148 = vld [vmem:[%s0 + $0x38] sm:$0xff]
          %v2149 = vld [vmem:[%s0 + $0x40] sm:$0xff]
          %v2150 = vld [vmem:[%s0 + $0x48] sm:$0xff]
          %v2151 = vld [vmem:[%s0 + $0x50] sm:$0xff]
          %v2152 = vld [vmem:[%s0 + $0x58] sm:$0xff]
          %v2153 = vld [vmem:[%s0 + $0x60] sm:$0xff]
          %v2154 = vld [vmem:[%s0 + $0x68] sm:$0xff]
          %v2155 = vld [vmem:[%s0 + $0x70] sm:$0xff]
          %v2156 = vld [vmem:[%s0 + $0x78] sm:$0xff]
          %v2157 = vld [vmem:[%s0 + $0x80] sm:$0xff]
          %v2158 = vld [vmem:[%s0 + $0x88] sm:$0xff]
          %v2159 = vld [vmem:[%s0 + $0x90] sm:$0xff]
          %v2160 = vld [vmem:[%s0 + $0x98] sm:$0xff]
          %v2161 = vld [vmem:[%s0 + $0xa0] sm:$0xff]
          %v2162 = vld [vmem:[%s0 + $0xa8] sm:$0xff]
          %v2163 = vld [vmem:[%s0 + $0xb0] sm:$0xff]
          %v2164 = vld [vmem:[%s0 + $0xb8] sm:$0xff]
          %v2165 = vld [vmem:[%s0 + $0xc0] sm:$0xff]
          %v2166 = vld [vmem:[%s0 + $0xc8] sm:$0xff]
          %v2167 = vld [vmem:[%s0 + $0xd0] sm:$0xff]
          %v2168 = vld [vmem:[%s0 + $0xd8] sm:$0xff]
          %v2169 = vld [vmem:[%s0 + $0xe0] sm:$0xff]
          %v2170 = vld [vmem:[%s0 + $0xe8] sm:$0xff]
          %v2171 = vld [vmem:[%s0 + $0xf0] sm:$0xff]
          %v2172 = vld [vmem:[%s0 + $0xf8] sm:$0xff]
          %s2173 = smul.u32 %s27, 128
          %s2174 = scalar_lea.vmem %s0, %s2173
          %v2175 = vld [vmem:[%s2174] sm:$0xff]
          %v2176 = vld [vmem:[%s2174 + $0x8] sm:$0xff]
          %v2177 = vld [vmem:[%s2174 + $0x10] sm:$0xff]
          %v2178 = vld [vmem:[%s2174 + $0x18] sm:$0xff]
          %v2179 = vld [vmem:[%s2174 + $0x20] sm:$0xff]
          %v2180 = vld [vmem:[%s2174 + $0x28] sm:$0xff]
          %v2181 = vld [vmem:[%s2174 + $0x30] sm:$0xff]
          %v2182 = vld [vmem:[%s2174 + $0x38] sm:$0xff]
          %v2183 = vld [vmem:[%s2174 + $0x40] sm:$0xff]
          %v2184 = vld [vmem:[%s2174 + $0x48] sm:$0xff]
          %v2185 = vld [vmem:[%s2174 + $0x50] sm:$0xff]
          %v2186 = vld [vmem:[%s2174 + $0x58] sm:$0xff]
          %v2187 = vld [vmem:[%s2174 + $0x60] sm:$0xff]
          %v2188 = vld [vmem:[%s2174 + $0x68] sm:$0xff]
          %v2189 = vld [vmem:[%s2174 + $0x70] sm:$0xff]
          %v2190 = vld [vmem:[%s2174 + $0x78] sm:$0xff]
          %v2191 = vld [vmem:[#allocation3] sm:$0xff]
          %v2192 = vld [vmem:[#allocation3 + $0x8] sm:$0xff]
          %v2193 = vld [vmem:[#allocation3 + $0x10] sm:$0xff]
          %v2194 = vld [vmem:[#allocation3 + $0x18] sm:$0xff]
          %v2195 = vld [vmem:[#allocation3 + $0x20] sm:$0xff]
          %v2196 = vld [vmem:[#allocation3 + $0x28] sm:$0xff]
          %v2197 = vld [vmem:[#allocation3 + $0x30] sm:$0xff]
          %v2198 = vld [vmem:[#allocation3 + $0x38] sm:$0xff]
          %v2199 = vld [vmem:[#allocation3 + $0x40] sm:$0xff]
          %v2200 = vld [vmem:[#allocation3 + $0x48] sm:$0xff]
          %v2201 = vld [vmem:[#allocation3 + $0x50] sm:$0xff]
          %v2202 = vld [vmem:[#allocation3 + $0x58] sm:$0xff]
          %v2203 = vld [vmem:[#allocation3 + $0x60] sm:$0xff]
          %v2204 = vld [vmem:[#allocation3 + $0x68] sm:$0xff]
          %v2205 = vld [vmem:[#allocation3 + $0x70] sm:$0xff]
          %v2206 = vld [vmem:[#allocation3 + $0x78] sm:$0xff]
          %v2207 = vld [vmem:[#allocation3 + $0x80] sm:$0xff]
          %v2208 = vld [vmem:[#allocation3 + $0x88] sm:$0xff]
          %v2209 = vld [vmem:[#allocation3 + $0x90] sm:$0xff]
          %v2210 = vld [vmem:[#allocation3 + $0x98] sm:$0xff]
          %v2211 = vld [vmem:[#allocation3 + $0xa0] sm:$0xff]
          %v2212 = vld [vmem:[#allocation3 + $0xa8] sm:$0xff]
          %v2213 = vld [vmem:[#allocation3 + $0xb0] sm:$0xff]
          %v2214 = vld [vmem:[#allocation3 + $0xb8] sm:$0xff]
          %v2215 = vld [vmem:[#allocation3 + $0xc0] sm:$0xff]
          %v2216 = vld [vmem:[#allocation3 + $0xc8] sm:$0xff]
          %v2217 = vld [vmem:[#allocation3 + $0xd0] sm:$0xff]
          %v2218 = vld [vmem:[#allocation3 + $0xd8] sm:$0xff]
          %v2219 = vld [vmem:[#allocation3 + $0xe0] sm:$0xff]
          %v2220 = vld [vmem:[#allocation3 + $0xe8] sm:$0xff]
          %v2221 = vld [vmem:[#allocation3 + $0xf0] sm:$0xff]
          %v2222 = vld [vmem:[#allocation3 + $0xf8] sm:$0xff]
          %v2223 = vmin.f32 %v2191, 1.0
          %v2224 = vmin.f32 %v2192, 1.0
          %v2225 = vmin.f32 %v2193, 1.0
          %v2226 = vmin.f32 %v2194, 1.0
          %v2227 = vmin.f32 %v2195, 1.0
          %v2228 = vmin.f32 %v2196, 1.0
          %v2229 = vmin.f32 %v2197, 1.0
          %v2230 = vmin.f32 %v2198, 1.0
          %v2231 = vmin.f32 %v2199, 1.0
          %v2232 = vmin.f32 %v2200, 1.0
          %v2233 = vmin.f32 %v2201, 1.0
          %v2234 = vmin.f32 %v2202, 1.0
          %v2235 = vmin.f32 %v2203, 1.0
          %v2236 = vmin.f32 %v2204, 1.0
          %v2237 = vmin.f32 %v2205, 1.0
          %v2238 = vmin.f32 %v2206, 1.0
          %v2239 = vmin.f32 %v2207, 1.0
          %v2240 = vmin.f32 %v2208, 1.0
          %v2241 = vmin.f32 %v2209, 1.0
          %v2242 = vmin.f32 %v2210, 1.0
          %v2243 = vmin.f32 %v2211, 1.0
          %v2244 = vmin.f32 %v2212, 1.0
          %v2245 = vmin.f32 %v2213, 1.0
          %v2246 = vmin.f32 %v2214, 1.0
          %v2247 = vmin.f32 %v2215, 1.0
          %v2248 = vmin.f32 %v2216, 1.0
          %v2249 = vmin.f32 %v2217, 1.0
          %v2250 = vmin.f32 %v2218, 1.0
          %v2251 = vmin.f32 %v2219, 1.0
          %v2252 = vmin.f32 %v2220, 1.0
          %v2253 = vmin.f32 %v2221, 1.0
          %v2254 = vmin.f32 %v2222, 1.0
          %v2255 = vld [vmem:[#allocation4] sm:$0xff]
          %v2256 = vld [vmem:[#allocation4 + $0x8] sm:$0xff]
          %v2257 = vld [vmem:[#allocation4 + $0x10] sm:$0xff]
          %v2258 = vld [vmem:[#allocation4 + $0x18] sm:$0xff]
          %v2259 = vld [vmem:[#allocation4 + $0x20] sm:$0xff]
          %v2260 = vld [vmem:[#allocation4 + $0x28] sm:$0xff]
          %v2261 = vld [vmem:[#allocation4 + $0x30] sm:$0xff]
          %v2262 = vld [vmem:[#allocation4 + $0x38] sm:$0xff]
          %v2263 = vld [vmem:[#allocation4 + $0x40] sm:$0xff]
          %v2264 = vld [vmem:[#allocation4 + $0x48] sm:$0xff]
          %v2265 = vld [vmem:[#allocation4 + $0x50] sm:$0xff]
          %v2266 = vld [vmem:[#allocation4 + $0x58] sm:$0xff]
          %v2267 = vld [vmem:[#allocation4 + $0x60] sm:$0xff]
          %v2268 = vld [vmem:[#allocation4 + $0x68] sm:$0xff]
          %v2269 = vld [vmem:[#allocation4 + $0x70] sm:$0xff]
          %v2270 = vld [vmem:[#allocation4 + $0x78] sm:$0xff]
          %v2271 = vld [vmem:[#allocation4 + $0x80] sm:$0xff]
          %v2272 = vld [vmem:[#allocation4 + $0x88] sm:$0xff]
          %v2273 = vld [vmem:[#allocation4 + $0x90] sm:$0xff]
          %v2274 = vld [vmem:[#allocation4 + $0x98] sm:$0xff]
          %v2275 = vld [vmem:[#allocation4 + $0xa0] sm:$0xff]
          %v2276 = vld [vmem:[#allocation4 + $0xa8] sm:$0xff]
          %v2277 = vld [vmem:[#allocation4 + $0xb0] sm:$0xff]
          %v2278 = vld [vmem:[#allocation4 + $0xb8] sm:$0xff]
          %v2279 = vld [vmem:[#allocation4 + $0xc0] sm:$0xff]
          %v2280 = vld [vmem:[#allocation4 + $0xc8] sm:$0xff]
          %v2281 = vld [vmem:[#allocation4 + $0xd0] sm:$0xff]
          %v2282 = vld [vmem:[#allocation4 + $0xd8] sm:$0xff]
          %v2283 = vld [vmem:[#allocation4 + $0xe0] sm:$0xff]
          %v2284 = vld [vmem:[#allocation4 + $0xe8] sm:$0xff]
          %v2285 = vld [vmem:[#allocation4 + $0xf0] sm:$0xff]
          %v2286 = vld [vmem:[#allocation4 + $0xf8] sm:$0xff]
          %v2287 = vmin.f32 %v2255, 1.0
          %v2288 = vmin.f32 %v2256, 1.0
          %v2289 = vmin.f32 %v2257, 1.0
          %v2290 = vmin.f32 %v2258, 1.0
          %v2291 = vmin.f32 %v2259, 1.0
          %v2292 = vmin.f32 %v2260, 1.0
          %v2293 = vmin.f32 %v2261, 1.0
          %v2294 = vmin.f32 %v2262, 1.0
          %v2295 = vmin.f32 %v2263, 1.0
          %v2296 = vmin.f32 %v2264, 1.0
          %v2297 = vmin.f32 %v2265, 1.0
          %v2298 = vmin.f32 %v2266, 1.0
          %v2299 = vmin.f32 %v2267, 1.0
          %v2300 = vmin.f32 %v2268, 1.0
          %v2301 = vmin.f32 %v2269, 1.0
          %v2302 = vmin.f32 %v2270, 1.0
          %v2303 = vmin.f32 %v2271, 1.0
          %v2304 = vmin.f32 %v2272, 1.0
          %v2305 = vmin.f32 %v2273, 1.0
          %v2306 = vmin.f32 %v2274, 1.0
          %v2307 = vmin.f32 %v2275, 1.0
          %v2308 = vmin.f32 %v2276, 1.0
          %v2309 = vmin.f32 %v2277, 1.0
          %v2310 = vmin.f32 %v2278, 1.0
          %v2311 = vmin.f32 %v2279, 1.0
          %v2312 = vmin.f32 %v2280, 1.0
          %v2313 = vmin.f32 %v2281, 1.0
          %v2314 = vmin.f32 %v2282, 1.0
          %v2315 = vmin.f32 %v2283, 1.0
          %v2316 = vmin.f32 %v2284, 1.0
          %v2317 = vmin.f32 %v2285, 1.0
          %v2318 = vmin.f32 %v2286, 1.0
          %2319 = vst [vmem:[#allocation2] sm:$0xff] %v2175
          %2320 = vst [vmem:[#allocation2 + $0x30] sm:$0xff] %v2176
          %2321 = vst [vmem:[#allocation2 + $0x60] sm:$0xff] %v2177
          %2322 = vst [vmem:[#allocation2 + $0x90] sm:$0xff] %v2178
          %2323 = vst [vmem:[#allocation2 + $0xc0] sm:$0xff] %v2179
          %2324 = vst [vmem:[#allocation2 + $0xf0] sm:$0xff] %v2180
          %2325 = vst [vmem:[#allocation2 + $0x120] sm:$0xff] %v2181
          %2326 = vst [vmem:[#allocation2 + $0x150] sm:$0xff] %v2182
          %2327 = vst [vmem:[#allocation2 + $0x180] sm:$0xff] %v2183
          %2328 = vst [vmem:[#allocation2 + $0x1b0] sm:$0xff] %v2184
          %2329 = vst [vmem:[#allocation2 + $0x1e0] sm:$0xff] %v2185
          %2330 = vst [vmem:[#allocation2 + $0x210] sm:$0xff] %v2186
          %2331 = vst [vmem:[#allocation2 + $0x240] sm:$0xff] %v2187
          %2332 = vst [vmem:[#allocation2 + $0x270] sm:$0xff] %v2188
          %2333 = vst [vmem:[#allocation2 + $0x2a0] sm:$0xff] %v2189
          %2334 = vst [vmem:[#allocation2 + $0x2d0] sm:$0xff] %v2190
          %2335 = vmatpush.msra.mxu0 %v2156
          %2336 = vmatpush.msra.mxu0 %v2155
          %2337 = vmatpush.msra.mxu0 %v2154
          %2338 = vmatpush.msra.mxu0 %v2153
          %2339 = vmatpush.msra.mxu0 %v2152
          %2340 = vmatpush.msra.mxu0 %v2151
          %2341 = vmatpush.msra.mxu0 %v2150
          %2342 = vmatpush.msra.mxu0 %v2149
          %2343 = vmatpush.msra.mxu0 %v2148
          %2344 = vmatpush.msra.mxu0 %v2147
          %2345 = vmatpush.msra.mxu0 %v2146
          %2346 = vmatpush.msra.mxu0 %v2145
          %2347 = vmatpush.msra.mxu0 %v2144
          %2348 = vmatpush.msra.mxu0 %v2143
          %2349 = vmatpush.msra.mxu0 %v2142
          %2350 = vmatpush.msra.mxu0 %v2141
          %2351 = vmatmul.f32.gmra.mxu0 %v2223
          %v2352 = vpop.f32.mrf.mxu0
          %v2353 = vadd.f32 0.0, %v2352
          %2354 = vmatmul.f32.gmra.mxu0 %v2225
          %v2355 = vpop.f32.mrf.mxu0
          %v2356 = vadd.f32 0.0, %v2355
          %2357 = vmatmul.f32.gmra.mxu0 %v2227
          %v2358 = vpop.f32.mrf.mxu0
          %v2359 = vadd.f32 0.0, %v2358
          %2360 = vmatmul.f32.gmra.mxu0 %v2229
          %v2361 = vpop.f32.mrf.mxu0
          %v2362 = vadd.f32 0.0, %v2361
          %2363 = vmatmul.f32.gmra.mxu0 %v2231
          %v2364 = vpop.f32.mrf.mxu0
          %v2365 = vadd.f32 0.0, %v2364
          %2366 = vmatmul.f32.gmra.mxu0 %v2233
          %v2367 = vpop.f32.mrf.mxu0
          %v2368 = vadd.f32 0.0, %v2367
          %2369 = vmatmul.f32.gmra.mxu0 %v2235
          %v2370 = vpop.f32.mrf.mxu0
          %v2371 = vadd.f32 0.0, %v2370
          %2372 = vmatmul.f32.gmra.mxu0 %v2237
          %v2373 = vpop.f32.mrf.mxu0
          %v2374 = vadd.f32 0.0, %v2373
          %2375 = vmatmul.f32.gmra.mxu0 %v2239
          %v2376 = vpop.f32.mrf.mxu0
          %v2377 = vadd.f32 0.0, %v2376
          %2378 = vmatmul.f32.gmra.mxu0 %v2241
          %v2379 = vpop.f32.mrf.mxu0
          %v2380 = vadd.f32 0.0, %v2379
          %2381 = vmatmul.f32.gmra.mxu0 %v2243
          %v2382 = vpop.f32.mrf.mxu0
          %v2383 = vadd.f32 0.0, %v2382
          %2384 = vmatmul.f32.gmra.mxu0 %v2245
          %v2385 = vpop.f32.mrf.mxu0
          %v2386 = vadd.f32 0.0, %v2385
          %2387 = vmatmul.f32.gmra.mxu0 %v2247
          %v2388 = vpop.f32.mrf.mxu0
          %v2389 = vadd.f32 0.0, %v2388
          %2390 = vmatmul.f32.gmra.mxu0 %v2249
          %v2391 = vpop.f32.mrf.mxu0
          %v2392 = vadd.f32 0.0, %v2391
          %2393 = vmatmul.f32.gmra.mxu0 %v2251
          %v2394 = vpop.f32.mrf.mxu0
          %v2395 = vadd.f32 0.0, %v2394
          %2396 = vmatmul.f32.gmra.mxu0 %v2253
          %v2397 = vpop.f32.mrf.mxu0
          %v2398 = vadd.f32 0.0, %v2397
          %2399 = vdwg.mxu0
          %2400 = vmatpush.msra.mxu0 %v2172
          %2401 = vmatpush.msra.mxu0 %v2171
          %2402 = vmatpush.msra.mxu0 %v2170
          %2403 = vmatpush.msra.mxu0 %v2169
          %2404 = vmatpush.msra.mxu0 %v2168
          %2405 = vmatpush.msra.mxu0 %v2167
          %2406 = vmatpush.msra.mxu0 %v2166
          %2407 = vmatpush.msra.mxu0 %v2165
          %2408 = vmatpush.msra.mxu0 %v2164
          %2409 = vmatpush.msra.mxu0 %v2163
          %2410 = vmatpush.msra.mxu0 %v2162
          %2411 = vmatpush.msra.mxu0 %v2161
          %2412 = vmatpush.msra.mxu0 %v2160
          %2413 = vmatpush.msra.mxu0 %v2159
          %2414 = vmatpush.msra.mxu0 %v2158
          %2415 = vmatpush.msra.mxu0 %v2157
          %2416 = vmatmul.f32.gmra.mxu0 %v2224
          %v2417 = vpop.f32.mrf.mxu0
          %v2418 = vadd.f32 %v2353, %v2417
          %2419 = vmatmul.f32.gmra.mxu0 %v2226
          %v2420 = vpop.f32.mrf.mxu0
          %v2421 = vadd.f32 %v2356, %v2420
          %2422 = vmatmul.f32.gmra.mxu0 %v2228
          %v2423 = vpop.f32.mrf.mxu0
          %v2424 = vadd.f32 %v2359, %v2423
          %2425 = vmatmul.f32.gmra.mxu0 %v2230
          %v2426 = vpop.f32.mrf.mxu0
          %v2427 = vadd.f32 %v2362, %v2426
          %2428 = vmatmul.f32.gmra.mxu0 %v2232
          %v2429 = vpop.f32.mrf.mxu0
          %v2430 = vadd.f32 %v2365, %v2429
          %2431 = vmatmul.f32.gmra.mxu0 %v2234
          %v2432 = vpop.f32.mrf.mxu0
          %v2433 = vadd.f32 %v2368, %v2432
          %2434 = vmatmul.f32.gmra.mxu0 %v2236
          %v2435 = vpop.f32.mrf.mxu0
          %v2436 = vadd.f32 %v2371, %v2435
          %2437 = vmatmul.f32.gmra.mxu0 %v2238
          %v2438 = vpop.f32.mrf.mxu0
          %v2439 = vadd.f32 %v2374, %v2438
          %2440 = vmatmul.f32.gmra.mxu0 %v2240
          %v2441 = vpop.f32.mrf.mxu0
          %v2442 = vadd.f32 %v2377, %v2441
          %2443 = vmatmul.f32.gmra.mxu0 %v2242
          %v2444 = vpop.f32.mrf.mxu0
          %v2445 = vadd.f32 %v2380, %v2444
          %2446 = vmatmul.f32.gmra.mxu0 %v2244
          %v2447 = vpop.f32.mrf.mxu0
          %v2448 = vadd.f32 %v2383, %v2447
          %2449 = vmatmul.f32.gmra.mxu0 %v2246
          %v2450 = vpop.f32.mrf.mxu0
          %v2451 = vadd.f32 %v2386, %v2450
          %2452 = vmatmul.f32.gmra.mxu0 %v2248
          %v2453 = vpop.f32.mrf.mxu0
          %v2454 = vadd.f32 %v2389, %v2453
          %2455 = vmatmul.f32.gmra.mxu0 %v2250
          %v2456 = vpop.f32.mrf.mxu0
          %v2457 = vadd.f32 %v2392, %v2456
          %2458 = vmatmul.f32.gmra.mxu0 %v2252
          %v2459 = vpop.f32.mrf.mxu0
          %v2460 = vadd.f32 %v2395, %v2459
          %2461 = vmatmul.f32.gmra.mxu0 %v2254
          %v2462 = vpop.f32.mrf.mxu0
          %v2463 = vadd.f32 %v2398, %v2462
          %2464 = vdwg.mxu0
          %2465 = vst [vmem:[#allocation2 + $0x20] sm:$0xff] %v2418
          %2466 = vst [vmem:[#allocation2 + $0x50] sm:$0xff] %v2421
          %2467 = vst [vmem:[#allocation2 + $0x80] sm:$0xff] %v2424
          %2468 = vst [vmem:[#allocation2 + $0xb0] sm:$0xff] %v2427
          %2469 = vst [vmem:[#allocation2 + $0xe0] sm:$0xff] %v2430
          %2470 = vst [vmem:[#allocation2 + $0x110] sm:$0xff] %v2433
          %2471 = vst [vmem:[#allocation2 + $0x140] sm:$0xff] %v2436
          %2472 = vst [vmem:[#allocation2 + $0x170] sm:$0xff] %v2439
          %2473 = vst [vmem:[#allocation2 + $0x1a0] sm:$0xff] %v2442
          %2474 = vst [vmem:[#allocation2 + $0x1d0] sm:$0xff] %v2445
          %2475 = vst [vmem:[#allocation2 + $0x200] sm:$0xff] %v2448
          %2476 = vst [vmem:[#allocation2 + $0x230] sm:$0xff] %v2451
          %2477 = vst [vmem:[#allocation2 + $0x260] sm:$0xff] %v2454
          %2478 = vst [vmem:[#allocation2 + $0x290] sm:$0xff] %v2457
          %2479 = vst [vmem:[#allocation2 + $0x2c0] sm:$0xff] %v2460
          %2480 = vst [vmem:[#allocation2 + $0x2f0] sm:$0xff] %v2463
          %2481 = vmatpush.msra.mxu0 %v2156
          %2482 = vmatpush.msra.mxu0 %v2155
          %2483 = vmatpush.msra.mxu0 %v2154
          %2484 = vmatpush.msra.mxu0 %v2153
          %2485 = vmatpush.msra.mxu0 %v2152
          %2486 = vmatpush.msra.mxu0 %v2151
          %2487 = vmatpush.msra.mxu0 %v2150
          %2488 = vmatpush.msra.mxu0 %v2149
          %2489 = vmatpush.msra.mxu0 %v2148
          %2490 = vmatpush.msra.mxu0 %v2147
          %2491 = vmatpush.msra.mxu0 %v2146
          %2492 = vmatpush.msra.mxu0 %v2145
          %2493 = vmatpush.msra.mxu0 %v2144
          %2494 = vmatpush.msra.mxu0 %v2143
          %2495 = vmatpush.msra.mxu0 %v2142
          %2496 = vmatpush.msra.mxu0 %v2141
          %2497 = vmatmul.f32.gmra.mxu0 %v2287
          %v2498 = vpop.f32.mrf.mxu0
          %v2499 = vadd.f32 0.0, %v2498
          %2500 = vmatmul.f32.gmra.mxu0 %v2289
          %v2501 = vpop.f32.mrf.mxu0
          %v2502 = vadd.f32 0.0, %v2501
          %2503 = vmatmul.f32.gmra.mxu0 %v2291
          %v2504 = vpop.f32.mrf.mxu0
          %v2505 = vadd.f32 0.0, %v2504
          %2506 = vmatmul.f32.gmra.mxu0 %v2293
          %v2507 = vpop.f32.mrf.mxu0
          %v2508 = vadd.f32 0.0, %v2507
          %2509 = vmatmul.f32.gmra.mxu0 %v2295
          %v2510 = vpop.f32.mrf.mxu0
          %v2511 = vadd.f32 0.0, %v2510
          %2512 = vmatmul.f32.gmra.mxu0 %v2297
          %v2513 = vpop.f32.mrf.mxu0
          %v2514 = vadd.f32 0.0, %v2513
          %2515 = vmatmul.f32.gmra.mxu0 %v2299
          %v2516 = vpop.f32.mrf.mxu0
          %v2517 = vadd.f32 0.0, %v2516
          %2518 = vmatmul.f32.gmra.mxu0 %v2301
          %v2519 = vpop.f32.mrf.mxu0
          %v2520 = vadd.f32 0.0, %v2519
          %2521 = vmatmul.f32.gmra.mxu0 %v2303
          %v2522 = vpop.f32.mrf.mxu0
          %v2523 = vadd.f32 0.0, %v2522
          %2524 = vmatmul.f32.gmra.mxu0 %v2305
          %v2525 = vpop.f32.mrf.mxu0
          %v2526 = vadd.f32 0.0, %v2525
          %2527 = vmatmul.f32.gmra.mxu0 %v2307
          %v2528 = vpop.f32.mrf.mxu0
          %v2529 = vadd.f32 0.0, %v2528
          %2530 = vmatmul.f32.gmra.mxu0 %v2309
          %v2531 = vpop.f32.mrf.mxu0
          %v2532 = vadd.f32 0.0, %v2531
          %2533 = vmatmul.f32.gmra.mxu0 %v2311
          %v2534 = vpop.f32.mrf.mxu0
          %v2535 = vadd.f32 0.0, %v2534
          %2536 = vmatmul.f32.gmra.mxu0 %v2313
          %v2537 = vpop.f32.mrf.mxu0
          %v2538 = vadd.f32 0.0, %v2537
          %2539 = vmatmul.f32.gmra.mxu0 %v2315
          %v2540 = vpop.f32.mrf.mxu0
          %v2541 = vadd.f32 0.0, %v2540
          %2542 = vmatmul.f32.gmra.mxu0 %v2317
          %v2543 = vpop.f32.mrf.mxu0
          %v2544 = vadd.f32 0.0, %v2543
          %2545 = vdwg.mxu0
          %2546 = vmatpush.msra.mxu0 %v2172
          %2547 = vmatpush.msra.mxu0 %v2171
          %2548 = vmatpush.msra.mxu0 %v2170
          %2549 = vmatpush.msra.mxu0 %v2169
          %2550 = vmatpush.msra.mxu0 %v2168
          %2551 = vmatpush.msra.mxu0 %v2167
          %2552 = vmatpush.msra.mxu0 %v2166
          %2553 = vmatpush.msra.mxu0 %v2165
          %2554 = vmatpush.msra.mxu0 %v2164
          %2555 = vmatpush.msra.mxu0 %v2163
          %2556 = vmatpush.msra.mxu0 %v2162
          %2557 = vmatpush.msra.mxu0 %v2161
          %2558 = vmatpush.msra.mxu0 %v2160
          %2559 = vmatpush.msra.mxu0 %v2159
          %2560 = vmatpush.msra.mxu0 %v2158
          %2561 = vmatpush.msra.mxu0 %v2157
          %2562 = vmatmul.f32.gmra.mxu0 %v2288
          %v2563 = vpop.f32.mrf.mxu0
          %v2564 = vadd.f32 %v2499, %v2563
          %2565 = vmatmul.f32.gmra.mxu0 %v2290
          %v2566 = vpop.f32.mrf.mxu0
          %v2567 = vadd.f32 %v2502, %v2566
          %2568 = vmatmul.f32.gmra.mxu0 %v2292
          %v2569 = vpop.f32.mrf.mxu0
          %v2570 = vadd.f32 %v2505, %v2569
          %2571 = vmatmul.f32.gmra.mxu0 %v2294
          %v2572 = vpop.f32.mrf.mxu0
          %v2573 = vadd.f32 %v2508, %v2572
          %2574 = vmatmul.f32.gmra.mxu0 %v2296
          %v2575 = vpop.f32.mrf.mxu0
          %v2576 = vadd.f32 %v2511, %v2575
          %2577 = vmatmul.f32.gmra.mxu0 %v2298
          %v2578 = vpop.f32.mrf.mxu0
          %v2579 = vadd.f32 %v2514, %v2578
          %2580 = vmatmul.f32.gmra.mxu0 %v2300
          %v2581 = vpop.f32.mrf.mxu0
          %v2582 = vadd.f32 %v2517, %v2581
          %2583 = vmatmul.f32.gmra.mxu0 %v2302
          %v2584 = vpop.f32.mrf.mxu0
          %v2585 = vadd.f32 %v2520, %v2584
          %2586 = vmatmul.f32.gmra.mxu0 %v2304
          %v2587 = vpop.f32.mrf.mxu0
          %v2588 = vadd.f32 %v2523, %v2587
          %2589 = vmatmul.f32.gmra.mxu0 %v2306
          %v2590 = vpop.f32.mrf.mxu0
          %v2591 = vadd.f32 %v2526, %v2590
          %2592 = vmatmul.f32.gmra.mxu0 %v2308
          %v2593 = vpop.f32.mrf.mxu0
          %v2594 = vadd.f32 %v2529, %v2593
          %2595 = vmatmul.f32.gmra.mxu0 %v2310
          %v2596 = vpop.f32.mrf.mxu0
          %v2597 = vadd.f32 %v2532, %v2596
          %2598 = vmatmul.f32.gmra.mxu0 %v2312
          %v2599 = vpop.f32.mrf.mxu0
          %v2600 = vadd.f32 %v2535, %v2599
          %2601 = vmatmul.f32.gmra.mxu0 %v2314
          %v2602 = vpop.f32.mrf.mxu0
          %v2603 = vadd.f32 %v2538, %v2602
          %2604 = vmatmul.f32.gmra.mxu0 %v2316
          %v2605 = vpop.f32.mrf.mxu0
          %v2606 = vadd.f32 %v2541, %v2605
          %2607 = vmatmul.f32.gmra.mxu0 %v2318
          %v2608 = vpop.f32.mrf.mxu0
          %v2609 = vadd.f32 %v2544, %v2608
          %2610 = vdwg.mxu0
          %2611 = vst [vmem:[#allocation2 + $0x28] sm:$0xff] %v2564
          %2612 = vst [vmem:[#allocation2 + $0x58] sm:$0xff] %v2567
          %2613 = vst [vmem:[#allocation2 + $0x88] sm:$0xff] %v2570
          %2614 = vst [vmem:[#allocation2 + $0xb8] sm:$0xff] %v2573
          %2615 = vst [vmem:[#allocation2 + $0xe8] sm:$0xff] %v2576
          %2616 = vst [vmem:[#allocation2 + $0x118] sm:$0xff] %v2579
          %2617 = vst [vmem:[#allocation2 + $0x148] sm:$0xff] %v2582
          %2618 = vst [vmem:[#allocation2 + $0x178] sm:$0xff] %v2585
          %2619 = vst [vmem:[#allocation2 + $0x1a8] sm:$0xff] %v2588
          %2620 = vst [vmem:[#allocation2 + $0x1d8] sm:$0xff] %v2591
          %2621 = vst [vmem:[#allocation2 + $0x208] sm:$0xff] %v2594
          %2622 = vst [vmem:[#allocation2 + $0x238] sm:$0xff] %v2597
          %2623 = vst [vmem:[#allocation2 + $0x268] sm:$0xff] %v2600
          %2624 = vst [vmem:[#allocation2 + $0x298] sm:$0xff] %v2603
          %2625 = vst [vmem:[#allocation2 + $0x2c8] sm:$0xff] %v2606
          %2626 = vst [vmem:[#allocation2 + $0x2f8] sm:$0xff] %v2609
          %v2627 = vld [vmem:[%s10] sm:$0x1]
          %v2628 = vld [vmem:[%s11] sm:$0x1]
          %v2629 = vlaneseq
          %v2630 = vand.u32 %v2629, 127
          %vm2631 = vcmp.lt.s32.totalorder %v2630, 32
          %v2632 = vsel %vm2631, 1, 0
          %v2633 = vcvt.s32.f32 %v2632
          %v2634 = vld [vmem:[#allocation2] sm:$0xff]
          %v2635 = vld [vmem:[#allocation2 + $0x8] sm:$0xff]
          %v2636 = vld [vmem:[#allocation2 + $0x10] sm:$0xff]
          %v2637 = vld [vmem:[#allocation2 + $0x18] sm:$0xff]
          %v2638 = vld [vmem:[#allocation2 + $0x20] sm:$0xff]
          %v2639 = vld [vmem:[#allocation2 + $0x28] sm:$0xff]
          %v2640 = vld [vmem:[#allocation2 + $0x30] sm:$0xff]
          %v2641 = vld [vmem:[#allocation2 + $0x38] sm:$0xff]
          %v2642 = vld [vmem:[#allocation2 + $0x40] sm:$0xff]
          %v2643 = vld [vmem:[#allocation2 + $0x48] sm:$0xff]
          %v2644 = vld [vmem:[#allocation2 + $0x50] sm:$0xff]
          %v2645 = vld [vmem:[#allocation2 + $0x58] sm:$0xff]
          %v2646 = vld [vmem:[#allocation2 + $0x60] sm:$0xff]
          %v2647 = vld [vmem:[#allocation2 + $0x68] sm:$0xff]
          %v2648 = vld [vmem:[#allocation2 + $0x70] sm:$0xff]
          %v2649 = vld [vmem:[#allocation2 + $0x78] sm:$0xff]
          %v2650 = vld [vmem:[#allocation2 + $0x80] sm:$0xff]
          %v2651 = vld [vmem:[#allocation2 + $0x88] sm:$0xff]
          %v2652 = vld [vmem:[#allocation2 + $0x90] sm:$0xff]
          %v2653 = vld [vmem:[#allocation2 + $0x98] sm:$0xff]
          %v2654 = vld [vmem:[#allocation2 + $0xa0] sm:$0xff]
          %v2655 = vld [vmem:[#allocation2 + $0xa8] sm:$0xff]
          %v2656 = vld [vmem:[#allocation2 + $0xb0] sm:$0xff]
          %v2657 = vld [vmem:[#allocation2 + $0xb8] sm:$0xff]
          %v2658 = vld [vmem:[#allocation2 + $0xc0] sm:$0xff]
          %v2659 = vld [vmem:[#allocation2 + $0xc8] sm:$0xff]
          %v2660 = vld [vmem:[#allocation2 + $0xd0] sm:$0xff]
          %v2661 = vld [vmem:[#allocation2 + $0xd8] sm:$0xff]
          %v2662 = vld [vmem:[#allocation2 + $0xe0] sm:$0xff]
          %v2663 = vld [vmem:[#allocation2 + $0xe8] sm:$0xff]
          %v2664 = vld [vmem:[#allocation2 + $0xf0] sm:$0xff]
          %v2665 = vld [vmem:[#allocation2 + $0xf8] sm:$0xff]
          %v2666 = vld [vmem:[#allocation2 + $0x100] sm:$0xff]
          %v2667 = vld [vmem:[#allocation2 + $0x108] sm:$0xff]
          %v2668 = vld [vmem:[#allocation2 + $0x110] sm:$0xff]
          %v2669 = vld [vmem:[#allocation2 + $0x118] sm:$0xff]
          %v2670 = vld [vmem:[#allocation2 + $0x120] sm:$0xff]
          %v2671 = vld [vmem:[#allocation2 + $0x128] sm:$0xff]
          %v2672 = vld [vmem:[#allocation2 + $0x130] sm:$0xff]
          %v2673 = vld [vmem:[#allocation2 + $0x138] sm:$0xff]
          %v2674 = vld [vmem:[#allocation2 + $0x140] sm:$0xff]
          %v2675 = vld [vmem:[#allocation2 + $0x148] sm:$0xff]
          %v2676 = vld [vmem:[#allocation2 + $0x150] sm:$0xff]
          %v2677 = vld [vmem:[#allocation2 + $0x158] sm:$0xff]
          %v2678 = vld [vmem:[#allocation2 + $0x160] sm:$0xff]
          %v2679 = vld [vmem:[#allocation2 + $0x168] sm:$0xff]
          %v2680 = vld [vmem:[#allocation2 + $0x170] sm:$0xff]
          %v2681 = vld [vmem:[#allocation2 + $0x178] sm:$0xff]
          %v2682 = vld [vmem:[#allocation2 + $0x180] sm:$0xff]
          %v2683 = vld [vmem:[#allocation2 + $0x188] sm:$0xff]
          %v2684 = vld [vmem:[#allocation2 + $0x190] sm:$0xff]
          %v2685 = vld [vmem:[#allocation2 + $0x198] sm:$0xff]
          %v2686 = vld [vmem:[#allocation2 + $0x1a0] sm:$0xff]
          %v2687 = vld [vmem:[#allocation2 + $0x1a8] sm:$0xff]
          %v2688 = vld [vmem:[#allocation2 + $0x1b0] sm:$0xff]
          %v2689 = vld [vmem:[#allocation2 + $0x1b8] sm:$0xff]
          %v2690 = vld [vmem:[#allocation2 + $0x1c0] sm:$0xff]
          %v2691 = vld [vmem:[#allocation2 + $0x1c8] sm:$0xff]
          %v2692 = vld [vmem:[#allocation2 + $0x1d0] sm:$0xff]
          %v2693 = vld [vmem:[#allocation2 + $0x1d8] sm:$0xff]
          %v2694 = vld [vmem:[#allocation2 + $0x1e0] sm:$0xff]
          %v2695 = vld [vmem:[#allocation2 + $0x1e8] sm:$0xff]
          %v2696 = vld [vmem:[#allocation2 + $0x1f0] sm:$0xff]
          %v2697 = vld [vmem:[#allocation2 + $0x1f8] sm:$0xff]
          %v2698 = vld [vmem:[#allocation2 + $0x200] sm:$0xff]
          %v2699 = vld [vmem:[#allocation2 + $0x208] sm:$0xff]
          %v2700 = vld [vmem:[#allocation2 + $0x210] sm:$0xff]
          %v2701 = vld [vmem:[#allocation2 + $0x218] sm:$0xff]
          %v2702 = vld [vmem:[#allocation2 + $0x220] sm:$0xff]
          %v2703 = vld [vmem:[#allocation2 + $0x228] sm:$0xff]
          %v2704 = vld [vmem:[#allocation2 + $0x230] sm:$0xff]
          %v2705 = vld [vmem:[#allocation2 + $0x238] sm:$0xff]
          %v2706 = vld [vmem:[#allocation2 + $0x240] sm:$0xff]
          %v2707 = vld [vmem:[#allocation2 + $0x248] sm:$0xff]
          %v2708 = vld [vmem:[#allocation2 + $0x250] sm:$0xff]
          %v2709 = vld [vmem:[#allocation2 + $0x258] sm:$0xff]
          %v2710 = vld [vmem:[#allocation2 + $0x260] sm:$0xff]
          %v2711 = vld [vmem:[#allocation2 + $0x268] sm:$0xff]
          %v2712 = vld [vmem:[#allocation2 + $0x270] sm:$0xff]
          %v2713 = vld [vmem:[#allocation2 + $0x278] sm:$0xff]
          %v2714 = vld [vmem:[#allocation2 + $0x280] sm:$0xff]
          %v2715 = vld [vmem:[#allocation2 + $0x288] sm:$0xff]
          %v2716 = vld [vmem:[#allocation2 + $0x290] sm:$0xff]
          %v2717 = vld [vmem:[#allocation2 + $0x298] sm:$0xff]
          %v2718 = vld [vmem:[#allocation2 + $0x2a0] sm:$0xff]
          %v2719 = vld [vmem:[#allocation2 + $0x2a8] sm:$0xff]
          %v2720 = vld [vmem:[#allocation2 + $0x2b0] sm:$0xff]
          %v2721 = vld [vmem:[#allocation2 + $0x2b8] sm:$0xff]
          %v2722 = vld [vmem:[#allocation2 + $0x2c0] sm:$0xff]
          %v2723 = vld [vmem:[#allocation2 + $0x2c8] sm:$0xff]
          %v2724 = vld [vmem:[#allocation2 + $0x2d0] sm:$0xff]
          %v2725 = vld [vmem:[#allocation2 + $0x2d8] sm:$0xff]
          %v2726 = vld [vmem:[#allocation2 + $0x2e0] sm:$0xff]
          %v2727 = vld [vmem:[#allocation2 + $0x2e8] sm:$0xff]
          %v2728 = vld [vmem:[#allocation2 + $0x2f0] sm:$0xff]
          %v2729 = vld [vmem:[#allocation2 + $0x2f8] sm:$0xff]
          %v2730 = vld [vmem:[%s6] sm:$0xff]
          %v2731 = vld [vmem:[%s6 + $0x8] sm:$0xff]
          %v2732 = vld [vmem:[%s6 + $0x10] sm:$0xff]
          %v2733 = vld [vmem:[%s6 + $0x18] sm:$0xff]
          %v2734 = vld [vmem:[%s6 + $0x20] sm:$0xff]
          %v2735 = vld [vmem:[%s6 + $0x28] sm:$0xff]
          %v2736 = vld [vmem:[%s6 + $0x30] sm:$0xff]
          %v2737 = vld [vmem:[%s6 + $0x38] sm:$0xff]
          %v2738 = vld [vmem:[%s6 + $0x40] sm:$0xff]
          %v2739 = vld [vmem:[%s6 + $0x48] sm:$0xff]
          %v2740 = vld [vmem:[%s6 + $0x50] sm:$0xff]
          %v2741 = vld [vmem:[%s6 + $0x58] sm:$0xff]
          %v2742 = vld [vmem:[%s6 + $0x60] sm:$0xff]
          %v2743 = vld [vmem:[%s6 + $0x68] sm:$0xff]
          %v2744 = vld [vmem:[%s6 + $0x70] sm:$0xff]
          %v2745 = vld [vmem:[%s6 + $0x78] sm:$0xff]
          %v2746 = vld [vmem:[%s6 + $0x80] sm:$0xff]
          %v2747 = vld [vmem:[%s6 + $0x88] sm:$0xff]
          %v2748 = vld [vmem:[%s6 + $0x90] sm:$0xff]
          %v2749 = vld [vmem:[%s6 + $0x98] sm:$0xff]
          %v2750 = vld [vmem:[%s6 + $0xa0] sm:$0xff]
          %v2751 = vld [vmem:[%s6 + $0xa8] sm:$0xff]
          %v2752 = vld [vmem:[%s6 + $0xb0] sm:$0xff]
          %v2753 = vld [vmem:[%s6 + $0xb8] sm:$0xff]
          %v2754 = vld [vmem:[%s6 + $0xc0] sm:$0xff]
          %v2755 = vld [vmem:[%s6 + $0xc8] sm:$0xff]
          %v2756 = vld [vmem:[%s6 + $0xd0] sm:$0xff]
          %v2757 = vld [vmem:[%s6 + $0xd8] sm:$0xff]
          %v2758 = vld [vmem:[%s6 + $0xe0] sm:$0xff]
          %v2759 = vld [vmem:[%s6 + $0xe8] sm:$0xff]
          %v2760 = vld [vmem:[%s6 + $0xf0] sm:$0xff]
          %v2761 = vld [vmem:[%s6 + $0xf8] sm:$0xff]
          %v2762 = vld [vmem:[%s6 + $0x100] sm:$0xff]
          %v2763 = vld [vmem:[%s6 + $0x108] sm:$0xff]
          %v2764 = vld [vmem:[%s6 + $0x110] sm:$0xff]
          %v2765 = vld [vmem:[%s6 + $0x118] sm:$0xff]
          %v2766 = vld [vmem:[%s6 + $0x120] sm:$0xff]
          %v2767 = vld [vmem:[%s6 + $0x128] sm:$0xff]
          %v2768 = vld [vmem:[%s6 + $0x130] sm:$0xff]
          %v2769 = vld [vmem:[%s6 + $0x138] sm:$0xff]
          %v2770 = vld [vmem:[%s6 + $0x140] sm:$0xff]
          %v2771 = vld [vmem:[%s6 + $0x148] sm:$0xff]
          %v2772 = vld [vmem:[%s6 + $0x150] sm:$0xff]
          %v2773 = vld [vmem:[%s6 + $0x158] sm:$0xff]
          %v2774 = vld [vmem:[%s6 + $0x160] sm:$0xff]
          %v2775 = vld [vmem:[%s6 + $0x168] sm:$0xff]
          %v2776 = vld [vmem:[%s6 + $0x170] sm:$0xff]
          %v2777 = vld [vmem:[%s6 + $0x178] sm:$0xff]
          %v2778 = vld [vmem:[%s6 + $0x180] sm:$0xff]
          %v2779 = vld [vmem:[%s6 + $0x188] sm:$0xff]
          %v2780 = vld [vmem:[%s6 + $0x190] sm:$0xff]
          %v2781 = vld [vmem:[%s6 + $0x198] sm:$0xff]
          %v2782 = vld [vmem:[%s6 + $0x1a0] sm:$0xff]
          %v2783 = vld [vmem:[%s6 + $0x1a8] sm:$0xff]
          %v2784 = vld [vmem:[%s6 + $0x1b0] sm:$0xff]
          %v2785 = vld [vmem:[%s6 + $0x1b8] sm:$0xff]
          %v2786 = vld [vmem:[%s6 + $0x1c0] sm:$0xff]
          %v2787 = vld [vmem:[%s6 + $0x1c8] sm:$0xff]
          %v2788 = vld [vmem:[%s6 + $0x1d0] sm:$0xff]
          %v2789 = vld [vmem:[%s6 + $0x1d8] sm:$0xff]
          %v2790 = vld [vmem:[%s6 + $0x1e0] sm:$0xff]
          %v2791 = vld [vmem:[%s6 + $0x1e8] sm:$0xff]
          %v2792 = vld [vmem:[%s6 + $0x1f0] sm:$0xff]
          %v2793 = vld [vmem:[%s6 + $0x1f8] sm:$0xff]
          %v2794 = vld [vmem:[%s6 + $0x200] sm:$0xff]
          %v2795 = vld [vmem:[%s6 + $0x208] sm:$0xff]
          %v2796 = vld [vmem:[%s6 + $0x210] sm:$0xff]
          %v2797 = vld [vmem:[%s6 + $0x218] sm:$0xff]
          %v2798 = vld [vmem:[%s6 + $0x220] sm:$0xff]
          %v2799 = vld [vmem:[%s6 + $0x228] sm:$0xff]
          %v2800 = vld [vmem:[%s6 + $0x230] sm:$0xff]
          %v2801 = vld [vmem:[%s6 + $0x238] sm:$0xff]
          %v2802 = vld [vmem:[%s6 + $0x240] sm:$0xff]
          %v2803 = vld [vmem:[%s6 + $0x248] sm:$0xff]
          %v2804 = vld [vmem:[%s6 + $0x250] sm:$0xff]
          %v2805 = vld [vmem:[%s6 + $0x258] sm:$0xff]
          %v2806 = vld [vmem:[%s6 + $0x260] sm:$0xff]
          %v2807 = vld [vmem:[%s6 + $0x268] sm:$0xff]
          %v2808 = vld [vmem:[%s6 + $0x270] sm:$0xff]
          %v2809 = vld [vmem:[%s6 + $0x278] sm:$0xff]
          %v2810 = vld [vmem:[%s6 + $0x280] sm:$0xff]
          %v2811 = vld [vmem:[%s6 + $0x288] sm:$0xff]
          %v2812 = vld [vmem:[%s6 + $0x290] sm:$0xff]
          %v2813 = vld [vmem:[%s6 + $0x298] sm:$0xff]
          %v2814 = vld [vmem:[%s6 + $0x2a0] sm:$0xff]
          %v2815 = vld [vmem:[%s6 + $0x2a8] sm:$0xff]
          %v2816 = vld [vmem:[%s6 + $0x2b0] sm:$0xff]
          %v2817 = vld [vmem:[%s6 + $0x2b8] sm:$0xff]
          %v2818 = vld [vmem:[%s6 + $0x2c0] sm:$0xff]
          %v2819 = vld [vmem:[%s6 + $0x2c8] sm:$0xff]
          %v2820 = vld [vmem:[%s6 + $0x2d0] sm:$0xff]
          %v2821 = vld [vmem:[%s6 + $0x2d8] sm:$0xff]
          %v2822 = vld [vmem:[%s6 + $0x2e0] sm:$0xff]
          %v2823 = vld [vmem:[%s6 + $0x2e8] sm:$0xff]
          %v2824 = vld [vmem:[%s6 + $0x2f0] sm:$0xff]
          %v2825 = vld [vmem:[%s6 + $0x2f8] sm:$0xff]
          %v2826 = vld [vmem:[%s7] sm:$0x1]
          %v2828 = vperm.slane %v2826, 0
          %2830 = vmatpush.msra.mxu0 %v2745
          %2831 = vmatpush.msra.mxu0 %v2744
          %2832 = vmatpush.msra.mxu0 %v2743
          %2833 = vmatpush.msra.mxu0 %v2742
          %2834 = vmatpush.msra.mxu0 %v2741
          %2835 = vmatpush.msra.mxu0 %v2740
          %2836 = vmatpush.msra.mxu0 %v2739
          %2837 = vmatpush.msra.mxu0 %v2738
          %2838 = vmatpush.msra.mxu0 %v2737
          %2839 = vmatpush.msra.mxu0 %v2736
          %2840 = vmatpush.msra.mxu0 %v2735
          %2841 = vmatpush.msra.mxu0 %v2734
          %2842 = vmatpush.msra.mxu0 %v2733
          %2843 = vmatpush.msra.mxu0 %v2732
          %2844 = vmatpush.msra.mxu0 %v2731
          %2845 = vmatpush.msra.mxu0 %v2730
          %2846 = vmatmul.f32.gmra.mxu0 %v2634
          %v2847 = vpop.f32.mrf.mxu0
          %v2848 = vadd.f32 %v2828, %v2847
          %2849 = vmatmul.f32.gmra.mxu0 %v2640
          %v2850 = vpop.f32.mrf.mxu0
          %v2851 = vadd.f32 %v2828, %v2850
          %2852 = vmatmul.f32.gmra.mxu0 %v2646
          %v2853 = vpop.f32.mrf.mxu0
          %v2854 = vadd.f32 %v2828, %v2853
          %2855 = vmatmul.f32.gmra.mxu0 %v2652
          %v2856 = vpop.f32.mrf.mxu0
          %v2857 = vadd.f32 %v2828, %v2856
          %2858 = vmatmul.f32.gmra.mxu0 %v2658
          %v2859 = vpop.f32.mrf.mxu0
          %v2860 = vadd.f32 %v2828, %v2859
          %2861 = vmatmul.f32.gmra.mxu0 %v2664
          %v2862 = vpop.f32.mrf.mxu0
          %v2863 = vadd.f32 %v2828, %v2862
          %2864 = vmatmul.f32.gmra.mxu0 %v2670
          %v2865 = vpop.f32.mrf.mxu0
          %v2866 = vadd.f32 %v2828, %v2865
          %2867 = vmatmul.f32.gmra.mxu0 %v2676
          %v2868 = vpop.f32.mrf.mxu0
          %v2869 = vadd.f32 %v2828, %v2868
          %2870 = vmatmul.f32.gmra.mxu0 %v2682
          %v2871 = vpop.f32.mrf.mxu0
          %v2872 = vadd.f32 %v2828, %v2871
          %2873 = vmatmul.f32.gmra.mxu0 %v2688
          %v2874 = vpop.f32.mrf.mxu0
          %v2875 = vadd.f32 %v2828, %v2874
          %2876 = vmatmul.f32.gmra.mxu0 %v2694
          %v2877 = vpop.f32.mrf.mxu0
          %v2878 = vadd.f32 %v2828, %v2877
          %2879 = vmatmul.f32.gmra.mxu0 %v2700
          %v2880 = vpop.f32.mrf.mxu0
          %v2881 = vadd.f32 %v2828, %v2880
          %2882 = vmatmul.f32.gmra.mxu0 %v2706
          %v2883 = vpop.f32.mrf.mxu0
          %v2884 = vadd.f32 %v2828, %v2883
          %2885 = vmatmul.f32.gmra.mxu0 %v2712
          %v2886 = vpop.f32.mrf.mxu0
          %v2887 = vadd.f32 %v2828, %v2886
          %2888 = vmatmul.f32.gmra.mxu0 %v2718
          %v2889 = vpop.f32.mrf.mxu0
          %v2890 = vadd.f32 %v2828, %v2889
          %2891 = vmatmul.f32.gmra.mxu0 %v2724
          %v2892 = vpop.f32.mrf.mxu0
          %v2893 = vadd.f32 %v2828, %v2892
          %2894 = vdwg.mxu0
          %2895 = vmatpush.msra.mxu0 %v2761
          %2896 = vmatpush.msra.mxu0 %v2760
          %2897 = vmatpush.msra.mxu0 %v2759
          %2898 = vmatpush.msra.mxu0 %v2758
          %2899 = vmatpush.msra.mxu0 %v2757
          %2900 = vmatpush.msra.mxu0 %v2756
          %2901 = vmatpush.msra.mxu0 %v2755
          %2902 = vmatpush.msra.mxu0 %v2754
          %2903 = vmatpush.msra.mxu0 %v2753
          %2904 = vmatpush.msra.mxu0 %v2752
          %2905 = vmatpush.msra.mxu0 %v2751
          %2906 = vmatpush.msra.mxu0 %v2750
          %2907 = vmatpush.msra.mxu0 %v2749
          %2908 = vmatpush.msra.mxu0 %v2748
          %2909 = vmatpush.msra.mxu0 %v2747
          %2910 = vmatpush.msra.mxu0 %v2746
          %2911 = vmatmul.f32.gmra.mxu0 %v2635
          %v2912 = vpop.f32.mrf.mxu0
          %v2913 = vadd.f32 %v2848, %v2912
          %2914 = vmatmul.f32.gmra.mxu0 %v2641
          %v2915 = vpop.f32.mrf.mxu0
          %v2916 = vadd.f32 %v2851, %v2915
          %2917 = vmatmul.f32.gmra.mxu0 %v2647
          %v2918 = vpop.f32.mrf.mxu0
          %v2919 = vadd.f32 %v2854, %v2918
          %2920 = vmatmul.f32.gmra.mxu0 %v2653
          %v2921 = vpop.f32.mrf.mxu0
          %v2922 = vadd.f32 %v2857, %v2921
          %2923 = vmatmul.f32.gmra.mxu0 %v2659
          %v2924 = vpop.f32.mrf.mxu0
          %v2925 = vadd.f32 %v2860, %v2924
          %2926 = vmatmul.f32.gmra.mxu0 %v2665
          %v2927 = vpop.f32.mrf.mxu0
          %v2928 = vadd.f32 %v2863, %v2927
          %2929 = vmatmul.f32.gmra.mxu0 %v2671
          %v2930 = vpop.f32.mrf.mxu0
          %v2931 = vadd.f32 %v2866, %v2930
          %2932 = vmatmul.f32.gmra.mxu0 %v2677
          %v2933 = vpop.f32.mrf.mxu0
          %v2934 = vadd.f32 %v2869, %v2933
          %2935 = vmatmul.f32.gmra.mxu0 %v2683
          %v2936 = vpop.f32.mrf.mxu0
          %v2937 = vadd.f32 %v2872, %v2936
          %2938 = vmatmul.f32.gmra.mxu0 %v2689
          %v2939 = vpop.f32.mrf.mxu0
          %v2940 = vadd.f32 %v2875, %v2939
          %2941 = vmatmul.f32.gmra.mxu0 %v2695
          %v2942 = vpop.f32.mrf.mxu0
          %v2943 = vadd.f32 %v2878, %v2942
          %2944 = vmatmul.f32.gmra.mxu0 %v2701
          %v2945 = vpop.f32.mrf.mxu0
          %v2946 = vadd.f32 %v2881, %v2945
          %2947 = vmatmul.f32.gmra.mxu0 %v2707
          %v2948 = vpop.f32.mrf.mxu0
          %v2949 = vadd.f32 %v2884, %v2948
          %2950 = vmatmul.f32.gmra.mxu0 %v2713
          %v2951 = vpop.f32.mrf.mxu0
          %v2952 = vadd.f32 %v2887, %v2951
          %2953 = vmatmul.f32.gmra.mxu0 %v2719
          %v2954 = vpop.f32.mrf.mxu0
          %v2955 = vadd.f32 %v2890, %v2954
          %2956 = vmatmul.f32.gmra.mxu0 %v2725
          %v2957 = vpop.f32.mrf.mxu0
          %v2958 = vadd.f32 %v2893, %v2957
          %2959 = vdwg.mxu0
          %2960 = vmatpush.msra.mxu0 %v2777
          %2961 = vmatpush.msra.mxu0 %v2776
          %2962 = vmatpush.msra.mxu0 %v2775
          %2963 = vmatpush.msra.mxu0 %v2774
          %2964 = vmatpush.msra.mxu0 %v2773
          %2965 = vmatpush.msra.mxu0 %v2772
          %2966 = vmatpush.msra.mxu0 %v2771
          %2967 = vmatpush.msra.mxu0 %v2770
          %2968 = vmatpush.msra.mxu0 %v2769
          %2969 = vmatpush.msra.mxu0 %v2768
          %2970 = vmatpush.msra.mxu0 %v2767
          %2971 = vmatpush.msra.mxu0 %v2766
          %2972 = vmatpush.msra.mxu0 %v2765
          %2973 = vmatpush.msra.mxu0 %v2764
          %2974 = vmatpush.msra.mxu0 %v2763
          %2975 = vmatpush.msra.mxu0 %v2762
          %2976 = vmatmul.f32.gmra.mxu0 %v2636
          %v2977 = vpop.f32.mrf.mxu0
          %v2978 = vadd.f32 %v2913, %v2977
          %2979 = vmatmul.f32.gmra.mxu0 %v2642
          %v2980 = vpop.f32.mrf.mxu0
          %v2981 = vadd.f32 %v2916, %v2980
          %2982 = vmatmul.f32.gmra.mxu0 %v2648
          %v2983 = vpop.f32.mrf.mxu0
          %v2984 = vadd.f32 %v2919, %v2983
          %2985 = vmatmul.f32.gmra.mxu0 %v2654
          %v2986 = vpop.f32.mrf.mxu0
          %v2987 = vadd.f32 %v2922, %v2986
          %2988 = vmatmul.f32.gmra.mxu0 %v2660
          %v2989 = vpop.f32.mrf.mxu0
          %v2990 = vadd.f32 %v2925, %v2989
          %2991 = vmatmul.f32.gmra.mxu0 %v2666
          %v2992 = vpop.f32.mrf.mxu0
          %v2993 = vadd.f32 %v2928, %v2992
          %2994 = vmatmul.f32.gmra.mxu0 %v2672
          %v2995 = vpop.f32.mrf.mxu0
          %v2996 = vadd.f32 %v2931, %v2995
          %2997 = vmatmul.f32.gmra.mxu0 %v2678
          %v2998 = vpop.f32.mrf.mxu0
          %v2999 = vadd.f32 %v2934, %v2998
          %3000 = vmatmul.f32.gmra.mxu0 %v2684
          %v3001 = vpop.f32.mrf.mxu0
          %v3002 = vadd.f32 %v2937, %v3001
          %3003 = vmatmul.f32.gmra.mxu0 %v2690
          %v3004 = vpop.f32.mrf.mxu0
          %v3005 = vadd.f32 %v2940, %v3004
          %3006 = vmatmul.f32.gmra.mxu0 %v2696
          %v3007 = vpop.f32.mrf.mxu0
          %v3008 = vadd.f32 %v2943, %v3007
          %3009 = vmatmul.f32.gmra.mxu0 %v2702
          %v3010 = vpop.f32.mrf.mxu0
          %v3011 = vadd.f32 %v2946, %v3010
          %3012 = vmatmul.f32.gmra.mxu0 %v2708
          %v3013 = vpop.f32.mrf.mxu0
          %v3014 = vadd.f32 %v2949, %v3013
          %3015 = vmatmul.f32.gmra.mxu0 %v2714
          %v3016 = vpop.f32.mrf.mxu0
          %v3017 = vadd.f32 %v2952, %v3016
          %3018 = vmatmul.f32.gmra.mxu0 %v2720
          %v3019 = vpop.f32.mrf.mxu0
          %v3020 = vadd.f32 %v2955, %v3019
          %3021 = vmatmul.f32.gmra.mxu0 %v2726
          %v3022 = vpop.f32.mrf.mxu0
          %v3023 = vadd.f32 %v2958, %v3022
          %3024 = vdwg.mxu0
          %3025 = vmatpush.msra.mxu0 %v2793
          %3026 = vmatpush.msra.mxu0 %v2792
          %3027 = vmatpush.msra.mxu0 %v2791
          %3028 = vmatpush.msra.mxu0 %v2790
          %3029 = vmatpush.msra.mxu0 %v2789
          %3030 = vmatpush.msra.mxu0 %v2788
          %3031 = vmatpush.msra.mxu0 %v2787
          %3032 = vmatpush.msra.mxu0 %v2786
          %3033 = vmatpush.msra.mxu0 %v2785
          %3034 = vmatpush.msra.mxu0 %v2784
          %3035 = vmatpush.msra.mxu0 %v2783
          %3036 = vmatpush.msra.mxu0 %v2782
          %3037 = vmatpush.msra.mxu0 %v2781
          %3038 = vmatpush.msra.mxu0 %v2780
          %3039 = vmatpush.msra.mxu0 %v2779
          %3040 = vmatpush.msra.mxu0 %v2778
          %3041 = vmatmul.f32.gmra.mxu0 %v2637
          %v3042 = vpop.f32.mrf.mxu0
          %v3043 = vadd.f32 %v2978, %v3042
          %3044 = vmatmul.f32.gmra.mxu0 %v2643
          %v3045 = vpop.f32.mrf.mxu0
          %v3046 = vadd.f32 %v2981, %v3045
          %3047 = vmatmul.f32.gmra.mxu0 %v2649
          %v3048 = vpop.f32.mrf.mxu0
          %v3049 = vadd.f32 %v2984, %v3048
          %3050 = vmatmul.f32.gmra.mxu0 %v2655
          %v3051 = vpop.f32.mrf.mxu0
          %v3052 = vadd.f32 %v2987, %v3051
          %3053 = vmatmul.f32.gmra.mxu0 %v2661
          %v3054 = vpop.f32.mrf.mxu0
          %v3055 = vadd.f32 %v2990, %v3054
          %3056 = vmatmul.f32.gmra.mxu0 %v2667
          %v3057 = vpop.f32.mrf.mxu0
          %v3058 = vadd.f32 %v2993, %v3057
          %3059 = vmatmul.f32.gmra.mxu0 %v2673
          %v3060 = vpop.f32.mrf.mxu0
          %v3061 = vadd.f32 %v2996, %v3060
          %3062 = vmatmul.f32.gmra.mxu0 %v2679
          %v3063 = vpop.f32.mrf.mxu0
          %v3064 = vadd.f32 %v2999, %v3063
          %3065 = vmatmul.f32.gmra.mxu0 %v2685
          %v3066 = vpop.f32.mrf.mxu0
          %v3067 = vadd.f32 %v3002, %v3066
          %3068 = vmatmul.f32.gmra.mxu0 %v2691
          %v3069 = vpop.f32.mrf.mxu0
          %v3070 = vadd.f32 %v3005, %v3069
          %3071 = vmatmul.f32.gmra.mxu0 %v2697
          %v3072 = vpop.f32.mrf.mxu0
          %v3073 = vadd.f32 %v3008, %v3072
          %3074 = vmatmul.f32.gmra.mxu0 %v2703
          %v3075 = vpop.f32.mrf.mxu0
          %v3076 = vadd.f32 %v3011, %v3075
          %3077 = vmatmul.f32.gmra.mxu0 %v2709
          %v3078 = vpop.f32.mrf.mxu0
          %v3079 = vadd.f32 %v3014, %v3078
          %3080 = vmatmul.f32.gmra.mxu0 %v2715
          %v3081 = vpop.f32.mrf.mxu0
          %v3082 = vadd.f32 %v3017, %v3081
          %3083 = vmatmul.f32.gmra.mxu0 %v2721
          %v3084 = vpop.f32.mrf.mxu0
          %v3085 = vadd.f32 %v3020, %v3084
          %3086 = vmatmul.f32.gmra.mxu0 %v2727
          %v3087 = vpop.f32.mrf.mxu0
          %v3088 = vadd.f32 %v3023, %v3087
          %3089 = vdwg.mxu0
          %3090 = vmatpush.msra.mxu0 %v2809
          %3091 = vmatpush.msra.mxu0 %v2808
          %3092 = vmatpush.msra.mxu0 %v2807
          %3093 = vmatpush.msra.mxu0 %v2806
          %3094 = vmatpush.msra.mxu0 %v2805
          %3095 = vmatpush.msra.mxu0 %v2804
          %3096 = vmatpush.msra.mxu0 %v2803
          %3097 = vmatpush.msra.mxu0 %v2802
          %3098 = vmatpush.msra.mxu0 %v2801
          %3099 = vmatpush.msra.mxu0 %v2800
          %3100 = vmatpush.msra.mxu0 %v2799
          %3101 = vmatpush.msra.mxu0 %v2798
          %3102 = vmatpush.msra.mxu0 %v2797
          %3103 = vmatpush.msra.mxu0 %v2796
          %3104 = vmatpush.msra.mxu0 %v2795
          %3105 = vmatpush.msra.mxu0 %v2794
          %3106 = vmatmul.f32.gmra.mxu0 %v2638
          %v3107 = vpop.f32.mrf.mxu0
          %v3108 = vadd.f32 %v3043, %v3107
          %3109 = vmatmul.f32.gmra.mxu0 %v2644
          %v3110 = vpop.f32.mrf.mxu0
          %v3111 = vadd.f32 %v3046, %v3110
          %3112 = vmatmul.f32.gmra.mxu0 %v2650
          %v3113 = vpop.f32.mrf.mxu0
          %v3114 = vadd.f32 %v3049, %v3113
          %3115 = vmatmul.f32.gmra.mxu0 %v2656
          %v3116 = vpop.f32.mrf.mxu0
          %v3117 = vadd.f32 %v3052, %v3116
          %3118 = vmatmul.f32.gmra.mxu0 %v2662
          %v3119 = vpop.f32.mrf.mxu0
          %v3120 = vadd.f32 %v3055, %v3119
          %3121 = vmatmul.f32.gmra.mxu0 %v2668
          %v3122 = vpop.f32.mrf.mxu0
          %v3123 = vadd.f32 %v3058, %v3122
          %3124 = vmatmul.f32.gmra.mxu0 %v2674
          %v3125 = vpop.f32.mrf.mxu0
          %v3126 = vadd.f32 %v3061, %v3125
          %3127 = vmatmul.f32.gmra.mxu0 %v2680
          %v3128 = vpop.f32.mrf.mxu0
          %v3129 = vadd.f32 %v3064, %v3128
          %3130 = vmatmul.f32.gmra.mxu0 %v2686
          %v3131 = vpop.f32.mrf.mxu0
          %v3132 = vadd.f32 %v3067, %v3131
          %3133 = vmatmul.f32.gmra.mxu0 %v2692
          %v3134 = vpop.f32.mrf.mxu0
          %v3135 = vadd.f32 %v3070, %v3134
          %3136 = vmatmul.f32.gmra.mxu0 %v2698
          %v3137 = vpop.f32.mrf.mxu0
          %v3138 = vadd.f32 %v3073, %v3137
          %3139 = vmatmul.f32.gmra.mxu0 %v2704
          %v3140 = vpop.f32.mrf.mxu0
          %v3141 = vadd.f32 %v3076, %v3140
          %3142 = vmatmul.f32.gmra.mxu0 %v2710
          %v3143 = vpop.f32.mrf.mxu0
          %v3144 = vadd.f32 %v3079, %v3143
          %3145 = vmatmul.f32.gmra.mxu0 %v2716
          %v3146 = vpop.f32.mrf.mxu0
          %v3147 = vadd.f32 %v3082, %v3146
          %3148 = vmatmul.f32.gmra.mxu0 %v2722
          %v3149 = vpop.f32.mrf.mxu0
          %v3150 = vadd.f32 %v3085, %v3149
          %3151 = vmatmul.f32.gmra.mxu0 %v2728
          %v3152 = vpop.f32.mrf.mxu0
          %v3153 = vadd.f32 %v3088, %v3152
          %3154 = vdwg.mxu0
          %3155 = vmatpush.msra.mxu0 %v2825
          %3156 = vmatpush.msra.mxu0 %v2824
          %3157 = vmatpush.msra.mxu0 %v2823
          %3158 = vmatpush.msra.mxu0 %v2822
          %3159 = vmatpush.msra.mxu0 %v2821
          %3160 = vmatpush.msra.mxu0 %v2820
          %3161 = vmatpush.msra.mxu0 %v2819
          %3162 = vmatpush.msra.mxu0 %v2818
          %3163 = vmatpush.msra.mxu0 %v2817
          %3164 = vmatpush.msra.mxu0 %v2816
          %3165 = vmatpush.msra.mxu0 %v2815
          %3166 = vmatpush.msra.mxu0 %v2814
          %3167 = vmatpush.msra.mxu0 %v2813
          %3168 = vmatpush.msra.mxu0 %v2812
          %3169 = vmatpush.msra.mxu0 %v2811
          %3170 = vmatpush.msra.mxu0 %v2810
          %3171 = vmatmul.f32.gmra.mxu0 %v2639
          %v3172 = vpop.f32.mrf.mxu0
          %v3173 = vadd.f32 %v3108, %v3172
          %3174 = vmatmul.f32.gmra.mxu0 %v2645
          %v3175 = vpop.f32.mrf.mxu0
          %v3176 = vadd.f32 %v3111, %v3175
          %3177 = vmatmul.f32.gmra.mxu0 %v2651
          %v3178 = vpop.f32.mrf.mxu0
          %v3179 = vadd.f32 %v3114, %v3178
          %3180 = vmatmul.f32.gmra.mxu0 %v2657
          %v3181 = vpop.f32.mrf.mxu0
          %v3182 = vadd.f32 %v3117, %v3181
          %3183 = vmatmul.f32.gmra.mxu0 %v2663
          %v3184 = vpop.f32.mrf.mxu0
          %v3185 = vadd.f32 %v3120, %v3184
          %3186 = vmatmul.f32.gmra.mxu0 %v2669
          %v3187 = vpop.f32.mrf.mxu0
          %v3188 = vadd.f32 %v3123, %v3187
          %3189 = vmatmul.f32.gmra.mxu0 %v2675
          %v3190 = vpop.f32.mrf.mxu0
          %v3191 = vadd.f32 %v3126, %v3190
          %3192 = vmatmul.f32.gmra.mxu0 %v2681
          %v3193 = vpop.f32.mrf.mxu0
          %v3194 = vadd.f32 %v3129, %v3193
          %3195 = vmatmul.f32.gmra.mxu0 %v2687
          %v3196 = vpop.f32.mrf.mxu0
          %v3197 = vadd.f32 %v3132, %v3196
          %3198 = vmatmul.f32.gmra.mxu0 %v2693
          %v3199 = vpop.f32.mrf.mxu0
          %v3200 = vadd.f32 %v3135, %v3199
          %3201 = vmatmul.f32.gmra.mxu0 %v2699
          %v3202 = vpop.f32.mrf.mxu0
          %v3203 = vadd.f32 %v3138, %v3202
          %3204 = vmatmul.f32.gmra.mxu0 %v2705
          %v3205 = vpop.f32.mrf.mxu0
          %v3206 = vadd.f32 %v3141, %v3205
          %3207 = vmatmul.f32.gmra.mxu0 %v2711
          %v3208 = vpop.f32.mrf.mxu0
          %v3209 = vadd.f32 %v3144, %v3208
          %3210 = vmatmul.f32.gmra.mxu0 %v2717
          %v3211 = vpop.f32.mrf.mxu0
          %v3212 = vadd.f32 %v3147, %v3211
          %3213 = vmatmul.f32.gmra.mxu0 %v2723
          %v3214 = vpop.f32.mrf.mxu0
          %v3215 = vadd.f32 %v3150, %v3214
          %3216 = vmatmul.f32.gmra.mxu0 %v2729
          %v3217 = vpop.f32.mrf.mxu0
          %v3218 = vadd.f32 %v3153, %v3217
          %3219 = vdwg.mxu0
          %3220 = vadd.xlane.f32.xlu0 %v3173
          %v3221 = vpop.xlane.xlu0 %3220
          %3222 = vadd.xlane.f32.xlu0 %v3176
          %v3223 = vpop.xlane.xlu0 %3222
          %3224 = vadd.xlane.f32.xlu0 %v3179
          %v3225 = vpop.xlane.xlu0 %3224
          %3226 = vadd.xlane.f32.xlu0 %v3182
          %v3227 = vpop.xlane.xlu0 %3226
          %3228 = vadd.xlane.f32.xlu0 %v3185
          %v3229 = vpop.xlane.xlu0 %3228
          %3230 = vadd.xlane.f32.xlu0 %v3188
          %v3231 = vpop.xlane.xlu0 %3230
          %3232 = vadd.xlane.f32.xlu0 %v3191
          %v3233 = vpop.xlane.xlu0 %3232
          %3234 = vadd.xlane.f32.xlu0 %v3194
          %v3235 = vpop.xlane.xlu0 %3234
          %3236 = vadd.xlane.f32.xlu0 %v3197
          %v3237 = vpop.xlane.xlu0 %3236
          %3238 = vadd.xlane.f32.xlu0 %v3200
          %v3239 = vpop.xlane.xlu0 %3238
          %3240 = vadd.xlane.f32.xlu0 %v3203
          %v3241 = vpop.xlane.xlu0 %3240
          %3242 = vadd.xlane.f32.xlu0 %v3206
          %v3243 = vpop.xlane.xlu0 %3242
          %3244 = vadd.xlane.f32.xlu0 %v3209
          %v3245 = vpop.xlane.xlu0 %3244
          %3246 = vadd.xlane.f32.xlu0 %v3212
          %v3247 = vpop.xlane.xlu0 %3246
          %3248 = vadd.xlane.f32.xlu0 %v3215
          %v3249 = vpop.xlane.xlu0 %3248
          %3250 = vadd.xlane.f32.xlu0 %v3218
          %v3251 = vpop.xlane.xlu0 %3250
          %v3252 = vmul.f32 %v3221, 0.03125
          %v3253 = vmul.f32 %v3223, 0.03125
          %v3254 = vmul.f32 %v3225, 0.03125
          %v3255 = vmul.f32 %v3227, 0.03125
          %v3256 = vmul.f32 %v3229, 0.03125
          %v3257 = vmul.f32 %v3231, 0.03125
          %v3258 = vmul.f32 %v3233, 0.03125
          %v3259 = vmul.f32 %v3235, 0.03125
          %v3260 = vmul.f32 %v3237, 0.03125
          %v3261 = vmul.f32 %v3239, 0.03125
          %v3262 = vmul.f32 %v3241, 0.03125
          %v3263 = vmul.f32 %v3243, 0.03125
          %v3264 = vmul.f32 %v3245, 0.03125
          %v3265 = vmul.f32 %v3247, 0.03125
          %v3266 = vmul.f32 %v3249, 0.03125
          %v3267 = vmul.f32 %v3251, 0.03125
          %v3268 = vsub.f32 %v3173, %v3252
          %v3269 = vsub.f32 %v3176, %v3253
          %v3270 = vsub.f32 %v3179, %v3254
          %v3271 = vsub.f32 %v3182, %v3255
          %v3272 = vsub.f32 %v3185, %v3256
          %v3273 = vsub.f32 %v3188, %v3257
          %v3274 = vsub.f32 %v3191, %v3258
          %v3275 = vsub.f32 %v3194, %v3259
          %v3276 = vsub.f32 %v3197, %v3260
          %v3277 = vsub.f32 %v3200, %v3261
          %v3278 = vsub.f32 %v3203, %v3262
          %v3279 = vsub.f32 %v3206, %v3263
          %v3280 = vsub.f32 %v3209, %v3264
          %v3281 = vsub.f32 %v3212, %v3265
          %v3282 = vsub.f32 %v3215, %v3266
          %v3283 = vsub.f32 %v3218, %v3267
          %v3284 = vmul.f32 %v3268, %v2633
          %v3285 = vmul.f32 %v3269, %v2633
          %v3286 = vmul.f32 %v3270, %v2633
          %v3287 = vmul.f32 %v3271, %v2633
          %v3288 = vmul.f32 %v3272, %v2633
          %v3289 = vmul.f32 %v3273, %v2633
          %v3290 = vmul.f32 %v3274, %v2633
          %v3291 = vmul.f32 %v3275, %v2633
          %v3292 = vmul.f32 %v3276, %v2633
          %v3293 = vmul.f32 %v3277, %v2633
          %v3294 = vmul.f32 %v3278, %v2633
          %v3295 = vmul.f32 %v3279, %v2633
          %v3296 = vmul.f32 %v3280, %v2633
          %v3297 = vmul.f32 %v3281, %v2633
          %v3298 = vmul.f32 %v3282, %v2633
          %v3299 = vmul.f32 %v3283, %v2633
          %v3300 = vmul.f32 %v3284, %v3284
          %v3301 = vmul.f32 %v3285, %v3285
          %v3302 = vmul.f32 %v3286, %v3286
          %v3303 = vmul.f32 %v3287, %v3287
          %v3304 = vmul.f32 %v3288, %v3288
          %v3305 = vmul.f32 %v3289, %v3289
          %v3306 = vmul.f32 %v3290, %v3290
          %v3307 = vmul.f32 %v3291, %v3291
          %v3308 = vmul.f32 %v3292, %v3292
          %v3309 = vmul.f32 %v3293, %v3293
          %v3310 = vmul.f32 %v3294, %v3294
          %v3311 = vmul.f32 %v3295, %v3295
          %v3312 = vmul.f32 %v3296, %v3296
          %v3313 = vmul.f32 %v3297, %v3297
          %v3314 = vmul.f32 %v3298, %v3298
          %v3315 = vmul.f32 %v3299, %v3299
          %3316 = vadd.xlane.f32.xlu0 %v3300
          %v3317 = vpop.xlane.xlu0 %3316
          %3318 = vadd.xlane.f32.xlu0 %v3301
          %v3319 = vpop.xlane.xlu0 %3318
          %3320 = vadd.xlane.f32.xlu0 %v3302
          %v3321 = vpop.xlane.xlu0 %3320
          %3322 = vadd.xlane.f32.xlu0 %v3303
          %v3323 = vpop.xlane.xlu0 %3322
          %3324 = vadd.xlane.f32.xlu0 %v3304
          %v3325 = vpop.xlane.xlu0 %3324
          %3326 = vadd.xlane.f32.xlu0 %v3305
          %v3327 = vpop.xlane.xlu0 %3326
          %3328 = vadd.xlane.f32.xlu0 %v3306
          %v3329 = vpop.xlane.xlu0 %3328
          %3330 = vadd.xlane.f32.xlu0 %v3307
          %v3331 = vpop.xlane.xlu0 %3330
          %3332 = vadd.xlane.f32.xlu0 %v3308
          %v3333 = vpop.xlane.xlu0 %3332
          %3334 = vadd.xlane.f32.xlu0 %v3309
          %v3335 = vpop.xlane.xlu0 %3334
          %3336 = vadd.xlane.f32.xlu0 %v3310
          %v3337 = vpop.xlane.xlu0 %3336
          %3338 = vadd.xlane.f32.xlu0 %v3311
          %v3339 = vpop.xlane.xlu0 %3338
          %3340 = vadd.xlane.f32.xlu0 %v3312
          %v3341 = vpop.xlane.xlu0 %3340
          %3342 = vadd.xlane.f32.xlu0 %v3313
          %v3343 = vpop.xlane.xlu0 %3342
          %3344 = vadd.xlane.f32.xlu0 %v3314
          %v3345 = vpop.xlane.xlu0 %3344
          %3346 = vadd.xlane.f32.xlu0 %v3315
          %v3347 = vpop.xlane.xlu0 %3346
          %v3348 = vmul.f32 %v3317, 0.03125
          %v3349 = vmul.f32 %v3319, 0.03125
          %v3350 = vmul.f32 %v3321, 0.03125
          %v3351 = vmul.f32 %v3323, 0.03125
          %v3352 = vmul.f32 %v3325, 0.03125
          %v3353 = vmul.f32 %v3327, 0.03125
          %v3354 = vmul.f32 %v3329, 0.03125
          %v3355 = vmul.f32 %v3331, 0.03125
          %v3356 = vmul.f32 %v3333, 0.03125
          %v3357 = vmul.f32 %v3335, 0.03125
          %v3358 = vmul.f32 %v3337, 0.03125
          %v3359 = vmul.f32 %v3339, 0.03125
          %v3360 = vmul.f32 %v3341, 0.03125
          %v3361 = vmul.f32 %v3343, 0.03125
          %v3362 = vmul.f32 %v3345, 0.03125
          %v3363 = vmul.f32 %v3347, 0.03125
          %v3364 = vadd.f32 %v3348, 1e-05
          %v3365 = vadd.f32 %v3349, 1e-05
          %v3366 = vadd.f32 %v3350, 1e-05
          %v3367 = vadd.f32 %v3351, 1e-05
          %v3368 = vadd.f32 %v3352, 1e-05
          %v3369 = vadd.f32 %v3353, 1e-05
          %v3370 = vadd.f32 %v3354, 1e-05
          %v3371 = vadd.f32 %v3355, 1e-05
          %v3372 = vadd.f32 %v3356, 1e-05
          %v3373 = vadd.f32 %v3357, 1e-05
          %v3374 = vadd.f32 %v3358, 1e-05
          %v3375 = vadd.f32 %v3359, 1e-05
          %v3376 = vadd.f32 %v3360, 1e-05
          %v3377 = vadd.f32 %v3361, 1e-05
          %v3378 = vadd.f32 %v3362, 1e-05
          %v3379 = vadd.f32 %v3363, 1e-05
          %v3380 = vrsqrt.pop %v3364
          %v3381 = vmul.f32 %v3380, %v3364
          %v3382 = vmul.f32 %v3381, %v3380
          %v3383 = vmul.f32 0.5, %v3382
          %v3384 = vsub.f32 1.5, %v3383
          %v3385 = vmul.f32 %v3380, %v3384
          %vm3386 = vweird.f32 %v3364
          %vm3387 = vweird.f32 %v3380
          %vm3388 = vmor %vm3386, %vm3387
          %v3389 = vsel %vm3388, %v3380, %v3385
          %v3390 = vrsqrt.pop %v3365
          %v3391 = vmul.f32 %v3390, %v3365
          %v3392 = vmul.f32 %v3391, %v3390
          %v3393 = vmul.f32 0.5, %v3392
          %v3394 = vsub.f32 1.5, %v3393
          %v3395 = vmul.f32 %v3390, %v3394
          %vm3396 = vweird.f32 %v3365
          %vm3397 = vweird.f32 %v3390
          %vm3398 = vmor %vm3396, %vm3397
          %v3399 = vsel %vm3398, %v3390, %v3395
          %v3400 = vrsqrt.pop %v3366
          %v3401 = vmul.f32 %v3400, %v3366
          %v3402 = vmul.f32 %v3401, %v3400
          %v3403 = vmul.f32 0.5, %v3402
          %v3404 = vsub.f32 1.5, %v3403
          %v3405 = vmul.f32 %v3400, %v3404
          %vm3406 = vweird.f32 %v3366
          %vm3407 = vweird.f32 %v3400
          %vm3408 = vmor %vm3406, %vm3407
          %v3409 = vsel %vm3408, %v3400, %v3405
          %v3410 = vrsqrt.pop %v3367
          %v3411 = vmul.f32 %v3410, %v3367
          %v3412 = vmul.f32 %v3411, %v3410
          %v3413 = vmul.f32 0.5, %v3412
          %v3414 = vsub.f32 1.5, %v3413
          %v3415 = vmul.f32 %v3410, %v3414
          %vm3416 = vweird.f32 %v3367
          %vm3417 = vweird.f32 %v3410
          %vm3418 = vmor %vm3416, %vm3417
          %v3419 = vsel %vm3418, %v3410, %v3415
          %v3420 = vrsqrt.pop %v3368
          %v3421 = vmul.f32 %v3420, %v3368
          %v3422 = vmul.f32 %v3421, %v3420
          %v3423 = vmul.f32 0.5, %v3422
          %v3424 = vsub.f32 1.5, %v3423
          %v3425 = vmul.f32 %v3420, %v3424
          %vm3426 = vweird.f32 %v3368
          %vm3427 = vweird.f32 %v3420
          %vm3428 = vmor %vm3426, %vm3427
          %v3429 = vsel %vm3428, %v3420, %v3425
          %v3430 = vrsqrt.pop %v3369
          %v3431 = vmul.f32 %v3430, %v3369
          %v3432 = vmul.f32 %v3431, %v3430
          %v3433 = vmul.f32 0.5, %v3432
          %v3434 = vsub.f32 1.5, %v3433
          %v3435 = vmul.f32 %v3430, %v3434
          %vm3436 = vweird.f32 %v3369
          %vm3437 = vweird.f32 %v3430
          %vm3438 = vmor %vm3436, %vm3437
          %v3439 = vsel %vm3438, %v3430, %v3435
          %v3440 = vrsqrt.pop %v3370
          %v3441 = vmul.f32 %v3440, %v3370
          %v3442 = vmul.f32 %v3441, %v3440
          %v3443 = vmul.f32 0.5, %v3442
          %v3444 = vsub.f32 1.5, %v3443
          %v3445 = vmul.f32 %v3440, %v3444
          %vm3446 = vweird.f32 %v3370
          %vm3447 = vweird.f32 %v3440
          %vm3448 = vmor %vm3446, %vm3447
          %v3449 = vsel %vm3448, %v3440, %v3445
          %v3450 = vrsqrt.pop %v3371
          %v3451 = vmul.f32 %v3450, %v3371
          %v3452 = vmul.f32 %v3451, %v3450
          %v3453 = vmul.f32 0.5, %v3452
          %v3454 = vsub.f32 1.5, %v3453
          %v3455 = vmul.f32 %v3450, %v3454
          %vm3456 = vweird.f32 %v3371
          %vm3457 = vweird.f32 %v3450
          %vm3458 = vmor %vm3456, %vm3457
          %v3459 = vsel %vm3458, %v3450, %v3455
          %v3460 = vrsqrt.pop %v3372
          %v3461 = vmul.f32 %v3460, %v3372
          %v3462 = vmul.f32 %v3461, %v3460
          %v3463 = vmul.f32 0.5, %v3462
          %v3464 = vsub.f32 1.5, %v3463
          %v3465 = vmul.f32 %v3460, %v3464
          %vm3466 = vweird.f32 %v3372
          %vm3467 = vweird.f32 %v3460
          %vm3468 = vmor %vm3466, %vm3467
          %v3469 = vsel %vm3468, %v3460, %v3465
          %v3470 = vrsqrt.pop %v3373
          %v3471 = vmul.f32 %v3470, %v3373
          %v3472 = vmul.f32 %v3471, %v3470
          %v3473 = vmul.f32 0.5, %v3472
          %v3474 = vsub.f32 1.5, %v3473
          %v3475 = vmul.f32 %v3470, %v3474
          %vm3476 = vweird.f32 %v3373
          %vm3477 = vweird.f32 %v3470
          %vm3478 = vmor %vm3476, %vm3477
          %v3479 = vsel %vm3478, %v3470, %v3475
          %v3480 = vrsqrt.pop %v3374
          %v3481 = vmul.f32 %v3480, %v3374
          %v3482 = vmul.f32 %v3481, %v3480
          %v3483 = vmul.f32 0.5, %v3482
          %v3484 = vsub.f32 1.5, %v3483
          %v3485 = vmul.f32 %v3480, %v3484
          %vm3486 = vweird.f32 %v3374
          %vm3487 = vweird.f32 %v3480
          %vm3488 = vmor %vm3486, %vm3487
          %v3489 = vsel %vm3488, %v3480, %v3485
          %v3490 = vrsqrt.pop %v3375
          %v3491 = vmul.f32 %v3490, %v3375
          %v3492 = vmul.f32 %v3491, %v3490
          %v3493 = vmul.f32 0.5, %v3492
          %v3494 = vsub.f32 1.5, %v3493
          %v3495 = vmul.f32 %v3490, %v3494
          %vm3496 = vweird.f32 %v3375
          %vm3497 = vweird.f32 %v3490
          %vm3498 = vmor %vm3496, %vm3497
          %v3499 = vsel %vm3498, %v3490, %v3495
          %v3500 = vrsqrt.pop %v3376
          %v3501 = vmul.f32 %v3500, %v3376
          %v3502 = vmul.f32 %v3501, %v3500
          %v3503 = vmul.f32 0.5, %v3502
          %v3504 = vsub.f32 1.5, %v3503
          %v3505 = vmul.f32 %v3500, %v3504
          %vm3506 = vweird.f32 %v3376
          %vm3507 = vweird.f32 %v3500
          %vm3508 = vmor %vm3506, %vm3507
          %v3509 = vsel %vm3508, %v3500, %v3505
          %v3510 = vrsqrt.pop %v3377
          %v3511 = vmul.f32 %v3510, %v3377
          %v3512 = vmul.f32 %v3511, %v3510
          %v3513 = vmul.f32 0.5, %v3512
          %v3514 = vsub.f32 1.5, %v3513
          %v3515 = vmul.f32 %v3510, %v3514
          %vm3516 = vweird.f32 %v3377
          %vm3517 = vweird.f32 %v3510
          %vm3518 = vmor %vm3516, %vm3517
          %v3519 = vsel %vm3518, %v3510, %v3515
          %v3520 = vrsqrt.pop %v3378
          %v3521 = vmul.f32 %v3520, %v3378
          %v3522 = vmul.f32 %v3521, %v3520
          %v3523 = vmul.f32 0.5, %v3522
          %v3524 = vsub.f32 1.5, %v3523
          %v3525 = vmul.f32 %v3520, %v3524
          %vm3526 = vweird.f32 %v3378
          %vm3527 = vweird.f32 %v3520
          %vm3528 = vmor %vm3526, %vm3527
          %v3529 = vsel %vm3528, %v3520, %v3525
          %v3530 = vrsqrt.pop %v3379
          %v3531 = vmul.f32 %v3530, %v3379
          %v3532 = vmul.f32 %v3531, %v3530
          %v3533 = vmul.f32 0.5, %v3532
          %v3534 = vsub.f32 1.5, %v3533
          %v3535 = vmul.f32 %v3530, %v3534
          %vm3536 = vweird.f32 %v3379
          %vm3537 = vweird.f32 %v3530
          %vm3538 = vmor %vm3536, %vm3537
          %v3539 = vsel %vm3538, %v3530, %v3535
          %v3540 = vmul.f32 %v3284, %v3389
          %v3541 = vmul.f32 %v3285, %v3399
          %v3542 = vmul.f32 %v3286, %v3409
          %v3543 = vmul.f32 %v3287, %v3419
          %v3544 = vmul.f32 %v3288, %v3429
          %v3545 = vmul.f32 %v3289, %v3439
          %v3546 = vmul.f32 %v3290, %v3449
          %v3547 = vmul.f32 %v3291, %v3459
          %v3548 = vmul.f32 %v3292, %v3469
          %v3549 = vmul.f32 %v3293, %v3479
          %v3550 = vmul.f32 %v3294, %v3489
          %v3551 = vmul.f32 %v3295, %v3499
          %v3552 = vmul.f32 %v3296, %v3509
          %v3553 = vmul.f32 %v3297, %v3519
          %v3554 = vmul.f32 %v3298, %v3529
          %v3555 = vmul.f32 %v3299, %v3539
          %v3557 = vperm.slane %v2627, 0
          %v3559 = vmul.f32 %v3540, %v3557
          %v3560 = vmul.f32 %v3541, %v3557
          %v3561 = vmul.f32 %v3542, %v3557
          %v3562 = vmul.f32 %v3543, %v3557
          %v3563 = vmul.f32 %v3544, %v3557
          %v3564 = vmul.f32 %v3545, %v3557
          %v3565 = vmul.f32 %v3546, %v3557
          %v3566 = vmul.f32 %v3547, %v3557
          %v3567 = vmul.f32 %v3548, %v3557
          %v3568 = vmul.f32 %v3549, %v3557
          %v3569 = vmul.f32 %v3550, %v3557
          %v3570 = vmul.f32 %v3551, %v3557
          %v3571 = vmul.f32 %v3552, %v3557
          %v3572 = vmul.f32 %v3553, %v3557
          %v3573 = vmul.f32 %v3554, %v3557
          %v3574 = vmul.f32 %v3555, %v3557
          %v3576 = vperm.slane %v2628, 0
          %v3578 = vadd.f32 %v3559, %v3576
          %v3579 = vadd.f32 %v3560, %v3576
          %v3580 = vadd.f32 %v3561, %v3576
          %v3581 = vadd.f32 %v3562, %v3576
          %v3582 = vadd.f32 %v3563, %v3576
          %v3583 = vadd.f32 %v3564, %v3576
          %v3584 = vadd.f32 %v3565, %v3576
          %v3585 = vadd.f32 %v3566, %v3576
          %v3586 = vadd.f32 %v3567, %v3576
          %v3587 = vadd.f32 %v3568, %v3576
          %v3588 = vadd.f32 %v3569, %v3576
          %v3589 = vadd.f32 %v3570, %v3576
          %v3590 = vadd.f32 %v3571, %v3576
          %v3591 = vadd.f32 %v3572, %v3576
          %v3592 = vadd.f32 %v3573, %v3576
          %v3593 = vadd.f32 %v3574, %v3576
          %v3594 = vmax.f32 %v3578, 0.0
          %v3595 = vmax.f32 %v3579, 0.0
          %v3596 = vmax.f32 %v3580, 0.0
          %v3597 = vmax.f32 %v3581, 0.0
          %v3598 = vmax.f32 %v3582, 0.0
          %v3599 = vmax.f32 %v3583, 0.0
          %v3600 = vmax.f32 %v3584, 0.0
          %v3601 = vmax.f32 %v3585, 0.0
          %v3602 = vmax.f32 %v3586, 0.0
          %v3603 = vmax.f32 %v3587, 0.0
          %v3604 = vmax.f32 %v3588, 0.0
          %v3605 = vmax.f32 %v3589, 0.0
          %v3606 = vmax.f32 %v3590, 0.0
          %v3607 = vmax.f32 %v3591, 0.0
          %v3608 = vmax.f32 %v3592, 0.0
          %v3609 = vmax.f32 %v3593, 0.0
          %v3610 = vld [vmem:[%s8] sm:$0xff]
          %v3611 = vld [vmem:[%s8 + $0x8] sm:$0xff]
          %v3612 = vld [vmem:[%s8 + $0x10] sm:$0xff]
          %v3613 = vld [vmem:[%s8 + $0x18] sm:$0xff]
          %v3614 = vld [vmem:[%s8 + $0x20] sm:$0xff]
          %v3615 = vld [vmem:[%s8 + $0x28] sm:$0xff]
          %v3616 = vld [vmem:[%s8 + $0x30] sm:$0xff]
          %v3617 = vld [vmem:[%s8 + $0x38] sm:$0xff]
          %v3618 = vld [vmem:[%s8 + $0x40] sm:$0xff]
          %v3619 = vld [vmem:[%s8 + $0x48] sm:$0xff]
          %v3620 = vld [vmem:[%s8 + $0x50] sm:$0xff]
          %v3621 = vld [vmem:[%s8 + $0x58] sm:$0xff]
          %v3622 = vld [vmem:[%s8 + $0x60] sm:$0xff]
          %v3623 = vld [vmem:[%s8 + $0x68] sm:$0xff]
          %v3624 = vld [vmem:[%s8 + $0x70] sm:$0xff]
          %v3625 = vld [vmem:[%s8 + $0x78] sm:$0xff]
          %v3626 = vld [vmem:[%s9] sm:$0x1]
          %v3628 = vperm.slane %v3626, 0
          %3630 = vmatpush.msra.mxu0 %v3625
          %3631 = vmatpush.msra.mxu0 %v3624
          %3632 = vmatpush.msra.mxu0 %v3623
          %3633 = vmatpush.msra.mxu0 %v3622
          %3634 = vmatpush.msra.mxu0 %v3621
          %3635 = vmatpush.msra.mxu0 %v3620
          %3636 = vmatpush.msra.mxu0 %v3619
          %3637 = vmatpush.msra.mxu0 %v3618
          %3638 = vmatpush.msra.mxu0 %v3617
          %3639 = vmatpush.msra.mxu0 %v3616
          %3640 = vmatpush.msra.mxu0 %v3615
          %3641 = vmatpush.msra.mxu0 %v3614
          %3642 = vmatpush.msra.mxu0 %v3613
          %3643 = vmatpush.msra.mxu0 %v3612
          %3644 = vmatpush.msra.mxu0 %v3611
          %3645 = vmatpush.msra.mxu0 %v3610
          %3646 = vmatmul.f32.gmra.mxu0 %v3594
          %v3647 = vpop.f32.mrf.mxu0
          %v3648 = vadd.f32 %v3628, %v3647
          %3649 = vmatmul.f32.gmra.mxu0 %v3595
          %v3650 = vpop.f32.mrf.mxu0
          %v3651 = vadd.f32 %v3628, %v3650
          %3652 = vmatmul.f32.gmra.mxu0 %v3596
          %v3653 = vpop.f32.mrf.mxu0
          %v3654 = vadd.f32 %v3628, %v3653
          %3655 = vmatmul.f32.gmra.mxu0 %v3597
          %v3656 = vpop.f32.mrf.mxu0
          %v3657 = vadd.f32 %v3628, %v3656
          %3658 = vmatmul.f32.gmra.mxu0 %v3598
          %v3659 = vpop.f32.mrf.mxu0
          %v3660 = vadd.f32 %v3628, %v3659
          %3661 = vmatmul.f32.gmra.mxu0 %v3599
          %v3662 = vpop.f32.mrf.mxu0
          %v3663 = vadd.f32 %v3628, %v3662
          %3664 = vmatmul.f32.gmra.mxu0 %v3600
          %v3665 = vpop.f32.mrf.mxu0
          %v3666 = vadd.f32 %v3628, %v3665
          %3667 = vmatmul.f32.gmra.mxu0 %v3601
          %v3668 = vpop.f32.mrf.mxu0
          %v3669 = vadd.f32 %v3628, %v3668
          %3670 = vmatmul.f32.gmra.mxu0 %v3602
          %v3671 = vpop.f32.mrf.mxu0
          %v3672 = vadd.f32 %v3628, %v3671
          %3673 = vmatmul.f32.gmra.mxu0 %v3603
          %v3674 = vpop.f32.mrf.mxu0
          %v3675 = vadd.f32 %v3628, %v3674
          %3676 = vmatmul.f32.gmra.mxu0 %v3604
          %v3677 = vpop.f32.mrf.mxu0
          %v3678 = vadd.f32 %v3628, %v3677
          %3679 = vmatmul.f32.gmra.mxu0 %v3605
          %v3680 = vpop.f32.mrf.mxu0
          %v3681 = vadd.f32 %v3628, %v3680
          %3682 = vmatmul.f32.gmra.mxu0 %v3606
          %v3683 = vpop.f32.mrf.mxu0
          %v3684 = vadd.f32 %v3628, %v3683
          %3685 = vmatmul.f32.gmra.mxu0 %v3607
          %v3686 = vpop.f32.mrf.mxu0
          %v3687 = vadd.f32 %v3628, %v3686
          %3688 = vmatmul.f32.gmra.mxu0 %v3608
          %v3689 = vpop.f32.mrf.mxu0
          %v3690 = vadd.f32 %v3628, %v3689
          %3691 = vmatmul.f32.gmra.mxu0 %v3609
          %v3692 = vpop.f32.mrf.mxu0
          %v3693 = vadd.f32 %v3628, %v3692
          %3694 = vdwg.mxu0
          %3695 = vadd.xlane.f32.xlu0 %v3648
          %v3696 = vpop.xlane.xlu0 %3695
          %3697 = vadd.xlane.f32.xlu0 %v3651
          %v3698 = vpop.xlane.xlu0 %3697
          %3699 = vadd.xlane.f32.xlu0 %v3654
          %v3700 = vpop.xlane.xlu0 %3699
          %3701 = vadd.xlane.f32.xlu0 %v3657
          %v3702 = vpop.xlane.xlu0 %3701
          %3703 = vadd.xlane.f32.xlu0 %v3660
          %v3704 = vpop.xlane.xlu0 %3703
          %3705 = vadd.xlane.f32.xlu0 %v3663
          %v3706 = vpop.xlane.xlu0 %3705
          %3707 = vadd.xlane.f32.xlu0 %v3666
          %v3708 = vpop.xlane.xlu0 %3707
          %3709 = vadd.xlane.f32.xlu0 %v3669
          %v3710 = vpop.xlane.xlu0 %3709
          %3711 = vadd.xlane.f32.xlu0 %v3672
          %v3712 = vpop.xlane.xlu0 %3711
          %3713 = vadd.xlane.f32.xlu0 %v3675
          %v3714 = vpop.xlane.xlu0 %3713
          %3715 = vadd.xlane.f32.xlu0 %v3678
          %v3716 = vpop.xlane.xlu0 %3715
          %3717 = vadd.xlane.f32.xlu0 %v3681
          %v3718 = vpop.xlane.xlu0 %3717
          %3719 = vadd.xlane.f32.xlu0 %v3684
          %v3720 = vpop.xlane.xlu0 %3719
          %3721 = vadd.xlane.f32.xlu0 %v3687
          %v3722 = vpop.xlane.xlu0 %3721
          %3723 = vadd.xlane.f32.xlu0 %v3690
          %v3724 = vpop.xlane.xlu0 %3723
          %3725 = vadd.xlane.f32.xlu0 %v3693
          %v3726 = vpop.xlane.xlu0 %3725
          %v3727 = vmul.f32 %v3696, 0.03125
          %v3728 = vmul.f32 %v3698, 0.03125
          %v3729 = vmul.f32 %v3700, 0.03125
          %v3730 = vmul.f32 %v3702, 0.03125
          %v3731 = vmul.f32 %v3704, 0.03125
          %v3732 = vmul.f32 %v3706, 0.03125
          %v3733 = vmul.f32 %v3708, 0.03125
          %v3734 = vmul.f32 %v3710, 0.03125
          %v3735 = vmul.f32 %v3712, 0.03125
          %v3736 = vmul.f32 %v3714, 0.03125
          %v3737 = vmul.f32 %v3716, 0.03125
          %v3738 = vmul.f32 %v3718, 0.03125
          %v3739 = vmul.f32 %v3720, 0.03125
          %v3740 = vmul.f32 %v3722, 0.03125
          %v3741 = vmul.f32 %v3724, 0.03125
          %v3742 = vmul.f32 %v3726, 0.03125
          %v3743 = vsub.f32 %v3648, %v3727
          %v3744 = vsub.f32 %v3651, %v3728
          %v3745 = vsub.f32 %v3654, %v3729
          %v3746 = vsub.f32 %v3657, %v3730
          %v3747 = vsub.f32 %v3660, %v3731
          %v3748 = vsub.f32 %v3663, %v3732
          %v3749 = vsub.f32 %v3666, %v3733
          %v3750 = vsub.f32 %v3669, %v3734
          %v3751 = vsub.f32 %v3672, %v3735
          %v3752 = vsub.f32 %v3675, %v3736
          %v3753 = vsub.f32 %v3678, %v3737
          %v3754 = vsub.f32 %v3681, %v3738
          %v3755 = vsub.f32 %v3684, %v3739
          %v3756 = vsub.f32 %v3687, %v3740
          %v3757 = vsub.f32 %v3690, %v3741
          %v3758 = vsub.f32 %v3693, %v3742
          %v3759 = vmul.f32 %v3743, %v2633
          %v3760 = vmul.f32 %v3744, %v2633
          %v3761 = vmul.f32 %v3745, %v2633
          %v3762 = vmul.f32 %v3746, %v2633
          %v3763 = vmul.f32 %v3747, %v2633
          %v3764 = vmul.f32 %v3748, %v2633
          %v3765 = vmul.f32 %v3749, %v2633
          %v3766 = vmul.f32 %v3750, %v2633
          %v3767 = vmul.f32 %v3751, %v2633
          %v3768 = vmul.f32 %v3752, %v2633
          %v3769 = vmul.f32 %v3753, %v2633
          %v3770 = vmul.f32 %v3754, %v2633
          %v3771 = vmul.f32 %v3755, %v2633
          %v3772 = vmul.f32 %v3756, %v2633
          %v3773 = vmul.f32 %v3757, %v2633
          %v3774 = vmul.f32 %v3758, %v2633
          %v3775 = vmul.f32 %v3759, %v3759
          %v3776 = vmul.f32 %v3760, %v3760
          %v3777 = vmul.f32 %v3761, %v3761
          %v3778 = vmul.f32 %v3762, %v3762
          %v3779 = vmul.f32 %v3763, %v3763
          %v3780 = vmul.f32 %v3764, %v3764
          %v3781 = vmul.f32 %v3765, %v3765
          %v3782 = vmul.f32 %v3766, %v3766
          %v3783 = vmul.f32 %v3767, %v3767
          %v3784 = vmul.f32 %v3768, %v3768
          %v3785 = vmul.f32 %v3769, %v3769
          %v3786 = vmul.f32 %v3770, %v3770
          %v3787 = vmul.f32 %v3771, %v3771
          %v3788 = vmul.f32 %v3772, %v3772
          %v3789 = vmul.f32 %v3773, %v3773
          %v3790 = vmul.f32 %v3774, %v3774
          %3791 = vadd.xlane.f32.xlu0 %v3775
          %v3792 = vpop.xlane.xlu0 %3791
          %3793 = vadd.xlane.f32.xlu0 %v3776
          %v3794 = vpop.xlane.xlu0 %3793
          %3795 = vadd.xlane.f32.xlu0 %v3777
          %v3796 = vpop.xlane.xlu0 %3795
          %3797 = vadd.xlane.f32.xlu0 %v3778
          %v3798 = vpop.xlane.xlu0 %3797
          %3799 = vadd.xlane.f32.xlu0 %v3779
          %v3800 = vpop.xlane.xlu0 %3799
          %3801 = vadd.xlane.f32.xlu0 %v3780
          %v3802 = vpop.xlane.xlu0 %3801
          %3803 = vadd.xlane.f32.xlu0 %v3781
          %v3804 = vpop.xlane.xlu0 %3803
          %3805 = vadd.xlane.f32.xlu0 %v3782
          %v3806 = vpop.xlane.xlu0 %3805
          %3807 = vadd.xlane.f32.xlu0 %v3783
          %v3808 = vpop.xlane.xlu0 %3807
          %3809 = vadd.xlane.f32.xlu0 %v3784
          %v3810 = vpop.xlane.xlu0 %3809
          %3811 = vadd.xlane.f32.xlu0 %v3785
          %v3812 = vpop.xlane.xlu0 %3811
          %3813 = vadd.xlane.f32.xlu0 %v3786
          %v3814 = vpop.xlane.xlu0 %3813
          %3815 = vadd.xlane.f32.xlu0 %v3787
          %v3816 = vpop.xlane.xlu0 %3815
          %3817 = vadd.xlane.f32.xlu0 %v3788
          %v3818 = vpop.xlane.xlu0 %3817
          %3819 = vadd.xlane.f32.xlu0 %v3789
          %v3820 = vpop.xlane.xlu0 %3819
          %3821 = vadd.xlane.f32.xlu0 %v3790
          %v3822 = vpop.xlane.xlu0 %3821
          %v3823 = vmul.f32 %v3792, 0.03125
          %v3824 = vmul.f32 %v3794, 0.03125
          %v3825 = vmul.f32 %v3796, 0.03125
          %v3826 = vmul.f32 %v3798, 0.03125
          %v3827 = vmul.f32 %v3800, 0.03125
          %v3828 = vmul.f32 %v3802, 0.03125
          %v3829 = vmul.f32 %v3804, 0.03125
          %v3830 = vmul.f32 %v3806, 0.03125
          %v3831 = vmul.f32 %v3808, 0.03125
          %v3832 = vmul.f32 %v3810, 0.03125
          %v3833 = vmul.f32 %v3812, 0.03125
          %v3834 = vmul.f32 %v3814, 0.03125
          %v3835 = vmul.f32 %v3816, 0.03125
          %v3836 = vmul.f32 %v3818, 0.03125
          %v3837 = vmul.f32 %v3820, 0.03125
          %v3838 = vmul.f32 %v3822, 0.03125
          %v3839 = vadd.f32 %v3823, 1e-05
          %v3840 = vadd.f32 %v3824, 1e-05
          %v3841 = vadd.f32 %v3825, 1e-05
          %v3842 = vadd.f32 %v3826, 1e-05
          %v3843 = vadd.f32 %v3827, 1e-05
          %v3844 = vadd.f32 %v3828, 1e-05
          %v3845 = vadd.f32 %v3829, 1e-05
          %v3846 = vadd.f32 %v3830, 1e-05
          %v3847 = vadd.f32 %v3831, 1e-05
          %v3848 = vadd.f32 %v3832, 1e-05
          %v3849 = vadd.f32 %v3833, 1e-05
          %v3850 = vadd.f32 %v3834, 1e-05
          %v3851 = vadd.f32 %v3835, 1e-05
          %v3852 = vadd.f32 %v3836, 1e-05
          %v3853 = vadd.f32 %v3837, 1e-05
          %v3854 = vadd.f32 %v3838, 1e-05
          %v3855 = vrsqrt.pop %v3839
          %v3856 = vmul.f32 %v3855, %v3839
          %v3857 = vmul.f32 %v3856, %v3855
          %v3858 = vmul.f32 0.5, %v3857
          %v3859 = vsub.f32 1.5, %v3858
          %v3860 = vmul.f32 %v3855, %v3859
          %vm3861 = vweird.f32 %v3839
          %vm3862 = vweird.f32 %v3855
          %vm3863 = vmor %vm3861, %vm3862
          %v3864 = vsel %vm3863, %v3855, %v3860
          %v3865 = vrsqrt.pop %v3840
          %v3866 = vmul.f32 %v3865, %v3840
          %v3867 = vmul.f32 %v3866, %v3865
          %v3868 = vmul.f32 0.5, %v3867
          %v3869 = vsub.f32 1.5, %v3868
          %v3870 = vmul.f32 %v3865, %v3869
          %vm3871 = vweird.f32 %v3840
          %vm3872 = vweird.f32 %v3865
          %vm3873 = vmor %vm3871, %vm3872
          %v3874 = vsel %vm3873, %v3865, %v3870
          %v3875 = vrsqrt.pop %v3841
          %v3876 = vmul.f32 %v3875, %v3841
          %v3877 = vmul.f32 %v3876, %v3875
          %v3878 = vmul.f32 0.5, %v3877
          %v3879 = vsub.f32 1.5, %v3878
          %v3880 = vmul.f32 %v3875, %v3879
          %vm3881 = vweird.f32 %v3841
          %vm3882 = vweird.f32 %v3875
          %vm3883 = vmor %vm3881, %vm3882
          %v3884 = vsel %vm3883, %v3875, %v3880
          %v3885 = vrsqrt.pop %v3842
          %v3886 = vmul.f32 %v3885, %v3842
          %v3887 = vmul.f32 %v3886, %v3885
          %v3888 = vmul.f32 0.5, %v3887
          %v3889 = vsub.f32 1.5, %v3888
          %v3890 = vmul.f32 %v3885, %v3889
          %vm3891 = vweird.f32 %v3842
          %vm3892 = vweird.f32 %v3885
          %vm3893 = vmor %vm3891, %vm3892
          %v3894 = vsel %vm3893, %v3885, %v3890
          %v3895 = vrsqrt.pop %v3843
          %v3896 = vmul.f32 %v3895, %v3843
          %v3897 = vmul.f32 %v3896, %v3895
          %v3898 = vmul.f32 0.5, %v3897
          %v3899 = vsub.f32 1.5, %v3898
          %v3900 = vmul.f32 %v3895, %v3899
          %vm3901 = vweird.f32 %v3843
          %vm3902 = vweird.f32 %v3895
          %vm3903 = vmor %vm3901, %vm3902
          %v3904 = vsel %vm3903, %v3895, %v3900
          %v3905 = vrsqrt.pop %v3844
          %v3906 = vmul.f32 %v3905, %v3844
          %v3907 = vmul.f32 %v3906, %v3905
          %v3908 = vmul.f32 0.5, %v3907
          %v3909 = vsub.f32 1.5, %v3908
          %v3910 = vmul.f32 %v3905, %v3909
          %vm3911 = vweird.f32 %v3844
          %vm3912 = vweird.f32 %v3905
          %vm3913 = vmor %vm3911, %vm3912
          %v3914 = vsel %vm3913, %v3905, %v3910
          %v3915 = vrsqrt.pop %v3845
          %v3916 = vmul.f32 %v3915, %v3845
          %v3917 = vmul.f32 %v3916, %v3915
          %v3918 = vmul.f32 0.5, %v3917
          %v3919 = vsub.f32 1.5, %v3918
          %v3920 = vmul.f32 %v3915, %v3919
          %vm3921 = vweird.f32 %v3845
          %vm3922 = vweird.f32 %v3915
          %vm3923 = vmor %vm3921, %vm3922
          %v3924 = vsel %vm3923, %v3915, %v3920
          %v3925 = vrsqrt.pop %v3846
          %v3926 = vmul.f32 %v3925, %v3846
          %v3927 = vmul.f32 %v3926, %v3925
          %v3928 = vmul.f32 0.5, %v3927
          %v3929 = vsub.f32 1.5, %v3928
          %v3930 = vmul.f32 %v3925, %v3929
          %vm3931 = vweird.f32 %v3846
          %vm3932 = vweird.f32 %v3925
          %vm3933 = vmor %vm3931, %vm3932
          %v3934 = vsel %vm3933, %v3925, %v3930
          %v3935 = vrsqrt.pop %v3847
          %v3936 = vmul.f32 %v3935, %v3847
          %v3937 = vmul.f32 %v3936, %v3935
          %v3938 = vmul.f32 0.5, %v3937
          %v3939 = vsub.f32 1.5, %v3938
          %v3940 = vmul.f32 %v3935, %v3939
          %vm3941 = vweird.f32 %v3847
          %vm3942 = vweird.f32 %v3935
          %vm3943 = vmor %vm3941, %vm3942
          %v3944 = vsel %vm3943, %v3935, %v3940
          %v3945 = vrsqrt.pop %v3848
          %v3946 = vmul.f32 %v3945, %v3848
          %v3947 = vmul.f32 %v3946, %v3945
          %v3948 = vmul.f32 0.5, %v3947
          %v3949 = vsub.f32 1.5, %v3948
          %v3950 = vmul.f32 %v3945, %v3949
          %vm3951 = vweird.f32 %v3848
          %vm3952 = vweird.f32 %v3945
          %vm3953 = vmor %vm3951, %vm3952
          %v3954 = vsel %vm3953, %v3945, %v3950
          %v3955 = vrsqrt.pop %v3849
          %v3956 = vmul.f32 %v3955, %v3849
          %v3957 = vmul.f32 %v3956, %v3955
          %v3958 = vmul.f32 0.5, %v3957
          %v3959 = vsub.f32 1.5, %v3958
          %v3960 = vmul.f32 %v3955, %v3959
          %vm3961 = vweird.f32 %v3849
          %vm3962 = vweird.f32 %v3955
          %vm3963 = vmor %vm3961, %vm3962
          %v3964 = vsel %vm3963, %v3955, %v3960
          %v3965 = vrsqrt.pop %v3850
          %v3966 = vmul.f32 %v3965, %v3850
          %v3967 = vmul.f32 %v3966, %v3965
          %v3968 = vmul.f32 0.5, %v3967
          %v3969 = vsub.f32 1.5, %v3968
          %v3970 = vmul.f32 %v3965, %v3969
          %vm3971 = vweird.f32 %v3850
          %vm3972 = vweird.f32 %v3965
          %vm3973 = vmor %vm3971, %vm3972
          %v3974 = vsel %vm3973, %v3965, %v3970
          %v3975 = vrsqrt.pop %v3851
          %v3976 = vmul.f32 %v3975, %v3851
          %v3977 = vmul.f32 %v3976, %v3975
          %v3978 = vmul.f32 0.5, %v3977
          %v3979 = vsub.f32 1.5, %v3978
          %v3980 = vmul.f32 %v3975, %v3979
          %vm3981 = vweird.f32 %v3851
          %vm3982 = vweird.f32 %v3975
          %vm3983 = vmor %vm3981, %vm3982
          %v3984 = vsel %vm3983, %v3975, %v3980
          %v3985 = vrsqrt.pop %v3852
          %v3986 = vmul.f32 %v3985, %v3852
          %v3987 = vmul.f32 %v3986, %v3985
          %v3988 = vmul.f32 0.5, %v3987
          %v3989 = vsub.f32 1.5, %v3988
          %v3990 = vmul.f32 %v3985, %v3989
          %vm3991 = vweird.f32 %v3852
          %vm3992 = vweird.f32 %v3985
          %vm3993 = vmor %vm3991, %vm3992
          %v3994 = vsel %vm3993, %v3985, %v3990
          %v3995 = vrsqrt.pop %v3853
          %v3996 = vmul.f32 %v3995, %v3853
          %v3997 = vmul.f32 %v3996, %v3995
          %v3998 = vmul.f32 0.5, %v3997
          %v3999 = vsub.f32 1.5, %v3998
          %v4000 = vmul.f32 %v3995, %v3999
          %vm4001 = vweird.f32 %v3853
          %vm4002 = vweird.f32 %v3995
          %vm4003 = vmor %vm4001, %vm4002
          %v4004 = vsel %vm4003, %v3995, %v4000
          %v4005 = vrsqrt.pop %v3854
          %v4006 = vmul.f32 %v4005, %v3854
          %v4007 = vmul.f32 %v4006, %v4005
          %v4008 = vmul.f32 0.5, %v4007
          %v4009 = vsub.f32 1.5, %v4008
          %v4010 = vmul.f32 %v4005, %v4009
          %vm4011 = vweird.f32 %v3854
          %vm4012 = vweird.f32 %v4005
          %vm4013 = vmor %vm4011, %vm4012
          %v4014 = vsel %vm4013, %v4005, %v4010
          %v4015 = vmul.f32 %v3759, %v3864
          %v4016 = vmul.f32 %v3760, %v3874
          %v4017 = vmul.f32 %v3761, %v3884
          %v4018 = vmul.f32 %v3762, %v3894
          %v4019 = vmul.f32 %v3763, %v3904
          %v4020 = vmul.f32 %v3764, %v3914
          %v4021 = vmul.f32 %v3765, %v3924
          %v4022 = vmul.f32 %v3766, %v3934
          %v4023 = vmul.f32 %v3767, %v3944
          %v4024 = vmul.f32 %v3768, %v3954
          %v4025 = vmul.f32 %v3769, %v3964
          %v4026 = vmul.f32 %v3770, %v3974
          %v4027 = vmul.f32 %v3771, %v3984
          %v4028 = vmul.f32 %v3772, %v3994
          %v4029 = vmul.f32 %v3773, %v4004
          %v4030 = vmul.f32 %v3774, %v4014
          %v4031 = vmul.f32 %v4015, %v3557
          %v4032 = vmul.f32 %v4016, %v3557
          %v4033 = vmul.f32 %v4017, %v3557
          %v4034 = vmul.f32 %v4018, %v3557
          %v4035 = vmul.f32 %v4019, %v3557
          %v4036 = vmul.f32 %v4020, %v3557
          %v4037 = vmul.f32 %v4021, %v3557
          %v4038 = vmul.f32 %v4022, %v3557
          %v4039 = vmul.f32 %v4023, %v3557
          %v4040 = vmul.f32 %v4024, %v3557
          %v4041 = vmul.f32 %v4025, %v3557
          %v4042 = vmul.f32 %v4026, %v3557
          %v4043 = vmul.f32 %v4027, %v3557
          %v4044 = vmul.f32 %v4028, %v3557
          %v4045 = vmul.f32 %v4029, %v3557
          %v4046 = vmul.f32 %v4030, %v3557
          %v4047 = vadd.f32 %v4031, %v3576
          %v4048 = vadd.f32 %v4032, %v3576
          %v4049 = vadd.f32 %v4033, %v3576
          %v4050 = vadd.f32 %v4034, %v3576
          %v4051 = vadd.f32 %v4035, %v3576
          %v4052 = vadd.f32 %v4036, %v3576
          %v4053 = vadd.f32 %v4037, %v3576
          %v4054 = vadd.f32 %v4038, %v3576
          %v4055 = vadd.f32 %v4039, %v3576
          %v4056 = vadd.f32 %v4040, %v3576
          %v4057 = vadd.f32 %v4041, %v3576
          %v4058 = vadd.f32 %v4042, %v3576
          %v4059 = vadd.f32 %v4043, %v3576
          %v4060 = vadd.f32 %v4044, %v3576
          %v4061 = vadd.f32 %v4045, %v3576
          %v4062 = vadd.f32 %v4046, %v3576
          %v4063 = vmax.f32 %v4047, 0.0
          %v4064 = vmax.f32 %v4048, 0.0
          %v4065 = vmax.f32 %v4049, 0.0
          %v4066 = vmax.f32 %v4050, 0.0
          %v4067 = vmax.f32 %v4051, 0.0
          %v4068 = vmax.f32 %v4052, 0.0
          %v4069 = vmax.f32 %v4053, 0.0
          %v4070 = vmax.f32 %v4054, 0.0
          %v4071 = vmax.f32 %v4055, 0.0
          %v4072 = vmax.f32 %v4056, 0.0
          %v4073 = vmax.f32 %v4057, 0.0
          %v4074 = vmax.f32 %v4058, 0.0
          %v4075 = vmax.f32 %v4059, 0.0
          %v4076 = vmax.f32 %v4060, 0.0
          %v4077 = vmax.f32 %v4061, 0.0
          %v4078 = vmax.f32 %v4062, 0.0
          %v4079 = vadd.f32 %v4063, %v2175
          %v4080 = vadd.f32 %v4064, %v2176
          %v4081 = vadd.f32 %v4065, %v2177
          %v4082 = vadd.f32 %v4066, %v2178
          %v4083 = vadd.f32 %v4067, %v2179
          %v4084 = vadd.f32 %v4068, %v2180
          %v4085 = vadd.f32 %v4069, %v2181
          %v4086 = vadd.f32 %v4070, %v2182
          %v4087 = vadd.f32 %v4071, %v2183
          %v4088 = vadd.f32 %v4072, %v2184
          %v4089 = vadd.f32 %v4073, %v2185
          %v4090 = vadd.f32 %v4074, %v2186
          %v4091 = vadd.f32 %v4075, %v2187
          %v4092 = vadd.f32 %v4076, %v2188
          %v4093 = vadd.f32 %v4077, %v2189
          %v4094 = vadd.f32 %v4078, %v2190
          %v4095 = vmax.f32 %v4079, 0.0
          %v4096 = vmax.f32 %v4080, 0.0
          %v4097 = vmax.f32 %v4081, 0.0
          %v4098 = vmax.f32 %v4082, 0.0
          %v4099 = vmax.f32 %v4083, 0.0
          %v4100 = vmax.f32 %v4084, 0.0
          %v4101 = vmax.f32 %v4085, 0.0
          %v4102 = vmax.f32 %v4086, 0.0
          %v4103 = vmax.f32 %v4087, 0.0
          %v4104 = vmax.f32 %v4088, 0.0
          %v4105 = vmax.f32 %v4089, 0.0
          %v4106 = vmax.f32 %v4090, 0.0
          %v4107 = vmax.f32 %v4091, 0.0
          %v4108 = vmax.f32 %v4092, 0.0
          %v4109 = vmax.f32 %v4093, 0.0
          %v4110 = vmax.f32 %v4094, 0.0
          %4111 = vst [vmem:[%s842] sm:$0xff] %v4095
          %4112 = vst [vmem:[%s842 + $0x8] sm:$0xff] %v4096
          %4113 = vst [vmem:[%s842 + $0x10] sm:$0xff] %v4097
          %4114 = vst [vmem:[%s842 + $0x18] sm:$0xff] %v4098
          %4115 = vst [vmem:[%s842 + $0x20] sm:$0xff] %v4099
          %4116 = vst [vmem:[%s842 + $0x28] sm:$0xff] %v4100
          %4117 = vst [vmem:[%s842 + $0x30] sm:$0xff] %v4101
          %4118 = vst [vmem:[%s842 + $0x38] sm:$0xff] %v4102
          %4119 = vst [vmem:[%s842 + $0x40] sm:$0xff] %v4103
          %4120 = vst [vmem:[%s842 + $0x48] sm:$0xff] %v4104
          %4121 = vst [vmem:[%s842 + $0x50] sm:$0xff] %v4105
          %4122 = vst [vmem:[%s842 + $0x58] sm:$0xff] %v4106
          %4123 = vst [vmem:[%s842 + $0x60] sm:$0xff] %v4107
          %4124 = vst [vmem:[%s842 + $0x68] sm:$0xff] %v4108
          %4125 = vst [vmem:[%s842 + $0x70] sm:$0xff] %v4109
          %4126 = vst [vmem:[%s842 + $0x78] sm:$0xff] %v4110
        $region199: #{gcn_block.1} parent=178 // pred_fallthru
          _
        %s4127 = smul.u32 16, %s27
        %p4128 = scmp.lt.s32.totalorder %s4127, 31
        %s4129 = scalar_select %p4128, %s4127, 31
        %s4130 = smul.addr %s4129, 8
        %s4131 = scalar_lea.vmem %s12, %s4130
        // Predicated region
        $region200: #{gcn_block.1} parent=178 // pred_check
          %p4132 = pneg %p336
        $region201: #{gcn_block.1} parent=178 // pred_check_branch
          %4134 = sbr.rel (%p4132) target = $region203
        $region202: #{gcn_block.1} parent=178 // pred_region
          %s4135 = smul.u32 16, %s27
        $region203: #{gcn_block.1} parent=178 // pred_fallthru
          _
      $region179: #{gcn_block.1} parent=5 // pred_fallthru
        _
      %p4136 = scmp.le.s32.totalorder 2, %s18
      // Predicated region
      $region204: #{gcn_block.1} parent=5 // pred_check
        %p4137 = pneg %p4136
      $region205: #{gcn_block.1} parent=5 // pred_check_branch
        %4139 = sbr.rel (%p4137) target = $region207
      $region206: #{gcn_block.1} parent=5 // pred_region
        %s4140 = ssub.s32 %s18, 2
        // Predicated region
        $region208: #{gcn_block.1} parent=206 // pred_check
          %p4141 = pneg %p342
        $region209: #{gcn_block.1} parent=206 // pred_check_branch
          %4143 = sbr.rel (%p4141) target = $region211
        $region210: #{gcn_block.1} parent=206 // pred_region
          %s4144 = smul.u32 16, %s29
          %p4145 = scmp.lt.s32.totalorder %s4144, 31
          %s4146 = scalar_select %p4145, %s4144, 31
          %s4147 = smul.addr %s4146, 8
          %s4148 = scalar_lea.vmem %s12, %s4147
        $region211: #{gcn_block.1} parent=206 // pred_fallthru
          _
      $region207: #{gcn_block.1} parent=5 // pred_fallthru
        _
    $region6: #{gcn_block.1} parent=1 // loop_footer
      %s22 = sadd.s32 1, %s18
    $region7: #{gcn_block.1} parent=1 // loop_footer_branch
      %17 = sbr.rel target = $region3
    $region8: #{gcn_block.1} parent=1 // loop_exit
      _

</llo_original>
